<compile_context>
chip_gen: v7x
topology: tpu7x:2x2x1
jax: 0.10.0
libtpu: 0.0.40
codegen_flags: <defaults>
</compile_context>

<pallas_src>
import functools
import math

import jax
import jax.numpy as jnp
from jax.experimental import pallas as pl
from jax.experimental.pallas import tpu as pltpu

D_MODEL = 32
BLK_DIM = 768  # fixed by nn.Embedding(len(emb), 768) in the module


# ----------------------------------------------------------------------------
# small helpers
# ----------------------------------------------------------------------------
def _softmax_last(x):
    m = jnp.max(x, axis=-1, keepdims=True)
    e = jnp.exp(x - m)
    return e / jnp.sum(e, axis=-1, keepdims=True)


def _row_tile(n, max_tile):
    # Row tile: multiple of 8 (sublane) when possible, else the full extent.
    if n < 8:
        return n
    return min(max_tile, (n // 8) * 8)


# ----------------------------------------------------------------------------
# Pallas kernels
# ----------------------------------------------------------------------------
def _blk_trans_kernel(x_ref, w1_ref, b1_ref, w2_ref, b2_ref, g_ref, beta_ref, o_ref):
    # Linear(768, 2d) -> ReLU -> Linear(2d, d) -> LayerNorm(d)
    # x / W1 / W2 are bf16 (single-pass MXU); accumulation + LayerNorm in f32.
    x = x_ref[...]
    h = jnp.dot(x, w1_ref[...], preferred_element_type=jnp.float32) + b1_ref[...]
    h = jnp.maximum(h, 0.0)
    y = jnp.dot(h.astype(jnp.bfloat16), w2_ref[...],
                preferred_element_type=jnp.float32) + b2_ref[...]
    mu = jnp.mean(y, axis=-1, keepdims=True)
    var = jnp.mean((y - mu) ** 2, axis=-1, keepdims=True)
    yn = (y - mu) * jax.lax.rsqrt(var + 1e-5)
    o_ref[...] = yn * g_ref[...] + beta_ref[...]


def _mha_fused_kernel(q_ref, kv_ref, wq_ref, bq_ref, wk_ref, bk_ref,
                      wv_ref, bv_ref, wo_ref, bo_ref, o_ref, *, num_heads):
    # All heads in one grid step: one projection matmul per Q/K/V, static
    # per-head lane slices, then the output projection.
    q = q_ref[...]                       # (tr, d)
    kv = kv_ref[...]                     # (T, d) -- shared across batch
    d = q.shape[-1]
    hd = d // num_heads
    Q = jnp.dot(q, wq_ref[...], preferred_element_type=jnp.float32) + bq_ref[...]
    K = jnp.dot(kv, wk_ref[...], preferred_element_type=jnp.float32) + bk_ref[...]
    V = jnp.dot(kv, wv_ref[...], preferred_element_type=jnp.float32) + bv_ref[...]
    scale = 1.0 / math.sqrt(hd)
    ctx = []
    for h in range(num_heads):           # static unroll over heads
        Qh = Q[:, h * hd:(h + 1) * hd]
        Kh = K[:, h * hd:(h + 1) * hd]
        Vh = V[:, h * hd:(h + 1) * hd]
        s = jax.lax.dot_general(Qh, Kh, (((1,), (1,)), ((), ())),
                                preferred_element_type=jnp.float32) * scale
        a = _softmax_last(s)             # (tr, T)
        ctx.append(jnp.dot(a, Vh, preferred_element_type=jnp.float32))
    ctx = jnp.concatenate(ctx, axis=-1)  # (tr, d)
    o_ref[...] = (jnp.dot(ctx, wo_ref[...], preferred_element_type=jnp.float32)
                  + bo_ref[...])


def _att_score_kernel(tva_ref, vt_ref, m_ref, w1a_ref, w1b_ref, b1_ref, w2_ref, o_ref):
    # Fused: concat -> Linear(2d,d) (as split W1) -> tanh -> Linear(d,1)
    #        -> softmax(blocks) -> masked_fill(0); rows = bs*L, tiled.
    tva = tva_ref[...]                   # (tr, d)
    vt = vt_ref[...]                     # (tr, nb, d)
    R, nb, d = vt.shape
    h1 = jnp.dot(tva, w1a_ref[...], preferred_element_type=jnp.float32)
    h2 = jnp.dot(vt.reshape(R * nb, d), w1b_ref[...],
                 preferred_element_type=jnp.float32).reshape(R, nb, d)
    h = jnp.tanh(h1[:, None, :] + h2 + b1_ref[...])
    score = jnp.sum(h * w2_ref[...], axis=-1)                     # (tr, nb)
    sm = _softmax_last(score)
    o_ref[...] = jnp.where(m_ref[...] == 0, jnp.float32(0.0), sm)


def _mem_attn_kernel(q_ref, k_ref, m_ref, wq_ref, wk_ref, o_ref):
    # MemoryUpdate scoring: energy = (q Wq)(k Wk)^T / sqrt(d); softmax;
    # masked_fill(0) for real masked slots; -1 for padded slots so they never
    # out-rank real entries in the subsequent top_k.
    q = q_ref[...]                       # (bs, d)
    k = k_ref[...]                       # (bs, ML, d)
    m = m_ref[...]                       # (bs, ML): 1 valid, 0 masked, -1 pad
    bs, ml, d = k.shape
    qp = jnp.dot(q, wq_ref[...], preferred_element_type=jnp.float32)
    kp = jnp.dot(k.reshape(bs * ml, d), wk_ref[...],
                 preferred_element_type=jnp.float32).reshape(bs, ml, d)
    energy = jnp.sum(qp[:, None, :] * kp, axis=-1) * (1.0 / math.sqrt(d))
    attn = _softmax_last(energy)
    o_ref[...] = jnp.where(m > 0, attn,
                           jnp.where(m < 0, jnp.float32(-1.0), jnp.float32(0.0)))


def _hita_fused_kernel(visit_ref, mask_ref, w_ref, b_ref, vfin_ref, vall_ref):
    # linear(d,d) -> tanh -> masked max-pool, fused; batch-tiled grid.
    v = visit_ref[...]                   # (tb, L, d)
    tb, L, d = v.shape
    h = jnp.tanh(jnp.dot(v.reshape(tb * L, d), w_ref[...],
                         preferred_element_type=jnp.float32) + b_ref[...])
    h = h.reshape(tb, L, d)
    vall_ref[...] = h
    neg = jnp.finfo(jnp.float32).min
    vfin_ref[...] = jnp.max(jnp.where(mask_ref[...][:, :, None] > 0, h, neg), axis=1)


def _final_fused_kernel(tva_ref, mask_ref, vfh_ref, mem_ref, wa_ref, wb_ref, b_ref, o_ref):
    # masked max-pool(tva) + v_final_hita ; max-pool(mem_vec) ; output Linear(2d,2)
    tva = tva_ref[...]                   # (tb, L, d)
    neg = jnp.finfo(jnp.float32).min
    p1 = jnp.max(jnp.where(mask_ref[...][:, :, None] > 0, tva, neg), axis=1)
    vfin = p1 + vfh_ref[...]
    p2 = jnp.max(mem_ref[...], axis=1)                            # (tb, d)
    o_ref[...] = (jnp.dot(vfin, wa_ref[...], preferred_element_type=jnp.float32)
                  + jnp.dot(p2, wb_ref[...], preferred_element_type=jnp.float32)
                  + b_ref[...])


# ----------------------------------------------------------------------------
# wrappers (pallas_call plumbing)
# ----------------------------------------------------------------------------
def blk_trans(params, x):
    """x: (N, 768) -> (N, d_model). Row-tiled MLP + LayerNorm, bf16 MXU inputs."""
    n = x.shape[0]
    d = D_MODEL
    x = x.astype(jnp.bfloat16)
    args = (x, params["bt_w1"], params["bt_b1"], params["bt_w2"], params["bt_b2"],
            params["bt_g"], params["bt_beta"])
    out_shape = jax.ShapeDtypeStruct((n, d), jnp.float32)

    if n < 16:  # tiny inputs (e.g. target disease vectors): whole-array call
        return pl.pallas_call(_blk_trans_kernel, out_shape=out_shape)(*args)

    tn = min(1024, (n // 16) * 16)       # big tiles, multiple of 16 for bf16 sublanes
    grid = (pl.cdiv(n, tn),)             # partial trailing block, no HBM pad copy
    return pl.pallas_call(
        _blk_trans_kernel,
        out_shape=out_shape,
        grid=grid,
        in_specs=[
            pl.BlockSpec((tn, BLK_DIM), lambda i: (i, 0)),
            pl.BlockSpec((BLK_DIM, 2 * d), lambda i: (0, 0)),
            pl.BlockSpec((1, 2 * d), lambda i: (0, 0)),
            pl.BlockSpec((2 * d, d), lambda i: (0, 0)),
            pl.BlockSpec((1, d), lambda i: (0, 0)),
            pl.BlockSpec((1, d), lambda i: (0, 0)),
            pl.BlockSpec((1, d), lambda i: (0, 0)),
        ],
        out_specs=pl.BlockSpec((tn, d), lambda i: (i, 0)),
        compiler_params=pltpu.CompilerParams(dimension_semantics=("parallel",)),
    )(*args)


def target_disease_att(params, q, kv, num_heads):
    # TODO(synk): `Attention` source was not provided; standard MHA interface assumed.
    bs, lq, d = q.shape
    T = kv.shape[0]
    rows = bs * lq
    q_flat = q.reshape(rows, d)
    tr = _row_tile(rows, 256)
    kernel = functools.partial(_mha_fused_kernel, num_heads=num_heads)
    out = pl.pallas_call(
        kernel,
        out_shape=jax.ShapeDtypeStruct((rows, d), jnp.float32),
        grid=(pl.cdiv(rows, tr),),
        in_specs=[
            pl.BlockSpec((tr, d), lambda i: (i, 0)),
            pl.BlockSpec((T, d), lambda i: (0, 0)),
            pl.BlockSpec((d, d), lambda i: (0, 0)),
            pl.BlockSpec((1, d), lambda i: (0, 0)),
            pl.BlockSpec((d, d), lambda i: (0, 0)),
            pl.BlockSpec((1, d), lambda i: (0, 0)),
            pl.BlockSpec((d, d), lambda i: (0, 0)),
            pl.BlockSpec((1, d), lambda i: (0, 0)),
            pl.BlockSpec((d, d), lambda i: (0, 0)),
            pl.BlockSpec((1, d), lambda i: (0, 0)),
        ],
        out_specs=pl.BlockSpec((tr, d), lambda i: (i, 0)),
        compiler_params=pltpu.CompilerParams(dimension_semantics=("parallel",)),
    )(q_flat, kv, params["att_wq"], params["att_bq"], params["att_wk"],
      params["att_bk"], params["att_wv"], params["att_bv"],
      params["att_wo"], params["att_bo"])
    return out.reshape(bs, lq, d)


def att_score_fused(params, tva, v_text, masks_txt):
    bs, L, nb, d = v_text.shape
    rows = bs * L
    tva_flat = tva.reshape(rows, d)
    vt_flat = v_text.reshape(rows, nb, d)
    m_flat = masks_txt.reshape(rows, nb)
    tr = _row_tile(rows, 512)
    out = pl.pallas_call(
        _att_score_kernel,
        out_shape=jax.ShapeDtypeStruct((rows, nb), jnp.float32),
        grid=(pl.cdiv(rows, tr),),
        in_specs=[
            pl.BlockSpec((tr, d), lambda i: (i, 0)),
            pl.BlockSpec((tr, nb, d), lambda i: (i, 0, 0)),
            pl.BlockSpec((tr, nb), lambda i: (i, 0)),
            pl.BlockSpec((d, d), lambda i: (0, 0)),
            pl.BlockSpec((d, d), lambda i: (0, 0)),
            pl.BlockSpec((1, d), lambda i: (0, 0)),
            pl.BlockSpec((1, d), lambda i: (0, 0)),
        ],
        out_specs=pl.BlockSpec((tr, nb), lambda i: (i, 0)),
        compiler_params=pltpu.CompilerParams(dimension_semantics=("parallel",)),
    )(tva_flat, vt_flat, m_flat, params["am_w1a"], params["am_w1b"],
      params["am_b1"], params["am_w2"])
    return out.reshape(bs, L, nb)


def _mem_attention(params, query, mem_x, cmask):
    bs, ml = cmask.shape
    return pl.pallas_call(
        _mem_attn_kernel,
        out_shape=jax.ShapeDtypeStruct((bs, ml), jnp.float32),
    )(query, mem_x, cmask, params["mu_wq"], params["mu_wk"])


# ----------------------------------------------------------------------------
# sub-modules
# ----------------------------------------------------------------------------
def hita_encoder(params, input_seqs, masks_ehr, lengths, time_step):
    # TODO(synk): HitaNet source was not provided; deterministic time-aware masked
    # visit encoder stand-in with the same (v_final, v_all) interface.
    bs, L, _ = input_seqs.shape
    d = D_MODEL
    # Code gather + masked sum over codes stay in XLA (it fuses them so only the
    # (bs, L, d) visit tensor hits HBM); passing the (bs, L, C, d) gather output
    # to Pallas would force it to materialize.
    emb = params["code_emb"][input_seqs]                          # (bs, L, C, d)
    visit = jnp.sum(emb * masks_ehr[..., None].astype(jnp.float32), axis=2)
    visit = visit + jnp.tanh(time_step / 180.0)[..., None] * params["time_vec"]
    len_mask = (jnp.arange(L)[None, :] < lengths[:, None]).astype(jnp.float32)
    tb = min(bs, 8)
    v_final, v_all = pl.pallas_call(
        _hita_fused_kernel,
        out_shape=(jax.ShapeDtypeStruct((bs, d), jnp.float32),
                   jax.ShapeDtypeStruct((bs, L, d), jnp.float32)),
        grid=(pl.cdiv(bs, tb),),
        in_specs=[
            pl.BlockSpec((tb, L, d), lambda i: (i, 0, 0)),
            pl.BlockSpec((tb, L), lambda i: (i, 0)),
            pl.BlockSpec((d, d), lambda i: (0, 0)),
            pl.BlockSpec((1, d), lambda i: (0, 0)),
        ],
        out_specs=(pl.BlockSpec((tb, d), lambda i: (i, 0)),
                   pl.BlockSpec((tb, L, d), lambda i: (i, 0, 0))),
        compiler_params=pltpu.CompilerParams(dimension_semantics=("parallel",)),
    )(visit, len_mask, params["hita_w"], params["hita_b"])
    return v_final, v_all


def memory_scan(params, blk_table, selected_ids, selected_masks, q_all,
                mem_size, mem_update_size):
    """The per-visit memory loop as a single fixed-shape lax.scan.

    Padded slots carry a -1 sentinel so top_k ordering over real slots matches
    the variable-length reference loop exactly (attention values themselves are
    never used downstream, only the selected ids/masks).
    """
    bs, L, mus = selected_ids.shape
    ms = mem_size
    if 2 * mus <= ms:
        # The reference loop would produce inconsistently sized memory entries
        # (torch.stack would fail); this config is unsupported there too.
        raise ValueError("memory_scan requires 2*mem_update_size > mem_size")

    # --- visit 0 (memory[0] is discarded downstream; only its ids/mask feed
    #     visit 1, exactly as in the reference) ------------------------------
    ids0 = selected_ids[:, 0]
    mask0 = selected_masks[:, 0]
    if mus > ms:
        attn0 = _mem_attention(params, q_all[:, 0], blk_table[ids0], mask0)
        _, idx0 = jax.lax.top_k(attn0, ms)
        prev_ids = jnp.take_along_axis(ids0, idx0, axis=1)
        prev_mask = jnp.take_along_axis(mask0, idx0, axis=1)
        prev_valid = jnp.ones((ms,), jnp.bool_)
    else:
        pad = ms - mus
        prev_ids = jnp.pad(ids0, ((0, 0), (0, pad)))
        prev_mask = jnp.pad(mask0, ((0, 0), (0, pad)))
        prev_valid = jnp.arange(ms) < mus

    def step(carry, xs):
        p_ids, p_mask, p_valid = carry
        s_ids, s_mask, q = xs
        mem_ids = jnp.concatenate([p_ids, s_ids], axis=1)         # (bs, ms+mus)
        mem_mask = jnp.concatenate([p_mask, s_mask], axis=1)
        pos_valid = jnp.concatenate([p_valid, jnp.ones((mus,), jnp.bool_)])
        cmask = jnp.where(pos_valid[None, :], mem_mask, jnp.int32(-1))
        mem_x = blk_table[mem_ids]                                # (bs, ML, d)
        attn = _mem_attention(params, q, mem_x, cmask)
        _, idx = jax.lax.top_k(attn, ms)
        out_ids = jnp.take_along_axis(mem_ids, idx, axis=1)
        out_mask = jnp.take_along_axis(mem_mask, idx, axis=1)
        return (out_ids, out_mask, jnp.ones((ms,), jnp.bool_)), out_ids

    xs = (jnp.moveaxis(selected_ids[:, 1:], 1, 0),
          jnp.moveaxis(selected_masks[:, 1:], 1, 0),
          jnp.moveaxis(q_all[:, 1:], 1, 0))
    _, ys = jax.lax.scan(step, (prev_ids, prev_mask, prev_valid), xs)
    return jnp.moveaxis(ys, 0, 1)                                 # (bs, L-1, ms)


# ----------------------------------------------------------------------------
# full forward
# ----------------------------------------------------------------------------
def _forward(params, input_seqs, masks_ehr, input_txt, masks_txt, lengths,
             time_step, code_mask, num_heads, mem_size, mem_update_size):
    del code_mask  # unused by the reference forward pass
    bs, L, _ = input_seqs.shape
    d = D_MODEL

    # blk_trans over the (frozen) block vocabulary exactly once; all later
    # blk_emb->blk_trans uses become gathers of d=32 rows from this table.
    blk_table = blk_trans(params, params["blk_emb"])              # (V, d)

    v_final_h, v_all = hita_encoder(params, input_seqs, masks_ehr, lengths, time_step)

    tdv = blk_trans(params, params["target_disease_vectors"])     # (T, d)
    transformed_v_all = target_disease_att(params, v_all, tdv, num_heads)

    v_text_all = blk_table[input_txt]                             # (bs, L, nb, d)
    att_score = att_score_fused(params, transformed_v_all, v_text_all, masks_txt)

    _, indices = jax.lax.top_k(att_score, mem_update_size)        # (bs, L, mus)
    selected_txt_ids = jnp.take_along_axis(input_txt, indices, axis=2)
    selected_masks = jnp.take_along_axis(masks_txt, indices, axis=2)

    q_all = transformed_v_all + v_all                             # (bs, L, d)
    mem_stack = memory_scan(params, blk_table, selected_txt_ids, selected_masks,
                            q_all, mem_size, mem_update_size)     # (bs, L-1, ms)

    idx = jnp.broadcast_to((lengths - 2)[:, None, None], (bs, 1, mem_size))
    memory_final = jnp.take_along_axis(mem_stack, idx, axis=1).reshape(bs, mem_size)

    len_mask = (jnp.arange(L)[None, :] < lengths[:, None]).astype(jnp.float32)
    mem_vec = blk_table[memory_final]                             # (bs, ms, d)

    tb = min(bs, 8)
    output = pl.pallas_call(
        _final_fused_kernel,
        out_shape=jax.ShapeDtypeStruct((bs, 2), jnp.float32),
        grid=(pl.cdiv(bs, tb),),
        in_specs=[
            pl.BlockSpec((tb, L, d), lambda i: (i, 0, 0)),
            pl.BlockSpec((tb, L), lambda i: (i, 0)),
            pl.BlockSpec((tb, d), lambda i: (i, 0)),
            pl.BlockSpec((tb, mem_size, d), lambda i: (i, 0, 0)),
            pl.BlockSpec((d, 2), lambda i: (0, 0)),
            pl.BlockSpec((d, 2), lambda i: (0, 0)),
            pl.BlockSpec((1, 2), lambda i: (0, 0)),
        ],
        out_specs=pl.BlockSpec((tb, 2), lambda i: (i, 0)),
        compiler_params=pltpu.CompilerParams(dimension_semantics=("parallel",)),
    )(transformed_v_all, len_mask, v_final_h, mem_vec,
      params["out_wa"], params["out_wb"], params["out_b"])
    return output, memory_final


text_decoder_hita_forward = functools.partial(
    jax.jit, static_argnames=("num_heads", "mem_size", "mem_update_size"))(_forward)


# ----------------------------------------------------------------------------
# deterministic parameter init (synthetic — no checkpoint loading)
# ----------------------------------------------------------------------------
def init_params(key, vocab_size, blk_vocab, num_target, num_heads):
    d = D_MODEL
    ks = list(jax.random.split(key, 40))

    def nrm(k, shape, s=0.05):
        return jax.random.normal(k, shape, jnp.float32) * s

    p = {}
    # frozen block embedding / target vectors in bf16 (MXU-native, halves HBM)
    p["blk_emb"] = nrm(ks[0], (blk_vocab, BLK_DIM)).astype(jnp.bfloat16)
    p["target_disease_vectors"] = nrm(ks[1], (num_target, BLK_DIM)).astype(jnp.bfloat16)
    # blk_trans (W1, W2 bf16 so both GEMMs are single-pass on the MXU)
    p["bt_w1"] = nrm(ks[2], (BLK_DIM, 2 * d)).astype(jnp.bfloat16)
    p["bt_b1"] = nrm(ks[3], (1, 2 * d))
    p["bt_w2"] = nrm(ks[4], (2 * d, d)).astype(jnp.bfloat16)
    p["bt_b2"] = nrm(ks[5], (1, d))
    p["bt_g"] = jnp.ones((1, d), jnp.float32)
    p["bt_beta"] = jnp.zeros((1, d), jnp.float32)
    # target_disease_att (MHA) — heads stacked along the output dim (d, H*hd)=(d,d)
    p["att_wq"] = nrm(ks[6], (d, d));  p["att_bq"] = nrm(ks[7], (1, d))
    p["att_wk"] = nrm(ks[8], (d, d));  p["att_bk"] = nrm(ks[9], (1, d))
    p["att_wv"] = nrm(ks[10], (d, d)); p["att_bv"] = nrm(ks[11], (1, d))
    p["att_wo"] = nrm(ks[12], (d, d)); p["att_bo"] = nrm(ks[13], (1, d))
    # att_mlp: Linear(2d,d) stored as the two halves of W1 (no concat needed)
    p["am_w1a"] = nrm(ks[14], (d, d)); p["am_w1b"] = nrm(ks[15], (d, d))
    p["am_b1"] = nrm(ks[16], (1, d))
    p["am_w2"] = nrm(ks[17], (1, d))           # Linear(d, 1, bias=False) as a row
    # MemoryUpdate (bias-free projections)
    p["mu_wq"] = nrm(ks[18], (d, d)); p["mu_wk"] = nrm(ks[19], (d, d))
    # output mlp, split at the concat boundary
    p["out_wa"] = nrm(ks[20], (d, 2)); p["out_wb"] = nrm(ks[21], (d, 2))
    p["out_b"] = nrm(ks[22], (1, 2))
    # HitaNet stand-in
    p["code_emb"] = nrm(ks[23], (vocab_size, d))
    p["time_vec"] = nrm(ks[24], (d,))
    p["hita_w"] = nrm(ks[25], (d, d)); p["hita_b"] = nrm(ks[26], (1, d))
    return p


if __name__ == "__main__":
    key = jax.random.PRNGKey(0)
    kp, k1, k2, k3, k4, k5 = jax.random.split(key, 6)

    bs, L, C, NB = 2, 4, 5, 6               # batch, visits, codes/visit, blocks/visit
    vocab_size, blk_vocab, num_target = 50, 40, 3
    num_heads, mem_size, mem_update_size = 2, 4, 3

    params = init_params(kp, vocab_size, blk_vocab, num_target, num_heads)

    input_seqs = jax.random.randint(k1, (bs, L, C), 0, vocab_size, jnp.int32)
    masks_ehr = jax.random.bernoulli(k2, 0.8, (bs, L, C)).astype(jnp.int32)
    input_txt = jax.random.randint(k3, (bs, L, NB), 0, blk_vocab, jnp.int32)
    masks_txt = jax.random.bernoulli(k4, 0.85, (bs, L, NB)).astype(jnp.int32)
    lengths = jnp.array([4, 3], jnp.int32)
    time_step = jax.random.uniform(k5, (bs, L), jnp.float32, 0.0, 365.0)
    code_mask = jnp.ones((bs, L, C), jnp.int32)   # unused by forward

    output, memory_final = text_decoder_hita_forward(
        params, input_seqs, masks_ehr, input_txt, masks_txt, lengths, time_step,
        code_mask, num_heads=num_heads, mem_size=mem_size,
        mem_update_size=mem_update_size)
    jax.block_until_ready((output, memory_final))

    assert output.shape == (bs, 2) and output.dtype == jnp.float32
    assert memory_final.shape == (bs, mem_size)
    print("KERNEL_OK")
</pallas_src>

<mosaic_0001>
module attributes {stable_mosaic.version = 11 : i64} {
  func.func @_blk_trans_kernel(%arg0: memref<3x768xbf16, #tpu.memory_space<vmem>>, %arg1: memref<768x64xbf16, #tpu.memory_space<vmem>>, %arg2: memref<1x64xf32, #tpu.memory_space<vmem>>, %arg3: memref<64x32xbf16, #tpu.memory_space<vmem>>, %arg4: memref<1x32xf32, #tpu.memory_space<vmem>>, %arg5: memref<1x32xf32, #tpu.memory_space<vmem>>, %arg6: memref<1x32xf32, #tpu.memory_space<vmem>>, %arg7: memref<3x32xf32, #tpu.memory_space<vmem>>) attributes {dimension_semantics = [], scalar_prefetch = 0 : i64, scratch_operands = 0 : i64, tpu.core_type = #tpu.core_type<tc>} {
    %c0 = arith.constant 0 : index
    %c0_0 = arith.constant 0 : index
    %0 = vector.load %arg0[%c0, %c0_0] : memref<3x768xbf16, #tpu.memory_space<vmem>>, vector<3x768xbf16>
    %c0_1 = arith.constant 0 : index
    %c0_2 = arith.constant 0 : index
    %1 = vector.load %arg1[%c0_1, %c0_2] : memref<768x64xbf16, #tpu.memory_space<vmem>>, vector<768x64xbf16>
    %cst = arith.constant dense<0.000000e+00> : vector<3x64xf32>
    %2 = tpu.matmul %0, %1, %cst {dimension_numbers = #tpu.dot_dimension_numbers<[1], [0], [0], [1], [0, 0, 1, 1], [], []>} : vector<3x768xbf16>, vector<768x64xbf16>, vector<3x64xf32> -> vector<3x64xf32>
    %c0_3 = arith.constant 0 : index
    %c0_4 = arith.constant 0 : index
    %3 = vector.load %arg2[%c0_3, %c0_4] : memref<1x64xf32, #tpu.memory_space<vmem>>, vector<1x64xf32>
    %4 = vector.broadcast %3 : vector<1x64xf32> to vector<3x64xf32>
    %5 = arith.addf %2, %4 : vector<3x64xf32>
    %cst_5 = arith.constant 0.000000e+00 : f32
    %6 = vector.broadcast %cst_5 : f32 to vector<3x64xf32>
    %7 = arith.maximumf %5, %6 : vector<3x64xf32>
    %8 = arith.truncf %7 : vector<3x64xf32> to vector<3x64xbf16>
    %c0_6 = arith.constant 0 : index
    %c0_7 = arith.constant 0 : index
    %9 = vector.load %arg3[%c0_6, %c0_7] : memref<64x32xbf16, #tpu.memory_space<vmem>>, vector<64x32xbf16>
    %cst_8 = arith.constant dense<0.000000e+00> : vector<3x32xf32>
    %10 = tpu.matmul %8, %9, %cst_8 {dimension_numbers = #tpu.dot_dimension_numbers<[1], [0], [0], [1], [0, 0, 1, 1], [], []>} : vector<3x64xbf16>, vector<64x32xbf16>, vector<3x32xf32> -> vector<3x32xf32>
    %c0_9 = arith.constant 0 : index
    %c0_10 = arith.constant 0 : index
    %11 = vector.load %arg4[%c0_9, %c0_10] : memref<1x32xf32, #tpu.memory_space<vmem>>, vector<1x32xf32>
    %12 = vector.broadcast %11 : vector<1x32xf32> to vector<3x32xf32>
    %13 = arith.addf %10, %12 : vector<3x32xf32>
    %cst_11 = arith.constant dense<0.000000e+00> : vector<3xf32>
    %14 = vector.multi_reduction <add>, %13, %cst_11 [1] : vector<3x32xf32> to vector<3xf32>
    %15 = vector.shape_cast %14 : vector<3xf32> to vector<3x1xf32>
    %cst_12 = arith.constant 3.200000e+01 : f32
    %16 = vector.broadcast %cst_12 : f32 to vector<3x1xf32>
    %17 = arith.divf %15, %16 : vector<3x1xf32>
    %18 = vector.broadcast %17 : vector<3x1xf32> to vector<3x32xf32>
    %19 = arith.subf %13, %18 : vector<3x32xf32>
    %20 = arith.mulf %19, %19 : vector<3x32xf32>
    %cst_13 = arith.constant dense<0.000000e+00> : vector<3xf32>
    %21 = vector.multi_reduction <add>, %20, %cst_13 [1] : vector<3x32xf32> to vector<3xf32>
    %22 = vector.shape_cast %21 : vector<3xf32> to vector<3x1xf32>
    %cst_14 = arith.constant 3.200000e+01 : f32
    %23 = vector.broadcast %cst_14 : f32 to vector<3x1xf32>
    %24 = arith.divf %22, %23 : vector<3x1xf32>
    %25 = vector.broadcast %17 : vector<3x1xf32> to vector<3x32xf32>
    %26 = arith.subf %13, %25 : vector<3x32xf32>
    %cst_15 = arith.constant 9.99999974E-6 : f32
    %27 = vector.broadcast %cst_15 : f32 to vector<3x1xf32>
    %28 = arith.addf %24, %27 : vector<3x1xf32>
    %29 = math.rsqrt %28 : vector<3x1xf32>
    %30 = vector.broadcast %29 : vector<3x1xf32> to vector<3x32xf32>
    %31 = arith.mulf %26, %30 : vector<3x32xf32>
    %c0_16 = arith.constant 0 : index
    %c0_17 = arith.constant 0 : index
    %32 = vector.load %arg5[%c0_16, %c0_17] : memref<1x32xf32, #tpu.memory_space<vmem>>, vector<1x32xf32>
    %33 = vector.broadcast %32 : vector<1x32xf32> to vector<3x32xf32>
    %34 = arith.mulf %31, %33 : vector<3x32xf32>
    %c0_18 = arith.constant 0 : index
    %c0_19 = arith.constant 0 : index
    %35 = vector.load %arg6[%c0_18, %c0_19] : memref<1x32xf32, #tpu.memory_space<vmem>>, vector<1x32xf32>
    %36 = vector.broadcast %35 : vector<1x32xf32> to vector<3x32xf32>
    %37 = arith.addf %34, %36 : vector<3x32xf32>
    %c0_20 = arith.constant 0 : index
    %c0_21 = arith.constant 0 : index
    %38 = vector.load %arg7[%c0_20, %c0_21] : memref<3x32xf32, #tpu.memory_space<vmem>>, vector<3x32xf32>
    tpu.vector_store %arg7[%c0_20, %c0_21], %37 {strides = array<i32>} : memref<3x32xf32, #tpu.memory_space<vmem>>, vector<3x32xf32>,
    return
  }
}

module attributes {stable_mosaic.version = 11 : i64} {
  func.func @_hita_fused_kernel(%arg0: i32, %arg1: memref<2x4x32xf32, #tpu.memory_space<vmem>>, %arg2: memref<2x4xf32, #tpu.memory_space<vmem>>, %arg3: memref<32x32xf32, #tpu.memory_space<vmem>>, %arg4: memref<1x32xf32, #tpu.memory_space<vmem>>, %arg5: memref<2x32xf32, #tpu.memory_space<vmem>>, %arg6: memref<2x4x32xf32, #tpu.memory_space<vmem>>) attributes {dimension_semantics = [#tpu.dimension_semantics<parallel>], iteration_bounds = array<i64: 1>, scalar_prefetch = 0 : i64, scratch_operands = 0 : i64, tpu.core_type = #tpu.core_type<tc>, window_params = [{transform_indices = @transform_0, window_bounds = array<i64: 2, 4, 32>}, {transform_indices = @transform_1, window_bounds = array<i64: 2, 4>}, {pipeline_mode = #tpu.pipeline_mode<synchronous>, transform_indices = @transform_2, window_bounds = array<i64: 32, 32>}, {pipeline_mode = #tpu.pipeline_mode<synchronous>, transform_indices = @transform_3, window_bounds = array<i64: 1, 32>}, {transform_indices = @transform_4, window_bounds = array<i64: 2, 32>}, {transform_indices = @transform_5, window_bounds = array<i64: 2, 4, 32>}]} {
    %c0 = arith.constant 0 : index
    %c0_0 = arith.constant 0 : index
    %c0_1 = arith.constant 0 : index
    %0 = vector.load %arg1[%c0, %c0_0, %c0_1] : memref<2x4x32xf32, #tpu.memory_space<vmem>>, vector<2x4x32xf32>
    %1 = vector.shape_cast %0 : vector<2x4x32xf32> to vector<8x32xf32>
    %c0_2 = arith.constant 0 : index
    %c0_3 = arith.constant 0 : index
    %2 = vector.load %arg3[%c0_2, %c0_3] : memref<32x32xf32, #tpu.memory_space<vmem>>, vector<32x32xf32>
    %cst = arith.constant dense<0.000000e+00> : vector<8x32xf32>
    %3 = tpu.matmul %1, %2, %cst {dimension_numbers = #tpu.dot_dimension_numbers<[1], [0], [0], [1], [0, 0, 1, 1], [], []>} : vector<8x32xf32>, vector<32x32xf32>, vector<8x32xf32> -> vector<8x32xf32>
    %c0_4 = arith.constant 0 : index
    %c0_5 = arith.constant 0 : index
    %4 = vector.load %arg4[%c0_4, %c0_5] : memref<1x32xf32, #tpu.memory_space<vmem>>, vector<1x32xf32>
    %5 = vector.broadcast %4 : vector<1x32xf32> to vector<8x32xf32>
    %6 = arith.addf %3, %5 : vector<8x32xf32>
    %7 = math.tanh %6 : vector<8x32xf32>
    %8 = vector.shape_cast %7 : vector<8x32xf32> to vector<2x4x32xf32>
    %c0_6 = arith.constant 0 : index
    %c0_7 = arith.constant 0 : index
    %c0_8 = arith.constant 0 : index
    %9 = vector.load %arg6[%c0_6, %c0_7, %c0_8] : memref<2x4x32xf32, #tpu.memory_space<vmem>>, vector<2x4x32xf32>
    tpu.vector_store %arg6[%c0_6, %c0_7, %c0_8], %8 {strides = array<i32>} : memref<2x4x32xf32, #tpu.memory_space<vmem>>, vector<2x4x32xf32>,
    %c0_9 = arith.constant 0 : index
    %c0_10 = arith.constant 0 : index
    %10 = vector.load %arg2[%c0_9, %c0_10] : memref<2x4xf32, #tpu.memory_space<vmem>>, vector<2x4xf32>
    %11 = vector.shape_cast %10 : vector<2x4xf32> to vector<2x4x1xf32>
    %cst_11 = arith.constant 0.000000e+00 : f32
    %12 = vector.broadcast %cst_11 : f32 to vector<2x4x1xf32>
    %13 = arith.cmpf ogt, %11, %12 : vector<2x4x1xf32>
    %cst_12 = arith.constant -3.40282347E+38 : f32
    %14 = vector.shape_cast %13 : vector<2x4x1xi1> to vector<2x4x1xi1>
    %15 = vector.broadcast %14 : vector<2x4x1xi1> to vector<2x4x32xi1>
    %16 = vector.broadcast %cst_12 : f32 to vector<2x4x32xf32>
    %17 = arith.select %15, %8, %16 : vector<2x4x32xi1>, vector<2x4x32xf32>
    %cst_13 = arith.constant dense<0xFF800000> : vector<2x32xf32>
    %18 = vector.multi_reduction <maximumf>, %17, %cst_13 [1] : vector<2x4x32xf32> to vector<2x32xf32>
    %c0_14 = arith.constant 0 : index
    %c0_15 = arith.constant 0 : index
    %19 = vector.load %arg5[%c0_14, %c0_15] : memref<2x32xf32, #tpu.memory_space<vmem>>, vector<2x32xf32>
    tpu.vector_store %arg5[%c0_14, %c0_15], %18 {strides = array<i32>} : memref<2x32xf32, #tpu.memory_space<vmem>>, vector<2x32xf32>,
    return
  }
  func.func @transform_0(%arg0: i32) -> (i32, i32, i32) {
    %c0_i32 = arith.constant 0 : i32
    %c0_i32_0 = arith.constant 0 : i32
    %c0_i32_1 = arith.constant 0 : i32
    return %arg0, %c0_i32, %c0_i32_0 : i32, i32, i32
  }
  func.func @transform_1(%arg0: i32) -> (i32, i32) {
    %c0_i32 = arith.constant 0 : i32
    %c0_i32_0 = arith.constant 0 : i32
    return %arg0, %c0_i32 : i32, i32
  }
  func.func @transform_2(%arg0: i32) -> (i32, i32) {
    %c0_i32 = arith.constant 0 : i32
    %c0_i32_0 = arith.constant 0 : i32
    %c0_i32_1 = arith.constant 0 : i32
    return %c0_i32, %c0_i32_0 : i32, i32
  }
  func.func @transform_3(%arg0: i32) -> (i32, i32) {
    %c0_i32 = arith.constant 0 : i32
    %c0_i32_0 = arith.constant 0 : i32
    %c0_i32_1 = arith.constant 0 : i32
    return %c0_i32, %c0_i32_0 : i32, i32
  }
  func.func @transform_4(%arg0: i32) -> (i32, i32) {
    %c0_i32 = arith.constant 0 : i32
    %c0_i32_0 = arith.constant 0 : i32
    return %arg0, %c0_i32 : i32, i32
  }
  func.func @transform_5(%arg0: i32) -> (i32, i32, i32) {
    %c0_i32 = arith.constant 0 : i32
    %c0_i32_0 = arith.constant 0 : i32
    %c0_i32_1 = arith.constant 0 : i32
    return %arg0, %c0_i32, %c0_i32_0 : i32, i32, i32
  }
}

module attributes {stable_mosaic.version = 11 : i64} {
  func.func @_mha_fused_kernel(%arg0: i32, %arg1: memref<8x32xf32, #tpu.memory_space<vmem>>, %arg2: memref<3x32xf32, #tpu.memory_space<vmem>>, %arg3: memref<32x32xf32, #tpu.memory_space<vmem>>, %arg4: memref<1x32xf32, #tpu.memory_space<vmem>>, %arg5: memref<32x32xf32, #tpu.memory_space<vmem>>, %arg6: memref<1x32xf32, #tpu.memory_space<vmem>>, %arg7: memref<32x32xf32, #tpu.memory_space<vmem>>, %arg8: memref<1x32xf32, #tpu.memory_space<vmem>>, %arg9: memref<32x32xf32, #tpu.memory_space<vmem>>, %arg10: memref<1x32xf32, #tpu.memory_space<vmem>>, %arg11: memref<8x32xf32, #tpu.memory_space<vmem>>) attributes {dimension_semantics = [#tpu.dimension_semantics<parallel>], iteration_bounds = array<i64: 1>, scalar_prefetch = 0 : i64, scratch_operands = 0 : i64, tpu.core_type = #tpu.core_type<tc>, window_params = [{transform_indices = @transform_0, window_bounds = array<i64: 8, 32>}, {pipeline_mode = #tpu.pipeline_mode<synchronous>, transform_indices = @transform_1, window_bounds = array<i64: 3, 32>}, {pipeline_mode = #tpu.pipeline_mode<synchronous>, transform_indices = @transform_2, window_bounds = array<i64: 32, 32>}, {pipeline_mode = #tpu.pipeline_mode<synchronous>, transform_indices = @transform_3, window_bounds = array<i64: 1, 32>}, {pipeline_mode = #tpu.pipeline_mode<synchronous>, transform_indices = @transform_4, window_bounds = array<i64: 32, 32>}, {pipeline_mode = #tpu.pipeline_mode<synchronous>, transform_indices = @transform_5, window_bounds = array<i64: 1, 32>}, {pipeline_mode = #tpu.pipeline_mode<synchronous>, transform_indices = @transform_6, window_bounds = array<i64: 32, 32>}, {pipeline_mode = #tpu.pipeline_mode<synchronous>, transform_indices = @transform_7, window_bounds = array<i64: 1, 32>}, {pipeline_mode = #tpu.pipeline_mode<synchronous>, transform_indices = @transform_8, window_bounds = array<i64: 32, 32>}, {pipeline_mode = #tpu.pipeline_mode<synchronous>, transform_indices = @transform_9, window_bounds = array<i64: 1, 32>}, {transform_indices = @transform_10, window_bounds = array<i64: 8, 32>}]} {
    %c0 = arith.constant 0 : index
    %c0_0 = arith.constant 0 : index
    %0 = vector.load %arg1[%c0, %c0_0] : memref<8x32xf32, #tpu.memory_space<vmem>>, vector<8x32xf32>
    %c0_1 = arith.constant 0 : index
    %c0_2 = arith.constant 0 : index
    %1 = vector.load %arg2[%c0_1, %c0_2] : memref<3x32xf32, #tpu.memory_space<vmem>>, vector<3x32xf32>
    %c0_3 = arith.constant 0 : index
    %c0_4 = arith.constant 0 : index
    %2 = vector.load %arg3[%c0_3, %c0_4] : memref<32x32xf32, #tpu.memory_space<vmem>>, vector<32x32xf32>
    %cst = arith.constant dense<0.000000e+00> : vector<8x32xf32>
    %3 = tpu.matmul %0, %2, %cst {dimension_numbers = #tpu.dot_dimension_numbers<[1], [0], [0], [1], [0, 0, 1, 1], [], []>} : vector<8x32xf32>, vector<32x32xf32>, vector<8x32xf32> -> vector<8x32xf32>
    %c0_5 = arith.constant 0 : index
    %c0_6 = arith.constant 0 : index
    %4 = vector.load %arg4[%c0_5, %c0_6] : memref<1x32xf32, #tpu.memory_space<vmem>>, vector<1x32xf32>
    %5 = vector.broadcast %4 : vector<1x32xf32> to vector<8x32xf32>
    %6 = arith.addf %3, %5 : vector<8x32xf32>
    %c0_7 = arith.constant 0 : index
    %c0_8 = arith.constant 0 : index
    %7 = vector.load %arg5[%c0_7, %c0_8] : memref<32x32xf32, #tpu.memory_space<vmem>>, vector<32x32xf32>
    %cst_9 = arith.constant dense<0.000000e+00> : vector<3x32xf32>
    %8 = tpu.matmul %1, %7, %cst_9 {dimension_numbers = #tpu.dot_dimension_numbers<[1], [0], [0], [1], [0, 0, 1, 1], [], []>} : vector<3x32xf32>, vector<32x32xf32>, vector<3x32xf32> -> vector<3x32xf32>
    %c0_10 = arith.constant 0 : index
    %c0_11 = arith.constant 0 : index
    %9 = vector.load %arg6[%c0_10, %c0_11] : memref<1x32xf32, #tpu.memory_space<vmem>>, vector<1x32xf32>
    %10 = vector.broadcast %9 : vector<1x32xf32> to vector<3x32xf32>
    %11 = arith.addf %8, %10 : vector<3x32xf32>
    %c0_12 = arith.constant 0 : index
    %c0_13 = arith.constant 0 : index
    %12 = vector.load %arg7[%c0_12, %c0_13] : memref<32x32xf32, #tpu.memory_space<vmem>>, vector<32x32xf32>
    %cst_14 = arith.constant dense<0.000000e+00> : vector<3x32xf32>
    %13 = tpu.matmul %1, %12, %cst_14 {dimension_numbers = #tpu.dot_dimension_numbers<[1], [0], [0], [1], [0, 0, 1, 1], [], []>} : vector<3x32xf32>, vector<32x32xf32>, vector<3x32xf32> -> vector<3x32xf32>
    %c0_15 = arith.constant 0 : index
    %c0_16 = arith.constant 0 : index
    %14 = vector.load %arg8[%c0_15, %c0_16] : memref<1x32xf32, #tpu.memory_space<vmem>>, vector<1x32xf32>
    %15 = vector.broadcast %14 : vector<1x32xf32> to vector<3x32xf32>
    %16 = arith.addf %13, %15 : vector<3x32xf32>
    %17 = vector.extract_strided_slice %6 {offsets = [0, 0], sizes = [8, 16], strides = [1, 1]} : vector<8x32xf32> to vector<8x16xf32>
    %18 = vector.extract_strided_slice %11 {offsets = [0, 0], sizes = [3, 16], strides = [1, 1]} : vector<3x32xf32> to vector<3x16xf32>
    %19 = vector.extract_strided_slice %16 {offsets = [0, 0], sizes = [3, 16], strides = [1, 1]} : vector<3x32xf32> to vector<3x16xf32>
    %cst_17 = arith.constant dense<0.000000e+00> : vector<8x3xf32>
    %20 = tpu.matmul %17, %18, %cst_17 {dimension_numbers = #tpu.dot_dimension_numbers<[1], [1], [0], [0], [0, 0, 1, 0], [], []>} : vector<8x16xf32>, vector<3x16xf32>, vector<8x3xf32> -> vector<8x3xf32>
    %cst_18 = arith.constant 2.500000e-01 : f32
    %21 = vector.broadcast %cst_18 : f32 to vector<8x3xf32>
    %22 = arith.mulf %20, %21 : vector<8x3xf32>
    %cst_19 = arith.constant dense<0xFF800000> : vector<8xf32>
    %23 = vector.multi_reduction <maximumf>, %22, %cst_19 [1] : vector<8x3xf32> to vector<8xf32>
    %24 = vector.shape_cast %23 : vector<8xf32> to vector<8x1xf32>
    %25 = vector.broadcast %24 : vector<8x1xf32> to vector<8x3xf32>
    %26 = arith.subf %22, %25 : vector<8x3xf32>
    %27 = math.exp %26 : vector<8x3xf32>
    %cst_20 = arith.constant dense<0.000000e+00> : vector<8xf32>
    %28 = vector.multi_reduction <add>, %27, %cst_20 [1] : vector<8x3xf32> to vector<8xf32>
    %29 = vector.shape_cast %28 : vector<8xf32> to vector<8x1xf32>
    %30 = vector.broadcast %29 : vector<8x1xf32> to vector<8x3xf32>
    %31 = arith.divf %27, %30 : vector<8x3xf32>
    %cst_21 = arith.constant dense<0.000000e+00> : vector<8x16xf32>
    %32 = tpu.matmul %31, %19, %cst_21 {dimension_numbers = #tpu.dot_dimension_numbers<[1], [0], [0], [1], [0, 0, 1, 1], [], []>} : vector<8x3xf32>, vector<3x16xf32>, vector<8x16xf32> -> vector<8x16xf32>
    %33 = vector.extract_strided_slice %6 {offsets = [0, 16], sizes = [8, 16], strides = [1, 1]} : vector<8x32xf32> to vector<8x16xf32>
    %34 = vector.extract_strided_slice %11 {offsets = [0, 16], sizes = [3, 16], strides = [1, 1]} : vector<3x32xf32> to vector<3x16xf32>
    %35 = vector.extract_strided_slice %16 {offsets = [0, 16], sizes = [3, 16], strides = [1, 1]} : vector<3x32xf32> to vector<3x16xf32>
    %cst_22 = arith.constant dense<0.000000e+00> : vector<8x3xf32>
    %36 = tpu.matmul %33, %34, %cst_22 {dimension_numbers = #tpu.dot_dimension_numbers<[1], [1], [0], [0], [0, 0, 1, 0], [], []>} : vector<8x16xf32>, vector<3x16xf32>, vector<8x3xf32> -> vector<8x3xf32>
    %cst_23 = arith.constant 2.500000e-01 : f32
    %37 = vector.broadcast %cst_23 : f32 to vector<8x3xf32>
    %38 = arith.mulf %36, %37 : vector<8x3xf32>
    %cst_24 = arith.constant dense<0xFF800000> : vector<8xf32>
    %39 = vector.multi_reduction <maximumf>, %38, %cst_24 [1] : vector<8x3xf32> to vector<8xf32>
    %40 = vector.shape_cast %39 : vector<8xf32> to vector<8x1xf32>
    %41 = vector.broadcast %40 : vector<8x1xf32> to vector<8x3xf32>
    %42 = arith.subf %38, %41 : vector<8x3xf32>
    %43 = math.exp %42 : vector<8x3xf32>
    %cst_25 = arith.constant dense<0.000000e+00> : vector<8xf32>
    %44 = vector.multi_reduction <add>, %43, %cst_25 [1] : vector<8x3xf32> to vector<8xf32>
    %45 = vector.shape_cast %44 : vector<8xf32> to vector<8x1xf32>
    %46 = vector.broadcast %45 : vector<8x1xf32> to vector<8x3xf32>
    %47 = arith.divf %43, %46 : vector<8x3xf32>
    %cst_26 = arith.constant dense<0.000000e+00> : vector<8x16xf32>
    %48 = tpu.matmul %47, %35, %cst_26 {dimension_numbers = #tpu.dot_dimension_numbers<[1], [0], [0], [1], [0, 0, 1, 1], [], []>} : vector<8x3xf32>, vector<3x16xf32>, vector<8x16xf32> -> vector<8x16xf32>
    %49 = tpu.concatenate %32, %48 in 1 : vector<8x16xf32>, vector<8x16xf32> -> vector<8x32xf32>
    %c0_27 = arith.constant 0 : index
    %c0_28 = arith.constant 0 : index
    %50 = vector.load %arg9[%c0_27, %c0_28] : memref<32x32xf32, #tpu.memory_space<vmem>>, vector<32x32xf32>
    %cst_29 = arith.constant dense<0.000000e+00> : vector<8x32xf32>
    %51 = tpu.matmul %49, %50, %cst_29 {dimension_numbers = #tpu.dot_dimension_numbers<[1], [0], [0], [1], [0, 0, 1, 1], [], []>} : vector<8x32xf32>, vector<32x32xf32>, vector<8x32xf32> -> vector<8x32xf32>
    %c0_30 = arith.constant 0 : index
    %c0_31 = arith.constant 0 : index
    %52 = vector.load %arg10[%c0_30, %c0_31] : memref<1x32xf32, #tpu.memory_space<vmem>>, vector<1x32xf32>
    %53 = vector.broadcast %52 : vector<1x32xf32> to vector<8x32xf32>
    %54 = arith.addf %51, %53 : vector<8x32xf32>
    %c0_32 = arith.constant 0 : index
    %c0_33 = arith.constant 0 : index
    %55 = vector.load %arg11[%c0_32, %c0_33] : memref<8x32xf32, #tpu.memory_space<vmem>>, vector<8x32xf32>
    tpu.vector_store %arg11[%c0_32, %c0_33], %54 {strides = array<i32>} : memref<8x32xf32, #tpu.memory_space<vmem>>, vector<8x32xf32>,
    return
  }
  func.func @transform_0(%arg0: i32) -> (i32, i32) {
    %c0_i32 = arith.constant 0 : i32
    %c0_i32_0 = arith.constant 0 : i32
    return %arg0, %c0_i32 : i32, i32
  }
  func.func @transform_1(%arg0: i32) -> (i32, i32) {
    %c0_i32 = arith.constant 0 : i32
    %c0_i32_0 = arith.constant 0 : i32
    %c0_i32_1 = arith.constant 0 : i32
    return %c0_i32, %c0_i32_0 : i32, i32
  }
  func.func @transform_2(%arg0: i32) -> (i32, i32) {
    %c0_i32 = arith.constant 0 : i32
    %c0_i32_0 = arith.constant 0 : i32
    %c0_i32_1 = arith.constant 0 : i32
    return %c0_i32, %c0_i32_0 : i32, i32
  }
  func.func @transform_3(%arg0: i32) -> (i32, i32) {
    %c0_i32 = arith.constant 0 : i32
    %c0_i32_0 = arith.constant 0 : i32
    %c0_i32_1 = arith.constant 0 : i32
    return %c0_i32, %c0_i32_0 : i32, i32
  }
  func.func @transform_4(%arg0: i32) -> (i32, i32) {
    %c0_i32 = arith.constant 0 : i32
    %c0_i32_0 = arith.constant 0 : i32
    %c0_i32_1 = arith.constant 0 : i32
    return %c0_i32, %c0_i32_0 : i32, i32
  }
  func.func @transform_5(%arg0: i32) -> (i32, i32) {
    %c0_i32 = arith.constant 0 : i32
    %c0_i32_0 = arith.constant 0 : i32
    %c0_i32_1 = arith.constant 0 : i32
    return %c0_i32, %c0_i32_0 : i32, i32
  }
  func.func @transform_6(%arg0: i32) -> (i32, i32) {
    %c0_i32 = arith.constant 0 : i32
    %c0_i32_0 = arith.constant 0 : i32
    %c0_i32_1 = arith.constant 0 : i32
    return %c0_i32, %c0_i32_0 : i32, i32
  }
  func.func @transform_7(%arg0: i32) -> (i32, i32) {
    %c0_i32 = arith.constant 0 : i32
    %c0_i32_0 = arith.constant 0 : i32
    %c0_i32_1 = arith.constant 0 : i32
    return %c0_i32, %c0_i32_0 : i32, i32
  }
  func.func @transform_8(%arg0: i32) -> (i32, i32) {
    %c0_i32 = arith.constant 0 : i32
    %c0_i32_0 = arith.constant 0 : i32
    %c0_i32_1 = arith.constant 0 : i32
    return %c0_i32, %c0_i32_0 : i32, i32
  }
  func.func @transform_9(%arg0: i32) -> (i32, i32) {
    %c0_i32 = arith.constant 0 : i32
    %c0_i32_0 = arith.constant 0 : i32
    %c0_i32_1 = arith.constant 0 : i32
    return %c0_i32, %c0_i32_0 : i32, i32
  }
  func.func @transform_10(%arg0: i32) -> (i32, i32) {
    %c0_i32 = arith.constant 0 : i32
    %c0_i32_0 = arith.constant 0 : i32
    return %arg0, %c0_i32 : i32, i32
  }
}

module attributes {stable_mosaic.version = 11 : i64} {
  func.func @_blk_trans_kernel(%arg0: i32, %arg1: memref<32x768xbf16, #tpu.memory_space<vmem>>, %arg2: memref<768x64xbf16, #tpu.memory_space<vmem>>, %arg3: memref<1x64xf32, #tpu.memory_space<vmem>>, %arg4: memref<64x32xbf16, #tpu.memory_space<vmem>>, %arg5: memref<1x32xf32, #tpu.memory_space<vmem>>, %arg6: memref<1x32xf32, #tpu.memory_space<vmem>>, %arg7: memref<1x32xf32, #tpu.memory_space<vmem>>, %arg8: memref<32x32xf32, #tpu.memory_space<vmem>>) attributes {dimension_semantics = [#tpu.dimension_semantics<parallel>], iteration_bounds = array<i64: 2>, scalar_prefetch = 0 : i64, scratch_operands = 0 : i64, tpu.core_type = #tpu.core_type<tc>, window_params = [{transform_indices = @transform_0, window_bounds = array<i64: 32, 768>}, {pipeline_mode = #tpu.pipeline_mode<synchronous>, transform_indices = @transform_1, window_bounds = array<i64: 768, 64>}, {pipeline_mode = #tpu.pipeline_mode<synchronous>, transform_indices = @transform_2, window_bounds = array<i64: 1, 64>}, {pipeline_mode = #tpu.pipeline_mode<synchronous>, transform_indices = @transform_3, window_bounds = array<i64: 64, 32>}, {pipeline_mode = #tpu.pipeline_mode<synchronous>, transform_indices = @transform_4, window_bounds = array<i64: 1, 32>}, {pipeline_mode = #tpu.pipeline_mode<synchronous>, transform_indices = @transform_5, window_bounds = array<i64: 1, 32>}, {pipeline_mode = #tpu.pipeline_mode<synchronous>, transform_indices = @transform_6, window_bounds = array<i64: 1, 32>}, {transform_indices = @transform_7, window_bounds = array<i64: 32, 32>}]} {
    %c0 = arith.constant 0 : index
    %c0_0 = arith.constant 0 : index
    %0 = vector.load %arg1[%c0, %c0_0] : memref<32x768xbf16, #tpu.memory_space<vmem>>, vector<32x768xbf16>
    %c0_1 = arith.constant 0 : index
    %c0_2 = arith.constant 0 : index
    %1 = vector.load %arg2[%c0_1, %c0_2] : memref<768x64xbf16, #tpu.memory_space<vmem>>, vector<768x64xbf16>
    %cst = arith.constant dense<0.000000e+00> : vector<32x64xf32>
    %2 = tpu.matmul %0, %1, %cst {dimension_numbers = #tpu.dot_dimension_numbers<[1], [0], [0], [1], [0, 0, 1, 1], [], []>} : vector<32x768xbf16>, vector<768x64xbf16>, vector<32x64xf32> -> vector<32x64xf32>
    %c0_3 = arith.constant 0 : index
    %c0_4 = arith.constant 0 : index
    %3 = vector.load %arg3[%c0_3, %c0_4] : memref<1x64xf32, #tpu.memory_space<vmem>>, vector<1x64xf32>
    %4 = vector.broadcast %3 : vector<1x64xf32> to vector<32x64xf32>
    %5 = arith.addf %2, %4 : vector<32x64xf32>
    %cst_5 = arith.constant 0.000000e+00 : f32
    %6 = vector.broadcast %cst_5 : f32 to vector<32x64xf32>
    %7 = arith.maximumf %5, %6 : vector<32x64xf32>
    %8 = arith.truncf %7 : vector<32x64xf32> to vector<32x64xbf16>
    %c0_6 = arith.constant 0 : index
    %c0_7 = arith.constant 0 : index
    %9 = vector.load %arg4[%c0_6, %c0_7] : memref<64x32xbf16, #tpu.memory_space<vmem>>, vector<64x32xbf16>
    %cst_8 = arith.constant dense<0.000000e+00> : vector<32x32xf32>
    %10 = tpu.matmul %8, %9, %cst_8 {dimension_numbers = #tpu.dot_dimension_numbers<[1], [0], [0], [1], [0, 0, 1, 1], [], []>} : vector<32x64xbf16>, vector<64x32xbf16>, vector<32x32xf32> -> vector<32x32xf32>
    %c0_9 = arith.constant 0 : index
    %c0_10 = arith.constant 0 : index
    %11 = vector.load %arg5[%c0_9, %c0_10] : memref<1x32xf32, #tpu.memory_space<vmem>>, vector<1x32xf32>
    %12 = vector.broadcast %11 : vector<1x32xf32> to vector<32x32xf32>
    %13 = arith.addf %10, %12 : vector<32x32xf32>
    %cst_11 = arith.constant dense<0.000000e+00> : vector<32xf32>
    %14 = vector.multi_reduction <add>, %13, %cst_11 [1] : vector<32x32xf32> to vector<32xf32>
    %15 = vector.shape_cast %14 : vector<32xf32> to vector<32x1xf32>
    %cst_12 = arith.constant 3.200000e+01 : f32
    %16 = vector.broadcast %cst_12 : f32 to vector<32x1xf32>
    %17 = arith.divf %15, %16 : vector<32x1xf32>
    %18 = vector.broadcast %17 : vector<32x1xf32> to vector<32x32xf32>
    %19 = arith.subf %13, %18 : vector<32x32xf32>
    %20 = arith.mulf %19, %19 : vector<32x32xf32>
    %cst_13 = arith.constant dense<0.000000e+00> : vector<32xf32>
    %21 = vector.multi_reduction <add>, %20, %cst_13 [1] : vector<32x32xf32> to vector<32xf32>
    %22 = vector.shape_cast %21 : vector<32xf32> to vector<32x1xf32>
    %cst_14 = arith.constant 3.200000e+01 : f32
    %23 = vector.broadcast %cst_14 : f32 to vector<32x1xf32>
    %24 = arith.divf %22, %23 : vector<32x1xf32>
    %25 = vector.broadcast %17 : vector<32x1xf32> to vector<32x32xf32>
    %26 = arith.subf %13, %25 : vector<32x32xf32>
    %cst_15 = arith.constant 9.99999974E-6 : f32
    %27 = vector.broadcast %cst_15 : f32 to vector<32x1xf32>
    %28 = arith.addf %24, %27 : vector<32x1xf32>
    %29 = math.rsqrt %28 : vector<32x1xf32>
    %30 = vector.broadcast %29 : vector<32x1xf32> to vector<32x32xf32>
    %31 = arith.mulf %26, %30 : vector<32x32xf32>
    %c0_16 = arith.constant 0 : index
    %c0_17 = arith.constant 0 : index
    %32 = vector.load %arg6[%c0_16, %c0_17] : memref<1x32xf32, #tpu.memory_space<vmem>>, vector<1x32xf32>
    %33 = vector.broadcast %32 : vector<1x32xf32> to vector<32x32xf32>
    %34 = arith.mulf %31, %33 : vector<32x32xf32>
    %c0_18 = arith.constant 0 : index
    %c0_19 = arith.constant 0 : index
    %35 = vector.load %arg7[%c0_18, %c0_19] : memref<1x32xf32, #tpu.memory_space<vmem>>, vector<1x32xf32>
    %36 = vector.broadcast %35 : vector<1x32xf32> to vector<32x32xf32>
    %37 = arith.addf %34, %36 : vector<32x32xf32>
    %c0_20 = arith.constant 0 : index
    %c0_21 = arith.constant 0 : index
    %38 = vector.load %arg8[%c0_20, %c0_21] : memref<32x32xf32, #tpu.memory_space<vmem>>, vector<32x32xf32>
    tpu.vector_store %arg8[%c0_20, %c0_21], %37 {strides = array<i32>} : memref<32x32xf32, #tpu.memory_space<vmem>>, vector<32x32xf32>,
    return
  }
  func.func @transform_0(%arg0: i32) -> (i32, i32) {
    %c0_i32 = arith.constant 0 : i32
    %c0_i32_0 = arith.constant 0 : i32
    return %arg0, %c0_i32 : i32, i32
  }
  func.func @transform_1(%arg0: i32) -> (i32, i32) {
    %c0_i32 = arith.constant 0 : i32
    %c0_i32_0 = arith.constant 0 : i32
    %c0_i32_1 = arith.constant 0 : i32
    return %c0_i32, %c0_i32_0 : i32, i32
  }
  func.func @transform_2(%arg0: i32) -> (i32, i32) {
    %c0_i32 = arith.constant 0 : i32
    %c0_i32_0 = arith.constant 0 : i32
    %c0_i32_1 = arith.constant 0 : i32
    return %c0_i32, %c0_i32_0 : i32, i32
  }
  func.func @transform_3(%arg0: i32) -> (i32, i32) {
    %c0_i32 = arith.constant 0 : i32
    %c0_i32_0 = arith.constant 0 : i32
    %c0_i32_1 = arith.constant 0 : i32
    return %c0_i32, %c0_i32_0 : i32, i32
  }
  func.func @transform_4(%arg0: i32) -> (i32, i32) {
    %c0_i32 = arith.constant 0 : i32
    %c0_i32_0 = arith.constant 0 : i32
    %c0_i32_1 = arith.constant 0 : i32
    return %c0_i32, %c0_i32_0 : i32, i32
  }
  func.func @transform_5(%arg0: i32) -> (i32, i32) {
    %c0_i32 = arith.constant 0 : i32
    %c0_i32_0 = arith.constant 0 : i32
    %c0_i32_1 = arith.constant 0 : i32
    return %c0_i32, %c0_i32_0 : i32, i32
  }
  func.func @transform_6(%arg0: i32) -> (i32, i32) {
    %c0_i32 = arith.constant 0 : i32
    %c0_i32_0 = arith.constant 0 : i32
    %c0_i32_1 = arith.constant 0 : i32
    return %c0_i32, %c0_i32_0 : i32, i32
  }
  func.func @transform_7(%arg0: i32) -> (i32, i32) {
    %c0_i32 = arith.constant 0 : i32
    %c0_i32_0 = arith.constant 0 : i32
    return %arg0, %c0_i32 : i32, i32
  }
}

module attributes {stable_mosaic.version = 11 : i64} {
  func.func @_att_score_kernel(%arg0: i32, %arg1: memref<8x32xf32, #tpu.memory_space<vmem>>, %arg2: memref<8x6x32xf32, #tpu.memory_space<vmem>>, %arg3: memref<8x6xi32, #tpu.memory_space<vmem>>, %arg4: memref<32x32xf32, #tpu.memory_space<vmem>>, %arg5: memref<32x32xf32, #tpu.memory_space<vmem>>, %arg6: memref<1x32xf32, #tpu.memory_space<vmem>>, %arg7: memref<1x32xf32, #tpu.memory_space<vmem>>, %arg8: memref<8x6xf32, #tpu.memory_space<vmem>>) attributes {dimension_semantics = [#tpu.dimension_semantics<parallel>], iteration_bounds = array<i64: 1>, scalar_prefetch = 0 : i64, scratch_operands = 0 : i64, tpu.core_type = #tpu.core_type<tc>, window_params = [{transform_indices = @transform_0, window_bounds = array<i64: 8, 32>}, {transform_indices = @transform_1, window_bounds = array<i64: 8, 6, 32>}, {transform_indices = @transform_2, window_bounds = array<i64: 8, 6>}, {pipeline_mode = #tpu.pipeline_mode<synchronous>, transform_indices = @transform_3, window_bounds = array<i64: 32, 32>}, {pipeline_mode = #tpu.pipeline_mode<synchronous>, transform_indices = @transform_4, window_bounds = array<i64: 32, 32>}, {pipeline_mode = #tpu.pipeline_mode<synchronous>, transform_indices = @transform_5, window_bounds = array<i64: 1, 32>}, {pipeline_mode = #tpu.pipeline_mode<synchronous>, transform_indices = @transform_6, window_bounds = array<i64: 1, 32>}, {transform_indices = @transform_7, window_bounds = array<i64: 8, 6>}]} {
    %c0 = arith.constant 0 : index
    %c0_0 = arith.constant 0 : index
    %0 = vector.load %arg1[%c0, %c0_0] : memref<8x32xf32, #tpu.memory_space<vmem>>, vector<8x32xf32>
    %c0_1 = arith.constant 0 : index
    %c0_2 = arith.constant 0 : index
    %c0_3 = arith.constant 0 : index
    %1 = vector.load %arg2[%c0_1, %c0_2, %c0_3] : memref<8x6x32xf32, #tpu.memory_space<vmem>>, vector<8x6x32xf32>
    %c0_4 = arith.constant 0 : index
    %c0_5 = arith.constant 0 : index
    %2 = vector.load %arg4[%c0_4, %c0_5] : memref<32x32xf32, #tpu.memory_space<vmem>>, vector<32x32xf32>
    %cst = arith.constant dense<0.000000e+00> : vector<8x32xf32>
    %3 = tpu.matmul %0, %2, %cst {dimension_numbers = #tpu.dot_dimension_numbers<[1], [0], [0], [1], [0, 0, 1, 1], [], []>} : vector<8x32xf32>, vector<32x32xf32>, vector<8x32xf32> -> vector<8x32xf32>
    %4 = vector.shape_cast %1 : vector<8x6x32xf32> to vector<48x32xf32>
    %c0_6 = arith.constant 0 : index
    %c0_7 = arith.constant 0 : index
    %5 = vector.load %arg5[%c0_6, %c0_7] : memref<32x32xf32, #tpu.memory_space<vmem>>, vector<32x32xf32>
    %cst_8 = arith.constant dense<0.000000e+00> : vector<48x32xf32>
    %6 = tpu.matmul %4, %5, %cst_8 {dimension_numbers = #tpu.dot_dimension_numbers<[1], [0], [0], [1], [0, 0, 1, 1], [], []>} : vector<48x32xf32>, vector<32x32xf32>, vector<48x32xf32> -> vector<48x32xf32>
    %7 = vector.shape_cast %6 : vector<48x32xf32> to vector<8x6x32xf32>
    %8 = vector.shape_cast %3 : vector<8x32xf32> to vector<8x1x32xf32>
    %9 = vector.broadcast %8 : vector<8x1x32xf32> to vector<8x6x32xf32>
    %10 = arith.addf %9, %7 : vector<8x6x32xf32>
    %c0_9 = arith.constant 0 : index
    %c0_10 = arith.constant 0 : index
    %11 = vector.load %arg6[%c0_9, %c0_10] : memref<1x32xf32, #tpu.memory_space<vmem>>, vector<1x32xf32>
    %12 = vector.shape_cast %11 : vector<1x32xf32> to vector<1x1x32xf32>
    %13 = vector.broadcast %12 : vector<1x1x32xf32> to vector<8x6x32xf32>
    %14 = arith.addf %10, %13 : vector<8x6x32xf32>
    %15 = math.tanh %14 : vector<8x6x32xf32>
    %c0_11 = arith.constant 0 : index
    %c0_12 = arith.constant 0 : index
    %16 = vector.load %arg7[%c0_11, %c0_12] : memref<1x32xf32, #tpu.memory_space<vmem>>, vector<1x32xf32>
    %17 = vector.shape_cast %16 : vector<1x32xf32> to vector<1x1x32xf32>
    %18 = vector.broadcast %17 : vector<1x1x32xf32> to vector<8x6x32xf32>
    %19 = arith.mulf %15, %18 : vector<8x6x32xf32>
    %cst_13 = arith.constant dense<0.000000e+00> : vector<8x6xf32>
    %20 = vector.multi_reduction <add>, %19, %cst_13 [2] : vector<8x6x32xf32> to vector<8x6xf32>
    %cst_14 = arith.constant dense<0xFF800000> : vector<8xf32>
    %21 = vector.multi_reduction <maximumf>, %20, %cst_14 [1] : vector<8x6xf32> to vector<8xf32>
    %22 = vector.shape_cast %21 : vector<8xf32> to vector<8x1xf32>
    %23 = vector.broadcast %22 : vector<8x1xf32> to vector<8x6xf32>
    %24 = arith.subf %20, %23 : vector<8x6xf32>
    %25 = math.exp %24 : vector<8x6xf32>
    %cst_15 = arith.constant dense<0.000000e+00> : vector<8xf32>
    %26 = vector.multi_reduction <add>, %25, %cst_15 [1] : vector<8x6xf32> to vector<8xf32>
    %27 = vector.shape_cast %26 : vector<8xf32> to vector<8x1xf32>
    %28 = vector.broadcast %27 : vector<8x1xf32> to vector<8x6xf32>
    %29 = arith.divf %25, %28 : vector<8x6xf32>
    %c0_16 = arith.constant 0 : index
    %c0_17 = arith.constant 0 : index
    %30 = vector.load %arg3[%c0_16, %c0_17] : memref<8x6xi32, #tpu.memory_space<vmem>>, vector<8x6xi32>
    %c0_i32 = arith.constant 0 : i32
    %31 = vector.broadcast %c0_i32 : i32 to vector<8x6xi32>
    %32 = arith.cmpi eq, %30, %31 : vector<8x6xi32>
    %cst_18 = arith.constant 0.000000e+00 : f32
    %33 = vector.broadcast %cst_18 : f32 to vector<8x6xf32>
    %34 = arith.select %32, %33, %29 : vector<8x6xi1>, vector<8x6xf32>
    %c0_19 = arith.constant 0 : index
    %c0_20 = arith.constant 0 : index
    %35 = vector.load %arg8[%c0_19, %c0_20] : memref<8x6xf32, #tpu.memory_space<vmem>>, vector<8x6xf32>
    tpu.vector_store %arg8[%c0_19, %c0_20], %34 {strides = array<i32>} : memref<8x6xf32, #tpu.memory_space<vmem>>, vector<8x6xf32>,
    return
  }
  func.func @transform_0(%arg0: i32) -> (i32, i32) {
    %c0_i32 = arith.constant 0 : i32
    %c0_i32_0 = arith.constant 0 : i32
    return %arg0, %c0_i32 : i32, i32
  }
  func.func @transform_1(%arg0: i32) -> (i32, i32, i32) {
    %c0_i32 = arith.constant 0 : i32
    %c0_i32_0 = arith.constant 0 : i32
    %c0_i32_1 = arith.constant 0 : i32
    return %arg0, %c0_i32, %c0_i32_0 : i32, i32, i32
  }
  func.func @transform_2(%arg0: i32) -> (i32, i32) {
    %c0_i32 = arith.constant 0 : i32
    %c0_i32_0 = arith.constant 0 : i32
    return %arg0, %c0_i32 : i32, i32
  }
  func.func @transform_3(%arg0: i32) -> (i32, i32) {
    %c0_i32 = arith.constant 0 : i32
    %c0_i32_0 = arith.constant 0 : i32
    %c0_i32_1 = arith.constant 0 : i32
    return %c0_i32, %c0_i32_0 : i32, i32
  }
  func.func @transform_4(%arg0: i32) -> (i32, i32) {
    %c0_i32 = arith.constant 0 : i32
    %c0_i32_0 = arith.constant 0 : i32
    %c0_i32_1 = arith.constant 0 : i32
    return %c0_i32, %c0_i32_0 : i32, i32
  }
  func.func @transform_5(%arg0: i32) -> (i32, i32) {
    %c0_i32 = arith.constant 0 : i32
    %c0_i32_0 = arith.constant 0 : i32
    %c0_i32_1 = arith.constant 0 : i32
    return %c0_i32, %c0_i32_0 : i32, i32
  }
  func.func @transform_6(%arg0: i32) -> (i32, i32) {
    %c0_i32 = arith.constant 0 : i32
    %c0_i32_0 = arith.constant 0 : i32
    %c0_i32_1 = arith.constant 0 : i32
    return %c0_i32, %c0_i32_0 : i32, i32
  }
  func.func @transform_7(%arg0: i32) -> (i32, i32) {
    %c0_i32 = arith.constant 0 : i32
    %c0_i32_0 = arith.constant 0 : i32
    return %arg0, %c0_i32 : i32, i32
  }
}

module attributes {stable_mosaic.version = 11 : i64} {
  func.func @_mem_attn_kernel(%arg0: memref<2x32xf32, #tpu.memory_space<vmem>>, %arg1: memref<2x7x32xf32, #tpu.memory_space<vmem>>, %arg2: memref<2x7xi32, #tpu.memory_space<vmem>>, %arg3: memref<32x32xf32, #tpu.memory_space<vmem>>, %arg4: memref<32x32xf32, #tpu.memory_space<vmem>>, %arg5: memref<2x7xf32, #tpu.memory_space<vmem>>) attributes {dimension_semantics = [], scalar_prefetch = 0 : i64, scratch_operands = 0 : i64, tpu.core_type = #tpu.core_type<tc>} {
    %c0 = arith.constant 0 : index
    %c0_0 = arith.constant 0 : index
    %0 = vector.load %arg0[%c0, %c0_0] : memref<2x32xf32, #tpu.memory_space<vmem>>, vector<2x32xf32>
    %c0_1 = arith.constant 0 : index
    %c0_2 = arith.constant 0 : index
    %c0_3 = arith.constant 0 : index
    %1 = vector.load %arg1[%c0_1, %c0_2, %c0_3] : memref<2x7x32xf32, #tpu.memory_space<vmem>>, vector<2x7x32xf32>
    %c0_4 = arith.constant 0 : index
    %c0_5 = arith.constant 0 : index
    %2 = vector.load %arg2[%c0_4, %c0_5] : memref<2x7xi32, #tpu.memory_space<vmem>>, vector<2x7xi32>
    %c0_6 = arith.constant 0 : index
    %c0_7 = arith.constant 0 : index
    %3 = vector.load %arg3[%c0_6, %c0_7] : memref<32x32xf32, #tpu.memory_space<vmem>>, vector<32x32xf32>
    %cst = arith.constant dense<0.000000e+00> : vector<2x32xf32>
    %4 = tpu.matmul %0, %3, %cst {dimension_numbers = #tpu.dot_dimension_numbers<[1], [0], [0], [1], [0, 0, 1, 1], [], []>} : vector<2x32xf32>, vector<32x32xf32>, vector<2x32xf32> -> vector<2x32xf32>
    %5 = vector.shape_cast %1 : vector<2x7x32xf32> to vector<14x32xf32>
    %c0_8 = arith.constant 0 : index
    %c0_9 = arith.constant 0 : index
    %6 = vector.load %arg4[%c0_8, %c0_9] : memref<32x32xf32, #tpu.memory_space<vmem>>, vector<32x32xf32>
    %cst_10 = arith.constant dense<0.000000e+00> : vector<14x32xf32>
    %7 = tpu.matmul %5, %6, %cst_10 {dimension_numbers = #tpu.dot_dimension_numbers<[1], [0], [0], [1], [0, 0, 1, 1], [], []>} : vector<14x32xf32>, vector<32x32xf32>, vector<14x32xf32> -> vector<14x32xf32>
    %8 = vector.shape_cast %7 : vector<14x32xf32> to vector<2x7x32xf32>
    %9 = vector.shape_cast %4 : vector<2x32xf32> to vector<2x1x32xf32>
    %10 = vector.broadcast %9 : vector<2x1x32xf32> to vector<2x7x32xf32>
    %11 = arith.mulf %10, %8 : vector<2x7x32xf32>
    %cst_11 = arith.constant dense<0.000000e+00> : vector<2x7xf32>
    %12 = vector.multi_reduction <add>, %11, %cst_11 [2] : vector<2x7x32xf32> to vector<2x7xf32>
    %cst_12 = arith.constant 0.176776692 : f32
    %13 = vector.broadcast %cst_12 : f32 to vector<2x7xf32>
    %14 = arith.mulf %12, %13 : vector<2x7xf32>
    %cst_13 = arith.constant dense<0xFF800000> : vector<2xf32>
    %15 = vector.multi_reduction <maximumf>, %14, %cst_13 [1] : vector<2x7xf32> to vector<2xf32>
    %16 = vector.shape_cast %15 : vector<2xf32> to vector<2x1xf32>
    %17 = vector.broadcast %16 : vector<2x1xf32> to vector<2x7xf32>
    %18 = arith.subf %14, %17 : vector<2x7xf32>
    %19 = math.exp %18 : vector<2x7xf32>
    %cst_14 = arith.constant dense<0.000000e+00> : vector<2xf32>
    %20 = vector.multi_reduction <add>, %19, %cst_14 [1] : vector<2x7xf32> to vector<2xf32>
    %21 = vector.shape_cast %20 : vector<2xf32> to vector<2x1xf32>
    %22 = vector.broadcast %21 : vector<2x1xf32> to vector<2x7xf32>
    %23 = arith.divf %19, %22 : vector<2x7xf32>
    %c0_i32 = arith.constant 0 : i32
    %24 = vector.broadcast %c0_i32 : i32 to vector<2x7xi32>
    %25 = arith.cmpi sgt, %2, %24 : vector<2x7xi32>
    %c0_i32_15 = arith.constant 0 : i32
    %26 = vector.broadcast %c0_i32_15 : i32 to vector<2x7xi32>
    %27 = arith.cmpi slt, %2, %26 : vector<2x7xi32>
    %cst_16 = arith.constant -1.000000e+00 : f32
    %cst_17 = arith.constant 0.000000e+00 : f32
    %28 = vector.broadcast %cst_16 : f32 to vector<2x7xf32>
    %29 = vector.broadcast %cst_17 : f32 to vector<2x7xf32>
    %30 = arith.select %27, %28, %29 : vector<2x7xi1>, vector<2x7xf32>
    %31 = arith.select %25, %23, %30 : vector<2x7xi1>, vector<2x7xf32>
    %c0_18 = arith.constant 0 : index
    %c0_19 = arith.constant 0 : index
    %32 = vector.load %arg5[%c0_18, %c0_19] : memref<2x7xf32, #tpu.memory_space<vmem>>, vector<2x7xf32>
    tpu.vector_store %arg5[%c0_18, %c0_19], %31 {strides = array<i32>} : memref<2x7xf32, #tpu.memory_space<vmem>>, vector<2x7xf32>,
    return
  }
}

module attributes {stable_mosaic.version = 11 : i64} {
  func.func @_final_fused_kernel(%arg0: i32, %arg1: memref<2x4x32xf32, #tpu.memory_space<vmem>>, %arg2: memref<2x4xf32, #tpu.memory_space<vmem>>, %arg3: memref<2x32xf32, #tpu.memory_space<vmem>>, %arg4: memref<2x4x32xf32, #tpu.memory_space<vmem>>, %arg5: memref<32x2xf32, #tpu.memory_space<vmem>>, %arg6: memref<32x2xf32, #tpu.memory_space<vmem>>, %arg7: memref<1x2xf32, #tpu.memory_space<vmem>>, %arg8: memref<2x2xf32, #tpu.memory_space<vmem>>) attributes {dimension_semantics = [#tpu.dimension_semantics<parallel>], iteration_bounds = array<i64: 1>, scalar_prefetch = 0 : i64, scratch_operands = 0 : i64, tpu.core_type = #tpu.core_type<tc>, window_params = [{transform_indices = @transform_0, window_bounds = array<i64: 2, 4, 32>}, {transform_indices = @transform_1, window_bounds = array<i64: 2, 4>}, {transform_indices = @transform_2, window_bounds = array<i64: 2, 32>}, {transform_indices = @transform_3, window_bounds = array<i64: 2, 4, 32>}, {pipeline_mode = #tpu.pipeline_mode<synchronous>, transform_indices = @transform_4, window_bounds = array<i64: 32, 2>}, {pipeline_mode = #tpu.pipeline_mode<synchronous>, transform_indices = @transform_5, window_bounds = array<i64: 32, 2>}, {pipeline_mode = #tpu.pipeline_mode<synchronous>, transform_indices = @transform_6, window_bounds = array<i64: 1, 2>}, {transform_indices = @transform_7, window_bounds = array<i64: 2, 2>}]} {
    %c0 = arith.constant 0 : index
    %c0_0 = arith.constant 0 : index
    %c0_1 = arith.constant 0 : index
    %0 = vector.load %arg1[%c0, %c0_0, %c0_1] : memref<2x4x32xf32, #tpu.memory_space<vmem>>, vector<2x4x32xf32>
    %c0_2 = arith.constant 0 : index
    %c0_3 = arith.constant 0 : index
    %1 = vector.load %arg2[%c0_2, %c0_3] : memref<2x4xf32, #tpu.memory_space<vmem>>, vector<2x4xf32>
    %2 = vector.shape_cast %1 : vector<2x4xf32> to vector<2x4x1xf32>
    %cst = arith.constant 0.000000e+00 : f32
    %3 = vector.broadcast %cst : f32 to vector<2x4x1xf32>
    %4 = arith.cmpf ogt, %2, %3 : vector<2x4x1xf32>
    %cst_4 = arith.constant -3.40282347E+38 : f32
    %5 = vector.shape_cast %4 : vector<2x4x1xi1> to vector<2x4x1xi1>
    %6 = vector.broadcast %5 : vector<2x4x1xi1> to vector<2x4x32xi1>
    %7 = vector.broadcast %cst_4 : f32 to vector<2x4x32xf32>
    %8 = arith.select %6, %0, %7 : vector<2x4x32xi1>, vector<2x4x32xf32>
    %cst_5 = arith.constant dense<0xFF800000> : vector<2x32xf32>
    %9 = vector.multi_reduction <maximumf>, %8, %cst_5 [1] : vector<2x4x32xf32> to vector<2x32xf32>
    %c0_6 = arith.constant 0 : index
    %c0_7 = arith.constant 0 : index
    %10 = vector.load %arg3[%c0_6, %c0_7] : memref<2x32xf32, #tpu.memory_space<vmem>>, vector<2x32xf32>
    %11 = arith.addf %9, %10 : vector<2x32xf32>
    %c0_8 = arith.constant 0 : index
    %c0_9 = arith.constant 0 : index
    %c0_10 = arith.constant 0 : index
    %12 = vector.load %arg4[%c0_8, %c0_9, %c0_10] : memref<2x4x32xf32, #tpu.memory_space<vmem>>, vector<2x4x32xf32>
    %cst_11 = arith.constant dense<0xFF800000> : vector<2x32xf32>
    %13 = vector.multi_reduction <maximumf>, %12, %cst_11 [1] : vector<2x4x32xf32> to vector<2x32xf32>
    %c0_12 = arith.constant 0 : index
    %c0_13 = arith.constant 0 : index
    %14 = vector.load %arg5[%c0_12, %c0_13] : memref<32x2xf32, #tpu.memory_space<vmem>>, vector<32x2xf32>
    %cst_14 = arith.constant dense<0.000000e+00> : vector<2x2xf32>
    %15 = tpu.matmul %11, %14, %cst_14 {dimension_numbers = #tpu.dot_dimension_numbers<[1], [0], [0], [1], [0, 0, 1, 1], [], []>} : vector<2x32xf32>, vector<32x2xf32>, vector<2x2xf32> -> vector<2x2xf32>
    %c0_15 = arith.constant 0 : index
    %c0_16 = arith.constant 0 : index
    %16 = vector.load %arg6[%c0_15, %c0_16] : memref<32x2xf32, #tpu.memory_space<vmem>>, vector<32x2xf32>
    %cst_17 = arith.constant dense<0.000000e+00> : vector<2x2xf32>
    %17 = tpu.matmul %13, %16, %cst_17 {dimension_numbers = #tpu.dot_dimension_numbers<[1], [0], [0], [1], [0, 0, 1, 1], [], []>} : vector<2x32xf32>, vector<32x2xf32>, vector<2x2xf32> -> vector<2x2xf32>
    %18 = arith.addf %15, %17 : vector<2x2xf32>
    %c0_18 = arith.constant 0 : index
    %c0_19 = arith.constant 0 : index
    %19 = vector.load %arg7[%c0_18, %c0_19] : memref<1x2xf32, #tpu.memory_space<vmem>>, vector<1x2xf32>
    %20 = vector.broadcast %19 : vector<1x2xf32> to vector<2x2xf32>
    %21 = arith.addf %18, %20 : vector<2x2xf32>
    %c0_20 = arith.constant 0 : index
    %c0_21 = arith.constant 0 : index
    %22 = vector.load %arg8[%c0_20, %c0_21] : memref<2x2xf32, #tpu.memory_space<vmem>>, vector<2x2xf32>
    tpu.vector_store %arg8[%c0_20, %c0_21], %21 {strides = array<i32>} : memref<2x2xf32, #tpu.memory_space<vmem>>, vector<2x2xf32>,
    return
  }
  func.func @transform_0(%arg0: i32) -> (i32, i32, i32) {
    %c0_i32 = arith.constant 0 : i32
    %c0_i32_0 = arith.constant 0 : i32
    %c0_i32_1 = arith.constant 0 : i32
    return %arg0, %c0_i32, %c0_i32_0 : i32, i32, i32
  }
  func.func @transform_1(%arg0: i32) -> (i32, i32) {
    %c0_i32 = arith.constant 0 : i32
    %c0_i32_0 = arith.constant 0 : i32
    return %arg0, %c0_i32 : i32, i32
  }
  func.func @transform_2(%arg0: i32) -> (i32, i32) {
    %c0_i32 = arith.constant 0 : i32
    %c0_i32_0 = arith.constant 0 : i32
    return %arg0, %c0_i32 : i32, i32
  }
  func.func @transform_3(%arg0: i32) -> (i32, i32, i32) {
    %c0_i32 = arith.constant 0 : i32
    %c0_i32_0 = arith.constant 0 : i32
    %c0_i32_1 = arith.constant 0 : i32
    return %arg0, %c0_i32, %c0_i32_0 : i32, i32, i32
  }
  func.func @transform_4(%arg0: i32) -> (i32, i32) {
    %c0_i32 = arith.constant 0 : i32
    %c0_i32_0 = arith.constant 0 : i32
    %c0_i32_1 = arith.constant 0 : i32
    return %c0_i32, %c0_i32_0 : i32, i32
  }
  func.func @transform_5(%arg0: i32) -> (i32, i32) {
    %c0_i32 = arith.constant 0 : i32
    %c0_i32_0 = arith.constant 0 : i32
    %c0_i32_1 = arith.constant 0 : i32
    return %c0_i32, %c0_i32_0 : i32, i32
  }
  func.func @transform_6(%arg0: i32) -> (i32, i32) {
    %c0_i32 = arith.constant 0 : i32
    %c0_i32_0 = arith.constant 0 : i32
    %c0_i32_1 = arith.constant 0 : i32
    return %c0_i32, %c0_i32_0 : i32, i32
  }
  func.func @transform_7(%arg0: i32) -> (i32, i32) {
    %c0_i32 = arith.constant 0 : i32
    %c0_i32_0 = arith.constant 0 : i32
    return %arg0, %c0_i32 : i32, i32
  }
}

</mosaic_0001>

<llo_original>
// kernel: _forward.7
$region0: #{_forward.7}
  #allocation0 [shape = 'u32[]', space=smem, size = 0x4, offset = 0x4, fixed_abs, tag = 'smem constant byte address 0x4 - core index']
  #allocation1 [shape = 'u32[144,128]{1,0:T(1,128)}', space=vmem, size = 0x12000, scoped, tag = 'internal scratch']
  %s0 = inlined_call_operand.vmem [shape: f32[2,4,32], index: 0, kind: input, shape index: {}]
  %s1 = inlined_call_operand.vmem [shape: f32[2,4], index: 1, kind: input, shape index: {}]
  %s2 = inlined_call_operand.vmem [shape: f32[32,32], index: 2, kind: input, shape index: {}]
  %s3 = inlined_call_operand.vmem [shape: f32[1,32], index: 3, kind: input, shape index: {}]
  %s4 = inlined_call_operand.vmem [shape: f32[2,32], index: 4, kind: output, shape index: {0}]
  %s5 = inlined_call_operand.vmem [shape: f32[2,4,32], index: 5, kind: output, shape index: {1}]
  %6 = xla_tuple %s4, %s5
  %s7 = sld [smem:[#allocation0]]
  $region34: #{_forward.7} parent=0
    _
  %s9 = ssub.s32 1, %s7
  %s10 = scalar_select 0, %s9, %s7
  // Predicated region
  $region2: #{_forward.7} parent=0 // pred_check
    _
  $region3: #{_forward.7} parent=0 // pred_check_branch
    %12 = sbr.rel (0) target = $region5
  $region4: #{_forward.7} parent=0 // pred_region
    _
  $region5: #{_forward.7} parent=0 // pred_fallthru
    _
  // Predicated region
  $region6: #{_forward.7} parent=0 // pred_check
    _
  $region7: #{_forward.7} parent=0 // pred_check_branch
    %14 = sbr.rel (0) target = $region9
  $region8: #{_forward.7} parent=0 // pred_region
    _
  $region9: #{_forward.7} parent=0 // pred_fallthru
    _
  // Predicated region
  $region10: #{_forward.7} parent=0 // pred_check
    _
  $region11: #{_forward.7} parent=0 // pred_check_branch
    %16 = sbr.rel (0) target = $region13
  $region12: #{_forward.7} parent=0 // pred_region
    _
  $region13: #{_forward.7} parent=0 // pred_fallthru
    _
  // Predicated region
  $region14: #{_forward.7} parent=0 // pred_check
    _
  $region15: #{_forward.7} parent=0 // pred_check_branch
    %18 = sbr.rel (0) target = $region17
  $region16: #{_forward.7} parent=0 // pred_region
    _
  $region17: #{_forward.7} parent=0 // pred_fallthru
    _
  %v19 = vld [vmem:[%s0] sm:$0xf]
  %v20 = vld [vmem:[%s0 + $0x4] sm:$0xf]
  %v21 = vld [vmem:[%s2] sm:$0xff]
  %v22 = vld [vmem:[%s2 + $0x8] sm:$0xff]
  %v23 = vld [vmem:[%s2 + $0x10] sm:$0xff]
  %v24 = vld [vmem:[%s2 + $0x18] sm:$0xff]
  %v25 = vld [vmem:[%s3] sm:$0x1]
  %v27 = vlaneseq
  %v28 = vshrl.u32 %v27, 7
  %v29 = vsub.s32 0, %v28
  %v30 = vrot.slane %v25, %v29
  %v34 = vcombine.low %v19, %v20
  %vm35 = vcmask 261120
  %v36 = vsel %vm35, %v34, 0
  %38 = vmatprep.subr.mxu0 0.0
  %39 = vmatpush1.msra.mxu0 %v21
  %40 = vmatprep.subr.mxu0 0.0
  %41 = vmatpush1.msra.mxu0 %v22
  %42 = vmatprep.subr.mxu0 0.0
  %43 = vmatpush1.msra.mxu0 %v23
  %44 = vmatprep.subr.mxu0 0.0
  %45 = vmatpush1.msra.mxu0 %v24
  %46 = vmatprep.subr.mxu0 0.0
  %47 = vmatpush1.msra.mxu0 0.0
  %48 = vmatprep.subr.mxu0 0.0
  %49 = vmatpush1.msra.mxu0 0.0
  %50 = vmatprep.subr.mxu0 0.0
  %51 = vmatpush1.msra.mxu0 0.0
  %52 = vmatprep.subr.mxu0 0.0
  %53 = vmatpush1.msra.mxu0 0.0
  %54 = vmatprep.subr.mxu0 0.0
  %55 = vmatpush1.msra.mxu0 0.0
  %56 = vmatprep.subr.mxu0 0.0
  %57 = vmatpush1.msra.mxu0 0.0
  %58 = vmatprep.subr.mxu0 0.0
  %59 = vmatpush1.msra.mxu0 0.0
  %60 = vmatprep.subr.mxu0 0.0
  %61 = vmatpush1.msra.mxu0 0.0
  %62 = vmatprep.subr.mxu0 0.0
  %63 = vmatpush1.msra.mxu0 0.0
  %64 = vmatprep.subr.mxu0 0.0
  %65 = vmatpush1.msra.mxu0 0.0
  %66 = vmatprep.subr.mxu0 0.0
  %67 = vmatpush1.msra.mxu0 0.0
  %68 = vmatprep.subr.mxu0 0.0
  %69 = vmatpush1.msra.mxu0 0.0
  %70 = vmatprep.subr.mxu0 0.0
  %71 = vmatpush1.msra.mxu0 0.0
  %72 = vmatprep.subr.mxu0 0.0
  %73 = vmatpush1.msra.mxu0 0.0
  %74 = vmatprep.subr.mxu0 0.0
  %75 = vmatpush1.msra.mxu0 0.0
  %76 = vmatprep.subr.mxu0 0.0
  %77 = vmatpush1.msra.mxu0 0.0
  %78 = vmatprep.subr.mxu0 0.0
  %79 = vmatpush1.msra.mxu0 0.0
  %80 = vmatprep.subr.mxu0 0.0
  %81 = vmatpush1.msra.mxu0 0.0
  %82 = vmatprep.subr.mxu0 0.0
  %83 = vmatpush1.msra.mxu0 0.0
  %84 = vmatprep.subr.mxu0 0.0
  %85 = vmatpush1.msra.mxu0 0.0
  %86 = vmatprep.subr.mxu0 0.0
  %87 = vmatpush1.msra.mxu0 0.0
  %88 = vmatprep.subr.mxu0 0.0
  %89 = vmatpush1.msra.mxu0 0.0
  %90 = vmatprep.subr.mxu0 0.0
  %91 = vmatpush1.msra.mxu0 0.0
  %92 = vmatprep.subr.mxu0 0.0
  %93 = vmatpush1.msra.mxu0 0.0
  %94 = vmatprep.subr.mxu0 0.0
  %95 = vmatpush1.msra.mxu0 0.0
  %96 = vmatprep.subr.mxu0 0.0
  %97 = vmatpush1.msra.mxu0 0.0
  %98 = vmatprep.subr.mxu0 0.0
  %99 = vmatpush1.msra.mxu0 0.0
  %100 = vmatprep.subr.mxu0 0.0
  %101 = vmatpush1.msra.mxu0 0.0
  %102 = vmatprep.mubr.f32.mxu0 0.0
  %103 = vmatmul.mubr.f32.gmra.mrb[0].mxu0 %v36
  %v104 = vpop.f32.mrb[0].mxu0
  %v105 = vadd.f32 %v30, %v104
  %v106 = vpop.f32.mrb[0].mxu0
  %107 = vdwg.mxu0
  %v108 = vtanh.pop %v105
  %v110 = vcombine.high %v108, %v108
  %vm112 = vcmask 257024
  %113 = vst.msk [vmem:[%s5] sm:$0xf] %vm112, %v108
  %114 = vst.msk [vmem:[%s5 + $0x4] sm:$0xf] %vm112, %v110
  %v115 = vld [vmem:[%s1] sm:$0x3]
  %v116 = vlaneseq
  %v117 = vshrl.u32 %v116, 7
  %v118 = vsub.s32 0, %v117
  %v119 = vrot.slane %v115, %v118
  %121 = vbcast.lane.b32.xlu0 %v119, 256
  %v122 = vpop.permute.xlu0 %121
  %v123 = vlaneseq
  %v124 = vshrl.u32 %v123, 7
  %v125 = vsub.s32 1, %v124
  %v126 = vrot.slane %v115, %v125
  %128 = vbcast.lane.b32.xlu0 %v126, 256
  %v129 = vpop.permute.xlu0 %128
  %vm130 = vcmp.gt.f32.partialorder %v122, 0.0
  %vm131 = vcmp.gt.f32.partialorder %v129, 0.0
  %v132 = vsel %vm130, 1, 0
  %v133 = vsel %vm131, 1, 0
  %vm134 = vcmp.eq.s32.totalorder %v132, 1
  %vm135 = vcmp.eq.s32.totalorder %v133, 1
  %v136 = vsel %vm134, %v108, -3.4028235e+38
  %v137 = vsel %vm135, %v110, -3.4028235e+38
  %v138 = vsel %vm112, %v136, -inf
  %v139 = vrot.slane %v138, 4
  %v140 = vmax.f32 %v138, %v139
  %v141 = vrot.slane %v140, 2
  %v142 = vmax.f32 %v140, %v141
  %v143 = vrot.slane %v142, 1
  %v144 = vmax.f32 %v142, %v143
  %v145 = vsel %vm112, %v137, -inf
  %v146 = vrot.slane %v145, 4
  %v147 = vmax.f32 %v145, %v146
  %v148 = vrot.slane %v147, 2
  %v149 = vmax.f32 %v147, %v148
  %v150 = vrot.slane %v149, 1
  %v151 = vmax.f32 %v149, %v150
  %vm154 = vcmask 1041409
  %v155 = vsel %vm154, %v151, %v144
  %vm157 = vcmask 254976
  %158 = vst.msk [vmem:[%s4] sm:$0x3] %vm157, %v155
  // Predicated region
  $region18: #{_forward.7} parent=0 // pred_check
    _
  $region19: #{_forward.7} parent=0 // pred_check_branch
    %160 = sbr.rel (0) target = $region21
  $region20: #{_forward.7} parent=0 // pred_region
    _
  $region21: #{_forward.7} parent=0 // pred_fallthru
    _
  // Predicated region
  $region22: #{_forward.7} parent=0 // pred_check
    _
  $region23: #{_forward.7} parent=0 // pred_check_branch
    %162 = sbr.rel (0) target = $region25
  $region24: #{_forward.7} parent=0 // pred_region
    _
  $region25: #{_forward.7} parent=0 // pred_fallthru
    _
  // Predicated region
  $region26: #{_forward.7} parent=0 // pred_check
    _
  $region27: #{_forward.7} parent=0 // pred_check_branch
    %164 = sbr.rel (0) target = $region29
  $region28: #{_forward.7} parent=0 // pred_region
    _
  $region29: #{_forward.7} parent=0 // pred_fallthru
    _
  // Predicated region
  $region30: #{_forward.7} parent=0 // pred_check
    _
  $region31: #{_forward.7} parent=0 // pred_check_branch
    %166 = sbr.rel (0) target = $region33
  $region32: #{_forward.7} parent=0 // pred_region
    _
  $region33: #{_forward.7} parent=0 // pred_fallthru
    _

// kernel: _forward.9
$region0: #{_forward.9}
  #allocation0 [shape = 'u32[]', space=smem, size = 0x4, offset = 0x4, fixed_abs, tag = 'smem constant byte address 0x4 - core index']
  #allocation1 [shape = 'u32[144,128]{1,0:T(1,128)}', space=vmem, size = 0x12000, scoped, tag = 'internal scratch']
  %s0 = inlined_call_operand.vmem [shape: f32[8,32], index: 0, kind: input, shape index: {}]
  %s1 = inlined_call_operand.vmem [shape: f32[3,32], index: 1, kind: input, shape index: {}]
  %s2 = inlined_call_operand.vmem [shape: f32[32,32], index: 2, kind: input, shape index: {}]
  %s3 = inlined_call_operand.vmem [shape: f32[1,32], index: 3, kind: input, shape index: {}]
  %s4 = inlined_call_operand.vmem [shape: f32[32,32], index: 4, kind: input, shape index: {}]
  %s5 = inlined_call_operand.vmem [shape: f32[1,32], index: 5, kind: input, shape index: {}]
  %s6 = inlined_call_operand.vmem [shape: f32[32,32], index: 6, kind: input, shape index: {}]
  %s7 = inlined_call_operand.vmem [shape: f32[1,32], index: 7, kind: input, shape index: {}]
  %s8 = inlined_call_operand.vmem [shape: f32[32,32], index: 8, kind: input, shape index: {}]
  %s9 = inlined_call_operand.vmem [shape: f32[1,32], index: 9, kind: input, shape index: {}]
  %s10 = inlined_call_operand.vmem [shape: f32[8,32], index: 10, kind: output, shape index: {}]
  %s11 = sld [smem:[#allocation0]]
  $region50: #{_forward.9} parent=0
    _
  %s13 = ssub.s32 1, %s11
  %s14 = scalar_select 0, %s13, %s11
  // Predicated region
  $region2: #{_forward.9} parent=0 // pred_check
    _
  $region3: #{_forward.9} parent=0 // pred_check_branch
    %16 = sbr.rel (0) target = $region5
  $region4: #{_forward.9} parent=0 // pred_region
    _
  $region5: #{_forward.9} parent=0 // pred_fallthru
    _
  // Predicated region
  $region6: #{_forward.9} parent=0 // pred_check
    _
  $region7: #{_forward.9} parent=0 // pred_check_branch
    %18 = sbr.rel (0) target = $region9
  $region8: #{_forward.9} parent=0 // pred_region
    _
  $region9: #{_forward.9} parent=0 // pred_fallthru
    _
  // Predicated region
  $region10: #{_forward.9} parent=0 // pred_check
    _
  $region11: #{_forward.9} parent=0 // pred_check_branch
    %20 = sbr.rel (0) target = $region13
  $region12: #{_forward.9} parent=0 // pred_region
    _
  $region13: #{_forward.9} parent=0 // pred_fallthru
    _
  // Predicated region
  $region14: #{_forward.9} parent=0 // pred_check
    _
  $region15: #{_forward.9} parent=0 // pred_check_branch
    %22 = sbr.rel (0) target = $region17
  $region16: #{_forward.9} parent=0 // pred_region
    _
  $region17: #{_forward.9} parent=0 // pred_fallthru
    _
  // Predicated region
  $region18: #{_forward.9} parent=0 // pred_check
    _
  $region19: #{_forward.9} parent=0 // pred_check_branch
    %24 = sbr.rel (0) target = $region21
  $region20: #{_forward.9} parent=0 // pred_region
    _
  $region21: #{_forward.9} parent=0 // pred_fallthru
    _
  // Predicated region
  $region22: #{_forward.9} parent=0 // pred_check
    _
  $region23: #{_forward.9} parent=0 // pred_check_branch
    %26 = sbr.rel (0) target = $region25
  $region24: #{_forward.9} parent=0 // pred_region
    _
  $region25: #{_forward.9} parent=0 // pred_fallthru
    _
  // Predicated region
  $region26: #{_forward.9} parent=0 // pred_check
    _
  $region27: #{_forward.9} parent=0 // pred_check_branch
    %28 = sbr.rel (0) target = $region29
  $region28: #{_forward.9} parent=0 // pred_region
    _
  $region29: #{_forward.9} parent=0 // pred_fallthru
    _
  // Predicated region
  $region30: #{_forward.9} parent=0 // pred_check
    _
  $region31: #{_forward.9} parent=0 // pred_check_branch
    %30 = sbr.rel (0) target = $region33
  $region32: #{_forward.9} parent=0 // pred_region
    _
  $region33: #{_forward.9} parent=0 // pred_fallthru
    _
  // Predicated region
  $region34: #{_forward.9} parent=0 // pred_check
    _
  $region35: #{_forward.9} parent=0 // pred_check_branch
    %32 = sbr.rel (0) target = $region37
  $region36: #{_forward.9} parent=0 // pred_region
    _
  $region37: #{_forward.9} parent=0 // pred_fallthru
    _
  // Predicated region
  $region38: #{_forward.9} parent=0 // pred_check
    _
  $region39: #{_forward.9} parent=0 // pred_check_branch
    %34 = sbr.rel (0) target = $region41
  $region40: #{_forward.9} parent=0 // pred_region
    _
  $region41: #{_forward.9} parent=0 // pred_fallthru
    _
  %v35 = vld [vmem:[%s0] sm:$0xff]
  %v36 = vld [vmem:[%s1] sm:$0x7]
  %v37 = vld [vmem:[%s2] sm:$0xff]
  %v38 = vld [vmem:[%s2 + $0x8] sm:$0xff]
  %v39 = vld [vmem:[%s2 + $0x10] sm:$0xff]
  %v40 = vld [vmem:[%s2 + $0x18] sm:$0xff]
  %v41 = vld [vmem:[%s3] sm:$0x1]
  %v43 = vlaneseq
  %v44 = vshrl.u32 %v43, 7
  %v45 = vsub.s32 0, %v44
  %v46 = vrot.slane %v41, %v45
  %vm48 = vcmask 261120
  %v50 = vsel %vm48, %v35, 0
  %52 = vmatprep.subr.mxu0 0.0
  %53 = vmatpush1.msra.mxu0 %v37
  %54 = vmatprep.subr.mxu0 0.0
  %55 = vmatpush1.msra.mxu0 %v38
  %56 = vmatprep.subr.mxu0 0.0
  %57 = vmatpush1.msra.mxu0 %v39
  %58 = vmatprep.subr.mxu0 0.0
  %59 = vmatpush1.msra.mxu0 %v40
  %60 = vmatprep.subr.mxu0 0.0
  %61 = vmatpush1.msra.mxu0 0.0
  %62 = vmatprep.subr.mxu0 0.0
  %63 = vmatpush1.msra.mxu0 0.0
  %64 = vmatprep.subr.mxu0 0.0
  %65 = vmatpush1.msra.mxu0 0.0
  %66 = vmatprep.subr.mxu0 0.0
  %67 = vmatpush1.msra.mxu0 0.0
  %68 = vmatprep.subr.mxu0 0.0
  %69 = vmatpush1.msra.mxu0 0.0
  %70 = vmatprep.subr.mxu0 0.0
  %71 = vmatpush1.msra.mxu0 0.0
  %72 = vmatprep.subr.mxu0 0.0
  %73 = vmatpush1.msra.mxu0 0.0
  %74 = vmatprep.subr.mxu0 0.0
  %75 = vmatpush1.msra.mxu0 0.0
  %76 = vmatprep.subr.mxu0 0.0
  %77 = vmatpush1.msra.mxu0 0.0
  %78 = vmatprep.subr.mxu0 0.0
  %79 = vmatpush1.msra.mxu0 0.0
  %80 = vmatprep.subr.mxu0 0.0
  %81 = vmatpush1.msra.mxu0 0.0
  %82 = vmatprep.subr.mxu0 0.0
  %83 = vmatpush1.msra.mxu0 0.0
  %84 = vmatprep.subr.mxu0 0.0
  %85 = vmatpush1.msra.mxu0 0.0
  %86 = vmatprep.subr.mxu0 0.0
  %87 = vmatpush1.msra.mxu0 0.0
  %88 = vmatprep.subr.mxu0 0.0
  %89 = vmatpush1.msra.mxu0 0.0
  %90 = vmatprep.subr.mxu0 0.0
  %91 = vmatpush1.msra.mxu0 0.0
  %92 = vmatprep.subr.mxu0 0.0
  %93 = vmatpush1.msra.mxu0 0.0
  %94 = vmatprep.subr.mxu0 0.0
  %95 = vmatpush1.msra.mxu0 0.0
  %96 = vmatprep.subr.mxu0 0.0
  %97 = vmatpush1.msra.mxu0 0.0
  %98 = vmatprep.subr.mxu0 0.0
  %99 = vmatpush1.msra.mxu0 0.0
  %100 = vmatprep.subr.mxu0 0.0
  %101 = vmatpush1.msra.mxu0 0.0
  %102 = vmatprep.subr.mxu0 0.0
  %103 = vmatpush1.msra.mxu0 0.0
  %104 = vmatprep.subr.mxu0 0.0
  %105 = vmatpush1.msra.mxu0 0.0
  %106 = vmatprep.subr.mxu0 0.0
  %107 = vmatpush1.msra.mxu0 0.0
  %108 = vmatprep.subr.mxu0 0.0
  %109 = vmatpush1.msra.mxu0 0.0
  %110 = vmatprep.subr.mxu0 0.0
  %111 = vmatpush1.msra.mxu0 0.0
  %112 = vmatprep.subr.mxu0 0.0
  %113 = vmatpush1.msra.mxu0 0.0
  %114 = vmatprep.subr.mxu0 0.0
  %115 = vmatpush1.msra.mxu0 0.0
  %116 = vmatprep.mubr.f32.mxu0 0.0
  %117 = vmatmul.mubr.f32.gmra.mrb[0].mxu0 %v50
  %v118 = vpop.f32.mrb[0].mxu0
  %v119 = vadd.f32 %v46, %v118
  %v120 = vpop.f32.mrb[0].mxu0
  %121 = vdwg.mxu0
  %v122 = vld [vmem:[%s4] sm:$0xff]
  %v123 = vld [vmem:[%s4 + $0x8] sm:$0xff]
  %v124 = vld [vmem:[%s4 + $0x10] sm:$0xff]
  %v125 = vld [vmem:[%s4 + $0x18] sm:$0xff]
  %v126 = vld [vmem:[%s5] sm:$0x1]
  %v128 = vlaneseq
  %v129 = vshrl.u32 %v128, 7
  %v130 = vsub.s32 0, %v129
  %v131 = vrot.slane %v126, %v130
  %v134 = vsel %vm48, %v36, 0
  %136 = vmatprep.subr.mxu0 0.0
  %137 = vmatpush1.msra.mxu0 %v122
  %138 = vmatprep.subr.mxu0 0.0
  %139 = vmatpush1.msra.mxu0 %v123
  %140 = vmatprep.subr.mxu0 0.0
  %141 = vmatpush1.msra.mxu0 %v124
  %142 = vmatprep.subr.mxu0 0.0
  %143 = vmatpush1.msra.mxu0 %v125
  %144 = vmatprep.subr.mxu0 0.0
  %145 = vmatpush1.msra.mxu0 0.0
  %146 = vmatprep.subr.mxu0 0.0
  %147 = vmatpush1.msra.mxu0 0.0
  %148 = vmatprep.subr.mxu0 0.0
  %149 = vmatpush1.msra.mxu0 0.0
  %150 = vmatprep.subr.mxu0 0.0
  %151 = vmatpush1.msra.mxu0 0.0
  %152 = vmatprep.subr.mxu0 0.0
  %153 = vmatpush1.msra.mxu0 0.0
  %154 = vmatprep.subr.mxu0 0.0
  %155 = vmatpush1.msra.mxu0 0.0
  %156 = vmatprep.subr.mxu0 0.0
  %157 = vmatpush1.msra.mxu0 0.0
  %158 = vmatprep.subr.mxu0 0.0
  %159 = vmatpush1.msra.mxu0 0.0
  %160 = vmatprep.subr.mxu0 0.0
  %161 = vmatpush1.msra.mxu0 0.0
  %162 = vmatprep.subr.mxu0 0.0
  %163 = vmatpush1.msra.mxu0 0.0
  %164 = vmatprep.subr.mxu0 0.0
  %165 = vmatpush1.msra.mxu0 0.0
  %166 = vmatprep.subr.mxu0 0.0
  %167 = vmatpush1.msra.mxu0 0.0
  %168 = vmatprep.subr.mxu0 0.0
  %169 = vmatpush1.msra.mxu0 0.0
  %170 = vmatprep.subr.mxu0 0.0
  %171 = vmatpush1.msra.mxu0 0.0
  %172 = vmatprep.subr.mxu0 0.0
  %173 = vmatpush1.msra.mxu0 0.0
  %174 = vmatprep.subr.mxu0 0.0
  %175 = vmatpush1.msra.mxu0 0.0
  %176 = vmatprep.subr.mxu0 0.0
  %177 = vmatpush1.msra.mxu0 0.0
  %178 = vmatprep.subr.mxu0 0.0
  %179 = vmatpush1.msra.mxu0 0.0
  %180 = vmatprep.subr.mxu0 0.0
  %181 = vmatpush1.msra.mxu0 0.0
  %182 = vmatprep.subr.mxu0 0.0
  %183 = vmatpush1.msra.mxu0 0.0
  %184 = vmatprep.subr.mxu0 0.0
  %185 = vmatpush1.msra.mxu0 0.0
  %186 = vmatprep.subr.mxu0 0.0
  %187 = vmatpush1.msra.mxu0 0.0
  %188 = vmatprep.subr.mxu0 0.0
  %189 = vmatpush1.msra.mxu0 0.0
  %190 = vmatprep.subr.mxu0 0.0
  %191 = vmatpush1.msra.mxu0 0.0
  %192 = vmatprep.subr.mxu0 0.0
  %193 = vmatpush1.msra.mxu0 0.0
  %194 = vmatprep.subr.mxu0 0.0
  %195 = vmatpush1.msra.mxu0 0.0
  %196 = vmatprep.subr.mxu0 0.0
  %197 = vmatpush1.msra.mxu0 0.0
  %198 = vmatprep.subr.mxu0 0.0
  %199 = vmatpush1.msra.mxu0 0.0
  %200 = vmatprep.mubr.f32.mxu0 0.0
  %201 = vmatmul.mubr.f32.gmra.mrb[0].mxu0 %v134
  %v202 = vpop.f32.mrb[0].mxu0
  %v203 = vadd.f32 %v131, %v202
  %v204 = vpop.f32.mrb[0].mxu0
  %205 = vdwg.mxu0
  %v206 = vld [vmem:[%s6] sm:$0xff]
  %v207 = vld [vmem:[%s6 + $0x8] sm:$0xff]
  %v208 = vld [vmem:[%s6 + $0x10] sm:$0xff]
  %v209 = vld [vmem:[%s6 + $0x18] sm:$0xff]
  %v210 = vld [vmem:[%s7] sm:$0x1]
  %v212 = vlaneseq
  %v213 = vshrl.u32 %v212, 7
  %v214 = vsub.s32 0, %v213
  %v215 = vrot.slane %v210, %v214
  %217 = vmatprep.subr.mxu0 0.0
  %218 = vmatpush1.msra.mxu0 %v206
  %219 = vmatprep.subr.mxu0 0.0
  %220 = vmatpush1.msra.mxu0 %v207
  %221 = vmatprep.subr.mxu0 0.0
  %222 = vmatpush1.msra.mxu0 %v208
  %223 = vmatprep.subr.mxu0 0.0
  %224 = vmatpush1.msra.mxu0 %v209
  %225 = vmatprep.subr.mxu0 0.0
  %226 = vmatpush1.msra.mxu0 0.0
  %227 = vmatprep.subr.mxu0 0.0
  %228 = vmatpush1.msra.mxu0 0.0
  %229 = vmatprep.subr.mxu0 0.0
  %230 = vmatpush1.msra.mxu0 0.0
  %231 = vmatprep.subr.mxu0 0.0
  %232 = vmatpush1.msra.mxu0 0.0
  %233 = vmatprep.subr.mxu0 0.0
  %234 = vmatpush1.msra.mxu0 0.0
  %235 = vmatprep.subr.mxu0 0.0
  %236 = vmatpush1.msra.mxu0 0.0
  %237 = vmatprep.subr.mxu0 0.0
  %238 = vmatpush1.msra.mxu0 0.0
  %239 = vmatprep.subr.mxu0 0.0
  %240 = vmatpush1.msra.mxu0 0.0
  %241 = vmatprep.subr.mxu0 0.0
  %242 = vmatpush1.msra.mxu0 0.0
  %243 = vmatprep.subr.mxu0 0.0
  %244 = vmatpush1.msra.mxu0 0.0
  %245 = vmatprep.subr.mxu0 0.0
  %246 = vmatpush1.msra.mxu0 0.0
  %247 = vmatprep.subr.mxu0 0.0
  %248 = vmatpush1.msra.mxu0 0.0
  %249 = vmatprep.subr.mxu0 0.0
  %250 = vmatpush1.msra.mxu0 0.0
  %251 = vmatprep.subr.mxu0 0.0
  %252 = vmatpush1.msra.mxu0 0.0
  %253 = vmatprep.subr.mxu0 0.0
  %254 = vmatpush1.msra.mxu0 0.0
  %255 = vmatprep.subr.mxu0 0.0
  %256 = vmatpush1.msra.mxu0 0.0
  %257 = vmatprep.subr.mxu0 0.0
  %258 = vmatpush1.msra.mxu0 0.0
  %259 = vmatprep.subr.mxu0 0.0
  %260 = vmatpush1.msra.mxu0 0.0
  %261 = vmatprep.subr.mxu0 0.0
  %262 = vmatpush1.msra.mxu0 0.0
  %263 = vmatprep.subr.mxu0 0.0
  %264 = vmatpush1.msra.mxu0 0.0
  %265 = vmatprep.subr.mxu0 0.0
  %266 = vmatpush1.msra.mxu0 0.0
  %267 = vmatprep.subr.mxu0 0.0
  %268 = vmatpush1.msra.mxu0 0.0
  %269 = vmatprep.subr.mxu0 0.0
  %270 = vmatpush1.msra.mxu0 0.0
  %271 = vmatprep.subr.mxu0 0.0
  %272 = vmatpush1.msra.mxu0 0.0
  %273 = vmatprep.subr.mxu0 0.0
  %274 = vmatpush1.msra.mxu0 0.0
  %275 = vmatprep.subr.mxu0 0.0
  %276 = vmatpush1.msra.mxu0 0.0
  %277 = vmatprep.subr.mxu0 0.0
  %278 = vmatpush1.msra.mxu0 0.0
  %279 = vmatprep.subr.mxu0 0.0
  %280 = vmatpush1.msra.mxu0 0.0
  %281 = vmatprep.mubr.f32.mxu0 0.0
  %282 = vmatmul.mubr.f32.gmra.mrb[0].mxu0 %v134
  %v283 = vpop.f32.mrb[0].mxu0
  %v284 = vadd.f32 %v215, %v283
  %v285 = vpop.f32.mrb[0].mxu0
  %286 = vdwg.mxu0
  %vm287 = vcmask 130048
  %v289 = vsel %vm287, %v119, 0
  %v292 = vsel %vm287, %v203, 0
  %294 = vmatprep.subr.mxu0 0.0
  %295 = vmatpush1.xpose.msra.mxu0 %v292
  %296 = vmatprep.subr.mxu0 0.0
  %297 = vmatpush1.xpose.msra.mxu0 0.0
  %298 = vmatprep.subr.mxu0 0.0
  %299 = vmatpush1.xpose.msra.mxu0 0.0
  %300 = vmatprep.subr.mxu0 0.0
  %301 = vmatpush1.xpose.msra.mxu0 0.0
  %302 = vmatprep.subr.mxu0 0.0
  %303 = vmatpush1.xpose.msra.mxu0 0.0
  %304 = vmatprep.subr.mxu0 0.0
  %305 = vmatpush1.xpose.msra.mxu0 0.0
  %306 = vmatprep.subr.mxu0 0.0
  %307 = vmatpush1.xpose.msra.mxu0 0.0
  %308 = vmatprep.subr.mxu0 0.0
  %309 = vmatpush1.xpose.msra.mxu0 0.0
  %310 = vmatprep.subr.mxu0 0.0
  %311 = vmatpush1.xpose.msra.mxu0 0.0
  %312 = vmatprep.subr.mxu0 0.0
  %313 = vmatpush1.xpose.msra.mxu0 0.0
  %314 = vmatprep.subr.mxu0 0.0
  %315 = vmatpush1.xpose.msra.mxu0 0.0
  %316 = vmatprep.subr.mxu0 0.0
  %317 = vmatpush1.xpose.msra.mxu0 0.0
  %318 = vmatprep.subr.mxu0 0.0
  %319 = vmatpush1.xpose.msra.mxu0 0.0
  %320 = vmatprep.subr.mxu0 0.0
  %321 = vmatpush1.xpose.msra.mxu0 0.0
  %322 = vmatprep.subr.mxu0 0.0
  %323 = vmatpush1.xpose.msra.mxu0 0.0
  %324 = vmatprep.subr.mxu0 0.0
  %325 = vmatpush1.xpose.msra.mxu0 0.0
  %326 = vmatprep.subr.mxu0 0.0
  %327 = vmatpush1.xpose.msra.mxu0 0.0
  %328 = vmatprep.subr.mxu0 0.0
  %329 = vmatpush1.xpose.msra.mxu0 0.0
  %330 = vmatprep.subr.mxu0 0.0
  %331 = vmatpush1.xpose.msra.mxu0 0.0
  %332 = vmatprep.subr.mxu0 0.0
  %333 = vmatpush1.xpose.msra.mxu0 0.0
  %334 = vmatprep.subr.mxu0 0.0
  %335 = vmatpush1.xpose.msra.mxu0 0.0
  %336 = vmatprep.subr.mxu0 0.0
  %337 = vmatpush1.xpose.msra.mxu0 0.0
  %338 = vmatprep.subr.mxu0 0.0
  %339 = vmatpush1.xpose.msra.mxu0 0.0
  %340 = vmatprep.subr.mxu0 0.0
  %341 = vmatpush1.xpose.msra.mxu0 0.0
  %342 = vmatprep.subr.mxu0 0.0
  %343 = vmatpush1.xpose.msra.mxu0 0.0
  %344 = vmatprep.subr.mxu0 0.0
  %345 = vmatpush1.xpose.msra.mxu0 0.0
  %346 = vmatprep.subr.mxu0 0.0
  %347 = vmatpush1.xpose.msra.mxu0 0.0
  %348 = vmatprep.subr.mxu0 0.0
  %349 = vmatpush1.xpose.msra.mxu0 0.0
  %350 = vmatprep.subr.mxu0 0.0
  %351 = vmatpush1.xpose.msra.mxu0 0.0
  %352 = vmatprep.subr.mxu0 0.0
  %353 = vmatpush1.xpose.msra.mxu0 0.0
  %354 = vmatprep.subr.mxu0 0.0
  %355 = vmatpush1.xpose.msra.mxu0 0.0
  %356 = vmatprep.subr.mxu0 0.0
  %357 = vmatpush1.xpose.msra.mxu0 0.0
  %358 = vmatprep.mubr.f32.mxu0 0.0
  %359 = vmatmul.mubr.f32.gmra.mrb[0].mxu0 %v289
  %v360 = vpop.f32.mrb[0].mxu0
  %v361 = vadd.f32 0.0, %v360
  %v362 = vpop.f32.mrb[0].mxu0
  %363 = vdwg.mxu0
  %v364 = vmul.f32 %v361, 0.25
  %vm365 = vcmask 23552
  %v366 = vsel %vm365, %v364, -inf
  %367 = vmax.xlane.f32.xlu0 %v366
  %v368 = vpop.xlane.xlu0 %367
  %v369 = vsub.f32 %v364, %v368
  %v370 = vmul.f32 %v369, 1.442695
  %v371 = vpow.pop %v370
  %v372 = vsel %vm365, %v371, 0.0
  %373 = vadd.xlane.f32.xlu0 %v372
  %v374 = vpop.xlane.xlu0 %373
  %v375 = vrcp.pop %v374
  %v376 = vmul.f32 %v371, %v375
  %v378 = vsel %vm365, %v376, 0
  %vm380 = vcmask 1042432
  %v382 = vsel %vm380, %v284, 0
  %384 = vmatprep.subr.mxu0 0.0
  %385 = vmatpush1.msra.mxu0 %v382
  %386 = vmatprep.subr.mxu0 0.0
  %387 = vmatpush1.msra.mxu0 0.0
  %388 = vmatprep.subr.mxu0 0.0
  %389 = vmatpush1.msra.mxu0 0.0
  %390 = vmatprep.subr.mxu0 0.0
  %391 = vmatpush1.msra.mxu0 0.0
  %392 = vmatprep.subr.mxu0 0.0
  %393 = vmatpush1.msra.mxu0 0.0
  %394 = vmatprep.subr.mxu0 0.0
  %395 = vmatpush1.msra.mxu0 0.0
  %396 = vmatprep.subr.mxu0 0.0
  %397 = vmatpush1.msra.mxu0 0.0
  %398 = vmatprep.subr.mxu0 0.0
  %399 = vmatpush1.msra.mxu0 0.0
  %400 = vmatprep.subr.mxu0 0.0
  %401 = vmatpush1.msra.mxu0 0.0
  %402 = vmatprep.subr.mxu0 0.0
  %403 = vmatpush1.msra.mxu0 0.0
  %404 = vmatprep.subr.mxu0 0.0
  %405 = vmatpush1.msra.mxu0 0.0
  %406 = vmatprep.subr.mxu0 0.0
  %407 = vmatpush1.msra.mxu0 0.0
  %408 = vmatprep.subr.mxu0 0.0
  %409 = vmatpush1.msra.mxu0 0.0
  %410 = vmatprep.subr.mxu0 0.0
  %411 = vmatpush1.msra.mxu0 0.0
  %412 = vmatprep.subr.mxu0 0.0
  %413 = vmatpush1.msra.mxu0 0.0
  %414 = vmatprep.subr.mxu0 0.0
  %415 = vmatpush1.msra.mxu0 0.0
  %416 = vmatprep.subr.mxu0 0.0
  %417 = vmatpush1.msra.mxu0 0.0
  %418 = vmatprep.subr.mxu0 0.0
  %419 = vmatpush1.msra.mxu0 0.0
  %420 = vmatprep.subr.mxu0 0.0
  %421 = vmatpush1.msra.mxu0 0.0
  %422 = vmatprep.subr.mxu0 0.0
  %423 = vmatpush1.msra.mxu0 0.0
  %424 = vmatprep.subr.mxu0 0.0
  %425 = vmatpush1.msra.mxu0 0.0
  %426 = vmatprep.subr.mxu0 0.0
  %427 = vmatpush1.msra.mxu0 0.0
  %428 = vmatprep.subr.mxu0 0.0
  %429 = vmatpush1.msra.mxu0 0.0
  %430 = vmatprep.subr.mxu0 0.0
  %431 = vmatpush1.msra.mxu0 0.0
  %432 = vmatprep.subr.mxu0 0.0
  %433 = vmatpush1.msra.mxu0 0.0
  %434 = vmatprep.subr.mxu0 0.0
  %435 = vmatpush1.msra.mxu0 0.0
  %436 = vmatprep.subr.mxu0 0.0
  %437 = vmatpush1.msra.mxu0 0.0
  %438 = vmatprep.subr.mxu0 0.0
  %439 = vmatpush1.msra.mxu0 0.0
  %440 = vmatprep.subr.mxu0 0.0
  %441 = vmatpush1.msra.mxu0 0.0
  %442 = vmatprep.subr.mxu0 0.0
  %443 = vmatpush1.msra.mxu0 0.0
  %444 = vmatprep.subr.mxu0 0.0
  %445 = vmatpush1.msra.mxu0 0.0
  %446 = vmatprep.subr.mxu0 0.0
  %447 = vmatpush1.msra.mxu0 0.0
  %448 = vmatprep.mubr.f32.mxu0 0.0
  %449 = vmatmul.mubr.f32.gmra.mrb[0].mxu0 %v378
  %v450 = vpop.f32.mrb[0].mxu0
  %v451 = vadd.f32 0.0, %v450
  %v452 = vpop.f32.mrb[0].mxu0
  %453 = vdwg.mxu0
  %454 = vrot.lane.b32.xlu0 %v119, 112
  %v455 = vpop.permute.xlu0 %454
  %456 = vrot.lane.b32.xlu0 %v203, 112
  %v457 = vpop.permute.xlu0 %456
  %v458 = vsel %vm287, %v455, 0
  %v460 = vsel %vm287, %v457, 0
  %462 = vmatprep.subr.mxu0 0.0
  %463 = vmatpush1.xpose.msra.mxu0 %v460
  %464 = vmatprep.subr.mxu0 0.0
  %465 = vmatpush1.xpose.msra.mxu0 0.0
  %466 = vmatprep.subr.mxu0 0.0
  %467 = vmatpush1.xpose.msra.mxu0 0.0
  %468 = vmatprep.subr.mxu0 0.0
  %469 = vmatpush1.xpose.msra.mxu0 0.0
  %470 = vmatprep.subr.mxu0 0.0
  %471 = vmatpush1.xpose.msra.mxu0 0.0
  %472 = vmatprep.subr.mxu0 0.0
  %473 = vmatpush1.xpose.msra.mxu0 0.0
  %474 = vmatprep.subr.mxu0 0.0
  %475 = vmatpush1.xpose.msra.mxu0 0.0
  %476 = vmatprep.subr.mxu0 0.0
  %477 = vmatpush1.xpose.msra.mxu0 0.0
  %478 = vmatprep.subr.mxu0 0.0
  %479 = vmatpush1.xpose.msra.mxu0 0.0
  %480 = vmatprep.subr.mxu0 0.0
  %481 = vmatpush1.xpose.msra.mxu0 0.0
  %482 = vmatprep.subr.mxu0 0.0
  %483 = vmatpush1.xpose.msra.mxu0 0.0
  %484 = vmatprep.subr.mxu0 0.0
  %485 = vmatpush1.xpose.msra.mxu0 0.0
  %486 = vmatprep.subr.mxu0 0.0
  %487 = vmatpush1.xpose.msra.mxu0 0.0
  %488 = vmatprep.subr.mxu0 0.0
  %489 = vmatpush1.xpose.msra.mxu0 0.0
  %490 = vmatprep.subr.mxu0 0.0
  %491 = vmatpush1.xpose.msra.mxu0 0.0
  %492 = vmatprep.subr.mxu0 0.0
  %493 = vmatpush1.xpose.msra.mxu0 0.0
  %494 = vmatprep.subr.mxu0 0.0
  %495 = vmatpush1.xpose.msra.mxu0 0.0
  %496 = vmatprep.subr.mxu0 0.0
  %497 = vmatpush1.xpose.msra.mxu0 0.0
  %498 = vmatprep.subr.mxu0 0.0
  %499 = vmatpush1.xpose.msra.mxu0 0.0
  %500 = vmatprep.subr.mxu0 0.0
  %501 = vmatpush1.xpose.msra.mxu0 0.0
  %502 = vmatprep.subr.mxu0 0.0
  %503 = vmatpush1.xpose.msra.mxu0 0.0
  %504 = vmatprep.subr.mxu0 0.0
  %505 = vmatpush1.xpose.msra.mxu0 0.0
  %506 = vmatprep.subr.mxu0 0.0
  %507 = vmatpush1.xpose.msra.mxu0 0.0
  %508 = vmatprep.subr.mxu0 0.0
  %509 = vmatpush1.xpose.msra.mxu0 0.0
  %510 = vmatprep.subr.mxu0 0.0
  %511 = vmatpush1.xpose.msra.mxu0 0.0
  %512 = vmatprep.subr.mxu0 0.0
  %513 = vmatpush1.xpose.msra.mxu0 0.0
  %514 = vmatprep.subr.mxu0 0.0
  %515 = vmatpush1.xpose.msra.mxu0 0.0
  %516 = vmatprep.subr.mxu0 0.0
  %517 = vmatpush1.xpose.msra.mxu0 0.0
  %518 = vmatprep.subr.mxu0 0.0
  %519 = vmatpush1.xpose.msra.mxu0 0.0
  %520 = vmatprep.subr.mxu0 0.0
  %521 = vmatpush1.xpose.msra.mxu0 0.0
  %522 = vmatprep.subr.mxu0 0.0
  %523 = vmatpush1.xpose.msra.mxu0 0.0
  %524 = vmatprep.subr.mxu0 0.0
  %525 = vmatpush1.xpose.msra.mxu0 0.0
  %526 = vmatprep.mubr.f32.mxu0 0.0
  %527 = vmatmul.mubr.f32.gmra.mrb[0].mxu0 %v458
  %v528 = vpop.f32.mrb[0].mxu0
  %v529 = vadd.f32 0.0, %v528
  %v530 = vpop.f32.mrb[0].mxu0
  %531 = vdwg.mxu0
  %v532 = vmul.f32 %v529, 0.25
  %v533 = vsel %vm365, %v532, -inf
  %534 = vmax.xlane.f32.xlu0 %v533
  %v535 = vpop.xlane.xlu0 %534
  %v536 = vsub.f32 %v532, %v535
  %v537 = vmul.f32 %v536, 1.442695
  %v538 = vpow.pop %v537
  %v539 = vsel %vm365, %v538, 0.0
  %540 = vadd.xlane.f32.xlu0 %v539
  %v541 = vpop.xlane.xlu0 %540
  %v542 = vrcp.pop %v541
  %v543 = vmul.f32 %v538, %v542
  %544 = vrot.lane.b32.xlu0 %v284, 112
  %v545 = vpop.permute.xlu0 %544
  %v547 = vsel %vm365, %v543, 0
  %v549 = vsel %vm380, %v545, 0
  %551 = vmatprep.subr.mxu0 0.0
  %552 = vmatpush1.msra.mxu0 %v549
  %553 = vmatprep.subr.mxu0 0.0
  %554 = vmatpush1.msra.mxu0 0.0
  %555 = vmatprep.subr.mxu0 0.0
  %556 = vmatpush1.msra.mxu0 0.0
  %557 = vmatprep.subr.mxu0 0.0
  %558 = vmatpush1.msra.mxu0 0.0
  %559 = vmatprep.subr.mxu0 0.0
  %560 = vmatpush1.msra.mxu0 0.0
  %561 = vmatprep.subr.mxu0 0.0
  %562 = vmatpush1.msra.mxu0 0.0
  %563 = vmatprep.subr.mxu0 0.0
  %564 = vmatpush1.msra.mxu0 0.0
  %565 = vmatprep.subr.mxu0 0.0
  %566 = vmatpush1.msra.mxu0 0.0
  %567 = vmatprep.subr.mxu0 0.0
  %568 = vmatpush1.msra.mxu0 0.0
  %569 = vmatprep.subr.mxu0 0.0
  %570 = vmatpush1.msra.mxu0 0.0
  %571 = vmatprep.subr.mxu0 0.0
  %572 = vmatpush1.msra.mxu0 0.0
  %573 = vmatprep.subr.mxu0 0.0
  %574 = vmatpush1.msra.mxu0 0.0
  %575 = vmatprep.subr.mxu0 0.0
  %576 = vmatpush1.msra.mxu0 0.0
  %577 = vmatprep.subr.mxu0 0.0
  %578 = vmatpush1.msra.mxu0 0.0
  %579 = vmatprep.subr.mxu0 0.0
  %580 = vmatpush1.msra.mxu0 0.0
  %581 = vmatprep.subr.mxu0 0.0
  %582 = vmatpush1.msra.mxu0 0.0
  %583 = vmatprep.subr.mxu0 0.0
  %584 = vmatpush1.msra.mxu0 0.0
  %585 = vmatprep.subr.mxu0 0.0
  %586 = vmatpush1.msra.mxu0 0.0
  %587 = vmatprep.subr.mxu0 0.0
  %588 = vmatpush1.msra.mxu0 0.0
  %589 = vmatprep.subr.mxu0 0.0
  %590 = vmatpush1.msra.mxu0 0.0
  %591 = vmatprep.subr.mxu0 0.0
  %592 = vmatpush1.msra.mxu0 0.0
  %593 = vmatprep.subr.mxu0 0.0
  %594 = vmatpush1.msra.mxu0 0.0
  %595 = vmatprep.subr.mxu0 0.0
  %596 = vmatpush1.msra.mxu0 0.0
  %597 = vmatprep.subr.mxu0 0.0
  %598 = vmatpush1.msra.mxu0 0.0
  %599 = vmatprep.subr.mxu0 0.0
  %600 = vmatpush1.msra.mxu0 0.0
  %601 = vmatprep.subr.mxu0 0.0
  %602 = vmatpush1.msra.mxu0 0.0
  %603 = vmatprep.subr.mxu0 0.0
  %604 = vmatpush1.msra.mxu0 0.0
  %605 = vmatprep.subr.mxu0 0.0
  %606 = vmatpush1.msra.mxu0 0.0
  %607 = vmatprep.subr.mxu0 0.0
  %608 = vmatpush1.msra.mxu0 0.0
  %609 = vmatprep.subr.mxu0 0.0
  %610 = vmatpush1.msra.mxu0 0.0
  %611 = vmatprep.subr.mxu0 0.0
  %612 = vmatpush1.msra.mxu0 0.0
  %613 = vmatprep.subr.mxu0 0.0
  %614 = vmatpush1.msra.mxu0 0.0
  %615 = vmatprep.mubr.f32.mxu0 0.0
  %616 = vmatmul.mubr.f32.gmra.mrb[0].mxu0 %v547
  %v617 = vpop.f32.mrb[0].mxu0
  %v618 = vadd.f32 0.0, %v617
  %v619 = vpop.f32.mrb[0].mxu0
  %620 = vdwg.mxu0
  %622 = vrot.lane.b32.xlu0 %v618, 16
  %v623 = vpop.permute.xlu0 %622
  %v625 = vsel %vm287, %v451, %v623
  %v626 = vld [vmem:[%s8] sm:$0xff]
  %v627 = vld [vmem:[%s8 + $0x8] sm:$0xff]
  %v628 = vld [vmem:[%s8 + $0x10] sm:$0xff]
  %v629 = vld [vmem:[%s8 + $0x18] sm:$0xff]
  %v630 = vld [vmem:[%s9] sm:$0x1]
  %v632 = vlaneseq
  %v633 = vshrl.u32 %v632, 7
  %v634 = vsub.s32 0, %v633
  %v635 = vrot.slane %v630, %v634
  %v638 = vsel %vm48, %v625, 0
  %640 = vmatprep.subr.mxu0 0.0
  %641 = vmatpush1.msra.mxu0 %v626
  %642 = vmatprep.subr.mxu0 0.0
  %643 = vmatpush1.msra.mxu0 %v627
  %644 = vmatprep.subr.mxu0 0.0
  %645 = vmatpush1.msra.mxu0 %v628
  %646 = vmatprep.subr.mxu0 0.0
  %647 = vmatpush1.msra.mxu0 %v629
  %648 = vmatprep.subr.mxu0 0.0
  %649 = vmatpush1.msra.mxu0 0.0
  %650 = vmatprep.subr.mxu0 0.0
  %651 = vmatpush1.msra.mxu0 0.0
  %652 = vmatprep.subr.mxu0 0.0
  %653 = vmatpush1.msra.mxu0 0.0
  %654 = vmatprep.subr.mxu0 0.0
  %655 = vmatpush1.msra.mxu0 0.0
  %656 = vmatprep.subr.mxu0 0.0
  %657 = vmatpush1.msra.mxu0 0.0
  %658 = vmatprep.subr.mxu0 0.0
  %659 = vmatpush1.msra.mxu0 0.0
  %660 = vmatprep.subr.mxu0 0.0
  %661 = vmatpush1.msra.mxu0 0.0
  %662 = vmatprep.subr.mxu0 0.0
  %663 = vmatpush1.msra.mxu0 0.0
  %664 = vmatprep.subr.mxu0 0.0
  %665 = vmatpush1.msra.mxu0 0.0
  %666 = vmatprep.subr.mxu0 0.0
  %667 = vmatpush1.msra.mxu0 0.0
  %668 = vmatprep.subr.mxu0 0.0
  %669 = vmatpush1.msra.mxu0 0.0
  %670 = vmatprep.subr.mxu0 0.0
  %671 = vmatpush1.msra.mxu0 0.0
  %672 = vmatprep.subr.mxu0 0.0
  %673 = vmatpush1.msra.mxu0 0.0
  %674 = vmatprep.subr.mxu0 0.0
  %675 = vmatpush1.msra.mxu0 0.0
  %676 = vmatprep.subr.mxu0 0.0
  %677 = vmatpush1.msra.mxu0 0.0
  %678 = vmatprep.subr.mxu0 0.0
  %679 = vmatpush1.msra.mxu0 0.0
  %680 = vmatprep.subr.mxu0 0.0
  %681 = vmatpush1.msra.mxu0 0.0
  %682 = vmatprep.subr.mxu0 0.0
  %683 = vmatpush1.msra.mxu0 0.0
  %684 = vmatprep.subr.mxu0 0.0
  %685 = vmatpush1.msra.mxu0 0.0
  %686 = vmatprep.subr.mxu0 0.0
  %687 = vmatpush1.msra.mxu0 0.0
  %688 = vmatprep.subr.mxu0 0.0
  %689 = vmatpush1.msra.mxu0 0.0
  %690 = vmatprep.subr.mxu0 0.0
  %691 = vmatpush1.msra.mxu0 0.0
  %692 = vmatprep.subr.mxu0 0.0
  %693 = vmatpush1.msra.mxu0 0.0
  %694 = vmatprep.subr.mxu0 0.0
  %695 = vmatpush1.msra.mxu0 0.0
  %696 = vmatprep.subr.mxu0 0.0
  %697 = vmatpush1.msra.mxu0 0.0
  %698 = vmatprep.subr.mxu0 0.0
  %699 = vmatpush1.msra.mxu0 0.0
  %700 = vmatprep.subr.mxu0 0.0
  %701 = vmatpush1.msra.mxu0 0.0
  %702 = vmatprep.subr.mxu0 0.0
  %703 = vmatpush1.msra.mxu0 0.0
  %704 = vmatprep.mubr.f32.mxu0 0.0
  %705 = vmatmul.mubr.f32.gmra.mrb[0].mxu0 %v638
  %v706 = vpop.f32.mrb[0].mxu0
  %v707 = vadd.f32 %v635, %v706
  %v708 = vpop.f32.mrb[0].mxu0
  %709 = vdwg.mxu0
  %710 = vst.msk [vmem:[%s10] sm:$0xff] %vm48, %v707
  // Predicated region
  $region42: #{_forward.9} parent=0 // pred_check
    _
  $region43: #{_forward.9} parent=0 // pred_check_branch
    %712 = sbr.rel (0) target = $region45
  $region44: #{_forward.9} parent=0 // pred_region
    _
  $region45: #{_forward.9} parent=0 // pred_fallthru
    _
  // Predicated region
  $region46: #{_forward.9} parent=0 // pred_check
    _
  $region47: #{_forward.9} parent=0 // pred_check_branch
    %714 = sbr.rel (0) target = $region49
  $region48: #{_forward.9} parent=0 // pred_region
    _
  $region49: #{_forward.9} parent=0 // pred_fallthru
    _

// kernel: _forward.8
$region0: #{_forward.8}
  #allocation0 [shape = 'u32[]', space=smem, size = 0x4, offset = 0x4, fixed_abs, tag = 'smem constant byte address 0x4 - core index']
  #allocation1 [shape = 'u32[144,128]{1,0:T(1,128)}', space=vmem, size = 0x12000, scoped, tag = 'internal scratch']
  %s0 = inlined_call_operand.vmem [shape: bf16[3,768], index: 0, kind: input, shape index: {}]
  %s1 = inlined_call_operand.vmem [shape: bf16[768,64], index: 1, kind: input, shape index: {}]
  %s2 = inlined_call_operand.vmem [shape: f32[1,64], index: 2, kind: input, shape index: {}]
  %s3 = inlined_call_operand.vmem [shape: bf16[64,32], index: 3, kind: input, shape index: {}]
  %s4 = inlined_call_operand.vmem [shape: f32[1,32], index: 4, kind: input, shape index: {}]
  %s5 = inlined_call_operand.vmem [shape: f32[1,32], index: 5, kind: input, shape index: {}]
  %s6 = inlined_call_operand.vmem [shape: f32[1,32], index: 6, kind: input, shape index: {}]
  %s7 = inlined_call_operand.vmem [shape: f32[3,32], index: 7, kind: output, shape index: {}]
  %s8 = sld [smem:[#allocation0]]
  $region38: #{_forward.8} parent=0
    _
  %s10 = ssub.s32 1, %s8
  %s11 = scalar_select 0, %s10, %s8
  // Predicated region
  $region2: #{_forward.8} parent=0 // pred_check
    _
  $region3: #{_forward.8} parent=0 // pred_check_branch
    %13 = sbr.rel (0) target = $region5
  $region4: #{_forward.8} parent=0 // pred_region
    _
  $region5: #{_forward.8} parent=0 // pred_fallthru
    _
  // Predicated region
  $region6: #{_forward.8} parent=0 // pred_check
    _
  $region7: #{_forward.8} parent=0 // pred_check_branch
    %15 = sbr.rel (0) target = $region9
  $region8: #{_forward.8} parent=0 // pred_region
    _
  $region9: #{_forward.8} parent=0 // pred_fallthru
    _
  // Predicated region
  $region10: #{_forward.8} parent=0 // pred_check
    _
  $region11: #{_forward.8} parent=0 // pred_check_branch
    %17 = sbr.rel (0) target = $region13
  $region12: #{_forward.8} parent=0 // pred_region
    _
  $region13: #{_forward.8} parent=0 // pred_fallthru
    _
  // Predicated region
  $region14: #{_forward.8} parent=0 // pred_check
    _
  $region15: #{_forward.8} parent=0 // pred_check_branch
    %19 = sbr.rel (0) target = $region17
  $region16: #{_forward.8} parent=0 // pred_region
    _
  $region17: #{_forward.8} parent=0 // pred_fallthru
    _
  // Predicated region
  $region18: #{_forward.8} parent=0 // pred_check
    _
  $region19: #{_forward.8} parent=0 // pred_check_branch
    %21 = sbr.rel (0) target = $region21
  $region20: #{_forward.8} parent=0 // pred_region
    _
  $region21: #{_forward.8} parent=0 // pred_fallthru
    _
  // Predicated region
  $region22: #{_forward.8} parent=0 // pred_check
    _
  $region23: #{_forward.8} parent=0 // pred_check_branch
    %23 = sbr.rel (0) target = $region25
  $region24: #{_forward.8} parent=0 // pred_region
    _
  $region25: #{_forward.8} parent=0 // pred_fallthru
    _
  // Predicated region
  $region26: #{_forward.8} parent=0 // pred_check
    _
  $region27: #{_forward.8} parent=0 // pred_check_branch
    %25 = sbr.rel (0) target = $region29
  $region28: #{_forward.8} parent=0 // pred_region
    _
  $region29: #{_forward.8} parent=0 // pred_fallthru
    _
  %v27 = vld [vmem:[%s0] sm:$0xff]
  %v28 = vld [vmem:[%s0 + $0x8] sm:$0xf]
  %v29 = vld [vmem:[%s1] sm:$0xf]
  %v30 = vld [vmem:[%s1 + $0x4] sm:$0xf]
  %v31 = vld [vmem:[%s1 + $0x8] sm:$0xf]
  %v32 = vld [vmem:[%s1 + $0xc] sm:$0xf]
  %v33 = vld [vmem:[%s1 + $0x10] sm:$0xf]
  %v34 = vld [vmem:[%s1 + $0x14] sm:$0xf]
  %v35 = vld [vmem:[%s1 + $0x18] sm:$0xf]
  %v36 = vld [vmem:[%s1 + $0x1c] sm:$0xf]
  %v37 = vld [vmem:[%s1 + $0x20] sm:$0xf]
  %v38 = vld [vmem:[%s1 + $0x24] sm:$0xf]
  %v39 = vld [vmem:[%s1 + $0x28] sm:$0xf]
  %v40 = vld [vmem:[%s1 + $0x2c] sm:$0xf]
  %v41 = vld [vmem:[%s1 + $0x30] sm:$0xf]
  %v42 = vld [vmem:[%s1 + $0x34] sm:$0xf]
  %v43 = vld [vmem:[%s1 + $0x38] sm:$0xf]
  %v44 = vld [vmem:[%s1 + $0x3c] sm:$0xf]
  %v45 = vld [vmem:[%s1 + $0x40] sm:$0xf]
  %v46 = vld [vmem:[%s1 + $0x44] sm:$0xf]
  %v47 = vld [vmem:[%s1 + $0x48] sm:$0xf]
  %v48 = vld [vmem:[%s1 + $0x4c] sm:$0xf]
  %v49 = vld [vmem:[%s1 + $0x50] sm:$0xf]
  %v50 = vld [vmem:[%s1 + $0x54] sm:$0xf]
  %v51 = vld [vmem:[%s1 + $0x58] sm:$0xf]
  %v52 = vld [vmem:[%s1 + $0x5c] sm:$0xf]
  %v53 = vld [vmem:[%s1 + $0x60] sm:$0xf]
  %v54 = vld [vmem:[%s1 + $0x64] sm:$0xf]
  %v55 = vld [vmem:[%s1 + $0x68] sm:$0xf]
  %v56 = vld [vmem:[%s1 + $0x6c] sm:$0xf]
  %v57 = vld [vmem:[%s1 + $0x70] sm:$0xf]
  %v58 = vld [vmem:[%s1 + $0x74] sm:$0xf]
  %v59 = vld [vmem:[%s1 + $0x78] sm:$0xf]
  %v60 = vld [vmem:[%s1 + $0x7c] sm:$0xf]
  %v61 = vld [vmem:[%s1 + $0x80] sm:$0xf]
  %v62 = vld [vmem:[%s1 + $0x84] sm:$0xf]
  %v63 = vld [vmem:[%s1 + $0x88] sm:$0xf]
  %v64 = vld [vmem:[%s1 + $0x8c] sm:$0xf]
  %v65 = vld [vmem:[%s1 + $0x90] sm:$0xf]
  %v66 = vld [vmem:[%s1 + $0x94] sm:$0xf]
  %v67 = vld [vmem:[%s1 + $0x98] sm:$0xf]
  %v68 = vld [vmem:[%s1 + $0x9c] sm:$0xf]
  %v69 = vld [vmem:[%s1 + $0xa0] sm:$0xf]
  %v70 = vld [vmem:[%s1 + $0xa4] sm:$0xf]
  %v71 = vld [vmem:[%s1 + $0xa8] sm:$0xf]
  %v72 = vld [vmem:[%s1 + $0xac] sm:$0xf]
  %v73 = vld [vmem:[%s1 + $0xb0] sm:$0xf]
  %v74 = vld [vmem:[%s1 + $0xb4] sm:$0xf]
  %v75 = vld [vmem:[%s1 + $0xb8] sm:$0xf]
  %v76 = vld [vmem:[%s1 + $0xbc] sm:$0xf]
  %v77 = vld [vmem:[%s1 + $0xc0] sm:$0xf]
  %v78 = vld [vmem:[%s1 + $0xc4] sm:$0xf]
  %v79 = vld [vmem:[%s1 + $0xc8] sm:$0xf]
  %v80 = vld [vmem:[%s1 + $0xcc] sm:$0xf]
  %v81 = vld [vmem:[%s1 + $0xd0] sm:$0xf]
  %v82 = vld [vmem:[%s1 + $0xd4] sm:$0xf]
  %v83 = vld [vmem:[%s1 + $0xd8] sm:$0xf]
  %v84 = vld [vmem:[%s1 + $0xdc] sm:$0xf]
  %v85 = vld [vmem:[%s1 + $0xe0] sm:$0xf]
  %v86 = vld [vmem:[%s1 + $0xe4] sm:$0xf]
  %v87 = vld [vmem:[%s1 + $0xe8] sm:$0xf]
  %v88 = vld [vmem:[%s1 + $0xec] sm:$0xf]
  %v89 = vld [vmem:[%s1 + $0xf0] sm:$0xf]
  %v90 = vld [vmem:[%s1 + $0xf4] sm:$0xf]
  %v91 = vld [vmem:[%s1 + $0xf8] sm:$0xf]
  %v92 = vld [vmem:[%s1 + $0xfc] sm:$0xf]
  %v93 = vld [vmem:[%s1 + $0x100] sm:$0xf]
  %v94 = vld [vmem:[%s1 + $0x104] sm:$0xf]
  %v95 = vld [vmem:[%s1 + $0x108] sm:$0xf]
  %v96 = vld [vmem:[%s1 + $0x10c] sm:$0xf]
  %v97 = vld [vmem:[%s1 + $0x110] sm:$0xf]
  %v98 = vld [vmem:[%s1 + $0x114] sm:$0xf]
  %v99 = vld [vmem:[%s1 + $0x118] sm:$0xf]
  %v100 = vld [vmem:[%s1 + $0x11c] sm:$0xf]
  %v101 = vld [vmem:[%s1 + $0x120] sm:$0xf]
  %v102 = vld [vmem:[%s1 + $0x124] sm:$0xf]
  %v103 = vld [vmem:[%s1 + $0x128] sm:$0xf]
  %v104 = vld [vmem:[%s1 + $0x12c] sm:$0xf]
  %v105 = vld [vmem:[%s1 + $0x130] sm:$0xf]
  %v106 = vld [vmem:[%s1 + $0x134] sm:$0xf]
  %v107 = vld [vmem:[%s1 + $0x138] sm:$0xf]
  %v108 = vld [vmem:[%s1 + $0x13c] sm:$0xf]
  %v109 = vld [vmem:[%s1 + $0x140] sm:$0xf]
  %v110 = vld [vmem:[%s1 + $0x144] sm:$0xf]
  %v111 = vld [vmem:[%s1 + $0x148] sm:$0xf]
  %v112 = vld [vmem:[%s1 + $0x14c] sm:$0xf]
  %v113 = vld [vmem:[%s1 + $0x150] sm:$0xf]
  %v114 = vld [vmem:[%s1 + $0x154] sm:$0xf]
  %v115 = vld [vmem:[%s1 + $0x158] sm:$0xf]
  %v116 = vld [vmem:[%s1 + $0x15c] sm:$0xf]
  %v117 = vld [vmem:[%s1 + $0x160] sm:$0xf]
  %v118 = vld [vmem:[%s1 + $0x164] sm:$0xf]
  %v119 = vld [vmem:[%s1 + $0x168] sm:$0xf]
  %v120 = vld [vmem:[%s1 + $0x16c] sm:$0xf]
  %v121 = vld [vmem:[%s1 + $0x170] sm:$0xf]
  %v122 = vld [vmem:[%s1 + $0x174] sm:$0xf]
  %v123 = vld [vmem:[%s1 + $0x178] sm:$0xf]
  %v124 = vld [vmem:[%s1 + $0x17c] sm:$0xf]
  %v125 = vld [vmem:[%s2] sm:$0x1]
  %v127 = vlaneseq
  %v128 = vshrl.u32 %v127, 7
  %v129 = vsub.s32 0, %v128
  %v130 = vrot.slane %v125, %v129
  %v134 = vcombine.high %v27, %v27
  %v136 = vunpack.c.l.s4 1983009808
  %v137 = vunpack.c.0.s8 %v136
  %v138 = vlaneseq
  %v139 = vshrl.u32 %v138, 7
  %v140 = vsub.s32 %v137, %v139
  %v141 = vrot.slane %v27, %v140
  %v143 = vunpack.c.l.s4 1983009808
  %v144 = vunpack.c.0.s8 %v143
  %v145 = vlaneseq
  %v146 = vshrl.u32 %v145, 7
  %v147 = vsub.s32 %v144, %v146
  %v148 = vrot.slane %v134, %v147
  %v149 = vcombine.high %v141, %v141
  %v150 = vcombine.high %v148, %v148
  %v152 = vunpack.c.l.s4 1983009808
  %v153 = vunpack.c.0.s8 %v152
  %v154 = vlaneseq
  %v155 = vshrl.u32 %v154, 7
  %v156 = vsub.s32 %v153, %v155
  %v157 = vrot.slane %v28, %v156
  %v158 = vcombine.high %v157, %v157
  %v261 = vunpack.c.l.b16 %v29
  %v262 = vunpack.c.l.b16 %v30
  %v263 = vunpack.c.l.b16 %v31
  %v264 = vunpack.c.l.b16 %v32
  %v265 = vunpack.c.l.b16 %v33
  %v266 = vunpack.c.l.b16 %v34
  %v267 = vunpack.c.l.b16 %v35
  %v268 = vunpack.c.l.b16 %v36
  %v269 = vunpack.c.l.b16 %v37
  %v270 = vunpack.c.l.b16 %v38
  %v271 = vunpack.c.l.b16 %v39
  %v272 = vunpack.c.l.b16 %v40
  %v273 = vunpack.c.l.b16 %v41
  %v274 = vunpack.c.l.b16 %v42
  %v275 = vunpack.c.l.b16 %v43
  %v276 = vunpack.c.l.b16 %v44
  %v277 = vunpack.c.l.b16 %v45
  %v278 = vunpack.c.l.b16 %v46
  %v279 = vunpack.c.l.b16 %v47
  %v280 = vunpack.c.l.b16 %v48
  %v281 = vunpack.c.l.b16 %v49
  %v282 = vunpack.c.l.b16 %v50
  %v283 = vunpack.c.l.b16 %v51
  %v284 = vunpack.c.l.b16 %v52
  %v285 = vunpack.c.l.b16 %v53
  %v286 = vunpack.c.l.b16 %v54
  %v287 = vunpack.c.l.b16 %v55
  %v288 = vunpack.c.l.b16 %v56
  %v289 = vunpack.c.l.b16 %v57
  %v290 = vunpack.c.l.b16 %v58
  %v291 = vunpack.c.l.b16 %v59
  %v292 = vunpack.c.l.b16 %v60
  %v293 = vunpack.c.l.b16 %v61
  %v294 = vunpack.c.l.b16 %v62
  %v295 = vunpack.c.l.b16 %v63
  %v296 = vunpack.c.l.b16 %v64
  %v297 = vunpack.c.l.b16 %v65
  %v298 = vunpack.c.l.b16 %v66
  %v299 = vunpack.c.l.b16 %v67
  %v300 = vunpack.c.l.b16 %v68
  %v301 = vunpack.c.l.b16 %v69
  %v302 = vunpack.c.l.b16 %v70
  %v303 = vunpack.c.l.b16 %v71
  %v304 = vunpack.c.l.b16 %v72
  %v305 = vunpack.c.l.b16 %v73
  %v306 = vunpack.c.l.b16 %v74
  %v307 = vunpack.c.l.b16 %v75
  %v308 = vunpack.c.l.b16 %v76
  %v309 = vunpack.c.l.b16 %v77
  %v310 = vunpack.c.l.b16 %v78
  %v311 = vunpack.c.l.b16 %v79
  %v312 = vunpack.c.l.b16 %v80
  %v313 = vunpack.c.l.b16 %v81
  %v314 = vunpack.c.l.b16 %v82
  %v315 = vunpack.c.l.b16 %v83
  %v316 = vunpack.c.l.b16 %v84
  %v317 = vunpack.c.l.b16 %v85
  %v318 = vunpack.c.l.b16 %v86
  %v319 = vunpack.c.l.b16 %v87
  %v320 = vunpack.c.l.b16 %v88
  %v321 = vunpack.c.l.b16 %v89
  %v322 = vunpack.c.l.b16 %v90
  %v323 = vunpack.c.l.b16 %v91
  %v324 = vunpack.c.l.b16 %v92
  %v325 = vunpack.c.l.b16 %v93
  %v326 = vunpack.c.l.b16 %v94
  %v327 = vunpack.c.l.b16 %v95
  %v328 = vunpack.c.l.b16 %v96
  %v329 = vunpack.c.l.b16 %v97
  %v330 = vunpack.c.l.b16 %v98
  %v331 = vunpack.c.l.b16 %v99
  %v332 = vunpack.c.l.b16 %v100
  %v333 = vunpack.c.l.b16 %v101
  %v334 = vunpack.c.l.b16 %v102
  %v335 = vunpack.c.l.b16 %v103
  %v336 = vunpack.c.l.b16 %v104
  %v337 = vunpack.c.l.b16 %v105
  %v338 = vunpack.c.l.b16 %v106
  %v339 = vunpack.c.l.b16 %v107
  %v340 = vunpack.c.l.b16 %v108
  %v341 = vunpack.c.l.b16 %v109
  %v342 = vunpack.c.l.b16 %v110
  %v343 = vunpack.c.l.b16 %v111
  %v344 = vunpack.c.l.b16 %v112
  %v345 = vunpack.c.l.b16 %v113
  %v346 = vunpack.c.l.b16 %v114
  %v347 = vunpack.c.l.b16 %v115
  %v348 = vunpack.c.l.b16 %v116
  %v349 = vunpack.c.l.b16 %v117
  %v350 = vunpack.c.l.b16 %v118
  %v351 = vunpack.c.l.b16 %v119
  %v352 = vunpack.c.l.b16 %v120
  %v353 = vunpack.c.l.b16 %v121
  %v354 = vunpack.c.l.b16 %v122
  %v355 = vunpack.c.l.b16 %v123
  %v356 = vunpack.c.l.b16 %v124
  %v357 = vpack.c.b16 %v262, %v261
  %v358 = vpack.c.b16 %v264, %v263
  %v359 = vpack.c.b16 %v266, %v265
  %v360 = vpack.c.b16 %v268, %v267
  %v361 = vpack.c.b16 %v270, %v269
  %v362 = vpack.c.b16 %v272, %v271
  %v363 = vpack.c.b16 %v274, %v273
  %v364 = vpack.c.b16 %v276, %v275
  %v365 = vpack.c.b16 %v278, %v277
  %v366 = vpack.c.b16 %v280, %v279
  %v367 = vpack.c.b16 %v282, %v281
  %v368 = vpack.c.b16 %v284, %v283
  %v369 = vpack.c.b16 %v286, %v285
  %v370 = vpack.c.b16 %v288, %v287
  %v371 = vpack.c.b16 %v290, %v289
  %v372 = vpack.c.b16 %v292, %v291
  %v373 = vpack.c.b16 %v294, %v293
  %v374 = vpack.c.b16 %v296, %v295
  %v375 = vpack.c.b16 %v298, %v297
  %v376 = vpack.c.b16 %v300, %v299
  %v377 = vpack.c.b16 %v302, %v301
  %v378 = vpack.c.b16 %v304, %v303
  %v379 = vpack.c.b16 %v306, %v305
  %v380 = vpack.c.b16 %v308, %v307
  %v381 = vpack.c.b16 %v310, %v309
  %v382 = vpack.c.b16 %v312, %v311
  %v383 = vpack.c.b16 %v314, %v313
  %v384 = vpack.c.b16 %v316, %v315
  %v385 = vpack.c.b16 %v318, %v317
  %v386 = vpack.c.b16 %v320, %v319
  %v387 = vpack.c.b16 %v322, %v321
  %v388 = vpack.c.b16 %v324, %v323
  %v389 = vpack.c.b16 %v326, %v325
  %v390 = vpack.c.b16 %v328, %v327
  %v391 = vpack.c.b16 %v330, %v329
  %v392 = vpack.c.b16 %v332, %v331
  %v393 = vpack.c.b16 %v334, %v333
  %v394 = vpack.c.b16 %v336, %v335
  %v395 = vpack.c.b16 %v338, %v337
  %v396 = vpack.c.b16 %v340, %v339
  %v397 = vpack.c.b16 %v342, %v341
  %v398 = vpack.c.b16 %v344, %v343
  %v399 = vpack.c.b16 %v346, %v345
  %v400 = vpack.c.b16 %v348, %v347
  %v401 = vpack.c.b16 %v350, %v349
  %v402 = vpack.c.b16 %v352, %v351
  %v403 = vpack.c.b16 %v354, %v353
  %v404 = vpack.c.b16 %v356, %v355
  %453 = vmatprep.subr.bf16.mxu0 0
  %454 = vmatpush1.bf16.msra.mxu0 %v357
  %455 = vmatprep.subr.bf16.mxu0 0
  %456 = vmatpush1.bf16.msra.mxu0 %v358
  %457 = vmatprep.subr.bf16.mxu0 0
  %458 = vmatpush1.bf16.msra.mxu0 %v359
  %459 = vmatprep.subr.bf16.mxu0 0
  %460 = vmatpush1.bf16.msra.mxu0 %v360
  %461 = vmatprep.subr.bf16.mxu0 0
  %462 = vmatpush1.bf16.msra.mxu0 %v361
  %463 = vmatprep.subr.bf16.mxu0 0
  %464 = vmatpush1.bf16.msra.mxu0 %v362
  %465 = vmatprep.subr.bf16.mxu0 0
  %466 = vmatpush1.bf16.msra.mxu0 %v363
  %467 = vmatprep.subr.bf16.mxu0 0
  %468 = vmatpush1.bf16.msra.mxu0 %v364
  %469 = vmatprep.subr.bf16.mxu0 0
  %470 = vmatpush1.bf16.msra.mxu0 %v365
  %471 = vmatprep.subr.bf16.mxu0 0
  %472 = vmatpush1.bf16.msra.mxu0 %v366
  %473 = vmatprep.subr.bf16.mxu0 0
  %474 = vmatpush1.bf16.msra.mxu0 %v367
  %475 = vmatprep.subr.bf16.mxu0 0
  %476 = vmatpush1.bf16.msra.mxu0 %v368
  %477 = vmatprep.subr.bf16.mxu0 0
  %478 = vmatpush1.bf16.msra.mxu0 %v369
  %479 = vmatprep.subr.bf16.mxu0 0
  %480 = vmatpush1.bf16.msra.mxu0 %v370
  %481 = vmatprep.subr.bf16.mxu0 0
  %482 = vmatpush1.bf16.msra.mxu0 %v371
  %483 = vmatprep.subr.bf16.mxu0 0
  %484 = vmatpush1.bf16.msra.mxu0 %v372
  %485 = vmatprep.mubr.bf16.mxu0 %v149
  %486 = vmatmul.mubr.bf16.gmra.mrb[0].mxu0 %v141
  %v487 = vpop.f32.mrb[0].mxu0
  %v488 = vadd.f32 %v130, %v487
  %v489 = vpop.f32.mrb[0].mxu0
  %v490 = vpop.f32.mrb[0].mxu0
  %v491 = vpop.f32.mrb[0].mxu0
  %492 = vdwg.mxu0
  %493 = vmatprep.subr.bf16.mxu0 0
  %494 = vmatpush1.bf16.msra.mxu0 %v373
  %495 = vmatprep.subr.bf16.mxu0 0
  %496 = vmatpush1.bf16.msra.mxu0 %v374
  %497 = vmatprep.subr.bf16.mxu0 0
  %498 = vmatpush1.bf16.msra.mxu0 %v375
  %499 = vmatprep.subr.bf16.mxu0 0
  %500 = vmatpush1.bf16.msra.mxu0 %v376
  %501 = vmatprep.subr.bf16.mxu0 0
  %502 = vmatpush1.bf16.msra.mxu0 %v377
  %503 = vmatprep.subr.bf16.mxu0 0
  %504 = vmatpush1.bf16.msra.mxu0 %v378
  %505 = vmatprep.subr.bf16.mxu0 0
  %506 = vmatpush1.bf16.msra.mxu0 %v379
  %507 = vmatprep.subr.bf16.mxu0 0
  %508 = vmatpush1.bf16.msra.mxu0 %v380
  %509 = vmatprep.subr.bf16.mxu0 0
  %510 = vmatpush1.bf16.msra.mxu0 %v381
  %511 = vmatprep.subr.bf16.mxu0 0
  %512 = vmatpush1.bf16.msra.mxu0 %v382
  %513 = vmatprep.subr.bf16.mxu0 0
  %514 = vmatpush1.bf16.msra.mxu0 %v383
  %515 = vmatprep.subr.bf16.mxu0 0
  %516 = vmatpush1.bf16.msra.mxu0 %v384
  %517 = vmatprep.subr.bf16.mxu0 0
  %518 = vmatpush1.bf16.msra.mxu0 %v385
  %519 = vmatprep.subr.bf16.mxu0 0
  %520 = vmatpush1.bf16.msra.mxu0 %v386
  %521 = vmatprep.subr.bf16.mxu0 0
  %522 = vmatpush1.bf16.msra.mxu0 %v387
  %523 = vmatprep.subr.bf16.mxu0 0
  %524 = vmatpush1.bf16.msra.mxu0 %v388
  %525 = vmatprep.mubr.bf16.mxu0 %v150
  %526 = vmatmul.mubr.bf16.gmra.mrb[0].mxu0 %v148
  %v527 = vpop.f32.mrb[0].mxu0
  %v528 = vadd.f32 %v488, %v527
  %v529 = vpop.f32.mrb[0].mxu0
  %v530 = vpop.f32.mrb[0].mxu0
  %v531 = vpop.f32.mrb[0].mxu0
  %532 = vdwg.mxu0
  %533 = vmatprep.subr.bf16.mxu0 0
  %534 = vmatpush1.bf16.msra.mxu0 %v389
  %535 = vmatprep.subr.bf16.mxu0 0
  %536 = vmatpush1.bf16.msra.mxu0 %v390
  %537 = vmatprep.subr.bf16.mxu0 0
  %538 = vmatpush1.bf16.msra.mxu0 %v391
  %539 = vmatprep.subr.bf16.mxu0 0
  %540 = vmatpush1.bf16.msra.mxu0 %v392
  %541 = vmatprep.subr.bf16.mxu0 0
  %542 = vmatpush1.bf16.msra.mxu0 %v393
  %543 = vmatprep.subr.bf16.mxu0 0
  %544 = vmatpush1.bf16.msra.mxu0 %v394
  %545 = vmatprep.subr.bf16.mxu0 0
  %546 = vmatpush1.bf16.msra.mxu0 %v395
  %547 = vmatprep.subr.bf16.mxu0 0
  %548 = vmatpush1.bf16.msra.mxu0 %v396
  %549 = vmatprep.subr.bf16.mxu0 0
  %550 = vmatpush1.bf16.msra.mxu0 %v397
  %551 = vmatprep.subr.bf16.mxu0 0
  %552 = vmatpush1.bf16.msra.mxu0 %v398
  %553 = vmatprep.subr.bf16.mxu0 0
  %554 = vmatpush1.bf16.msra.mxu0 %v399
  %555 = vmatprep.subr.bf16.mxu0 0
  %556 = vmatpush1.bf16.msra.mxu0 %v400
  %557 = vmatprep.subr.bf16.mxu0 0
  %558 = vmatpush1.bf16.msra.mxu0 %v401
  %559 = vmatprep.subr.bf16.mxu0 0
  %560 = vmatpush1.bf16.msra.mxu0 %v402
  %561 = vmatprep.subr.bf16.mxu0 0
  %562 = vmatpush1.bf16.msra.mxu0 %v403
  %563 = vmatprep.subr.bf16.mxu0 0
  %564 = vmatpush1.bf16.msra.mxu0 %v404
  %565 = vmatprep.mubr.bf16.mxu0 %v158
  %566 = vmatmul.mubr.bf16.gmra.mrb[0].mxu0 %v157
  %v567 = vpop.f32.mrb[0].mxu0
  %v568 = vadd.f32 %v528, %v567
  %v569 = vpop.f32.mrb[0].mxu0
  %v570 = vpop.f32.mrb[0].mxu0
  %v571 = vpop.f32.mrb[0].mxu0
  %572 = vdwg.mxu0
  %v573 = vmax.f32 %v568, 0.0
  %v574 = vpack.c.bf16 %v573, %v573
  %v575 = vld [vmem:[%s3] sm:$0xf]
  %v576 = vld [vmem:[%s3 + $0x4] sm:$0xf]
  %v577 = vld [vmem:[%s3 + $0x8] sm:$0xf]
  %v578 = vld [vmem:[%s3 + $0xc] sm:$0xf]
  %v579 = vld [vmem:[%s3 + $0x10] sm:$0xf]
  %v580 = vld [vmem:[%s3 + $0x14] sm:$0xf]
  %v581 = vld [vmem:[%s3 + $0x18] sm:$0xf]
  %v582 = vld [vmem:[%s3 + $0x1c] sm:$0xf]
  %v583 = vld [vmem:[%s4] sm:$0x1]
  %v585 = vlaneseq
  %v586 = vshrl.u32 %v585, 7
  %v587 = vsub.s32 0, %v586
  %v588 = vrot.slane %v583, %v587
  %v598 = vunpack.c.l.b16 %v575
  %v599 = vunpack.c.l.b16 %v576
  %v600 = vunpack.c.l.b16 %v577
  %v601 = vunpack.c.l.b16 %v578
  %v602 = vunpack.c.l.b16 %v579
  %v603 = vunpack.c.l.b16 %v580
  %v604 = vunpack.c.l.b16 %v581
  %v605 = vunpack.c.l.b16 %v582
  %v606 = vpack.c.b16 %v599, %v598
  %v607 = vpack.c.b16 %v601, %v600
  %v608 = vpack.c.b16 %v603, %v602
  %v609 = vpack.c.b16 %v605, %v604
  %vm614 = vcmask 523264
  %v616 = vsel %vm614, %v574, 0
  %618 = vmatprep.subr.bf16.mxu0 0
  %619 = vmatpush1.bf16.msra.mxu0 %v606
  %620 = vmatprep.subr.bf16.mxu0 0
  %621 = vmatpush1.bf16.msra.mxu0 %v607
  %622 = vmatprep.subr.bf16.mxu0 0
  %623 = vmatpush1.bf16.msra.mxu0 %v608
  %624 = vmatprep.subr.bf16.mxu0 0
  %625 = vmatpush1.bf16.msra.mxu0 %v609
  %626 = vmatprep.subr.bf16.mxu0 0
  %627 = vmatpush1.bf16.msra.mxu0 0
  %628 = vmatprep.subr.bf16.mxu0 0
  %629 = vmatpush1.bf16.msra.mxu0 0
  %630 = vmatprep.subr.bf16.mxu0 0
  %631 = vmatpush1.bf16.msra.mxu0 0
  %632 = vmatprep.subr.bf16.mxu0 0
  %633 = vmatpush1.bf16.msra.mxu0 0
  %634 = vmatprep.subr.bf16.mxu0 0
  %635 = vmatpush1.bf16.msra.mxu0 0
  %636 = vmatprep.subr.bf16.mxu0 0
  %637 = vmatpush1.bf16.msra.mxu0 0
  %638 = vmatprep.subr.bf16.mxu0 0
  %639 = vmatpush1.bf16.msra.mxu0 0
  %640 = vmatprep.subr.bf16.mxu0 0
  %641 = vmatpush1.bf16.msra.mxu0 0
  %642 = vmatprep.subr.bf16.mxu0 0
  %643 = vmatpush1.bf16.msra.mxu0 0
  %644 = vmatprep.subr.bf16.mxu0 0
  %645 = vmatpush1.bf16.msra.mxu0 0
  %646 = vmatprep.subr.bf16.mxu0 0
  %647 = vmatpush1.bf16.msra.mxu0 0
  %648 = vmatprep.subr.bf16.mxu0 0
  %649 = vmatpush1.bf16.msra.mxu0 0
  %650 = vmatprep.mubr.bf16.mxu0 0
  %651 = vmatmul.mubr.bf16.gmra.mrb[0].mxu0 %v616
  %v652 = vpop.f32.mrb[0].mxu0
  %v653 = vadd.f32 %v588, %v652
  %v654 = vpop.f32.mrb[0].mxu0
  %v655 = vpop.f32.mrb[0].mxu0
  %v656 = vpop.f32.mrb[0].mxu0
  %657 = vdwg.mxu0
  %vm658 = vcmask 256000
  %v659 = vsel %vm658, %v653, 0.0
  %660 = vadd.xlane.f32.xlu0 %v659
  %v661 = vpop.xlane.xlu0 %660
  %v662 = vrcp.pop 32.0
  %v663 = vmul.f32 %v661, %v662
  %v664 = vsub.f32 %v653, %v663
  %v665 = vmul.f32 %v664, %v664
  %v666 = vsel %vm658, %v665, 0.0
  %667 = vadd.xlane.f32.xlu0 %v666
  %v668 = vpop.xlane.xlu0 %667
  %v669 = vmul.f32 %v668, %v662
  %v670 = vadd.f32 %v669, 1e-05
  %v671 = vrsqrt.pop %v670
  %v672 = vmul.f32 %v664, %v671
  %v673 = vld [vmem:[%s5] sm:$0x1]
  %v675 = vlaneseq
  %v676 = vshrl.u32 %v675, 7
  %v677 = vsub.s32 0, %v676
  %v678 = vrot.slane %v673, %v677
  %v680 = vmul.f32 %v672, %v678
  %v681 = vld [vmem:[%s6] sm:$0x1]
  %v683 = vlaneseq
  %v684 = vshrl.u32 %v683, 7
  %v685 = vsub.s32 0, %v684
  %v686 = vrot.slane %v681, %v685
  %v688 = vadd.f32 %v680, %v686
  %689 = vst.msk [vmem:[%s7] sm:$0x7] %vm658, %v688
  // Predicated region
  $region30: #{_forward.8} parent=0 // pred_check
    _
  $region31: #{_forward.8} parent=0 // pred_check_branch
    %691 = sbr.rel (0) target = $region33
  $region32: #{_forward.8} parent=0 // pred_region
    _
  $region33: #{_forward.8} parent=0 // pred_fallthru
    _
  // Predicated region
  $region34: #{_forward.8} parent=0 // pred_check
    _
  $region35: #{_forward.8} parent=0 // pred_check_branch
    %693 = sbr.rel (0) target = $region37
  $region36: #{_forward.8} parent=0 // pred_region
    _
  $region37: #{_forward.8} parent=0 // pred_fallthru
    _

// kernel: _forward.6
$region0: #{_forward.6}
  #allocation0 [shape = 'u32[]', space=smem, size = 0x4, offset = 0x4, fixed_abs, tag = 'smem constant byte address 0x4 - core index']
  #allocation1 [shape = 'u32[144,128]{1,0:T(1,128)}', space=vmem, size = 0x12000, scoped, tag = 'internal scratch']
  %s0 = inlined_call_operand.vmem [shape: bf16[40,768], index: 0, kind: input, shape index: {}]
  %s1 = inlined_call_operand.vmem [shape: bf16[768,64], index: 1, kind: input, shape index: {}]
  %s2 = inlined_call_operand.vmem [shape: f32[1,64], index: 2, kind: input, shape index: {}]
  %s3 = inlined_call_operand.vmem [shape: bf16[64,32], index: 3, kind: input, shape index: {}]
  %s4 = inlined_call_operand.vmem [shape: f32[1,32], index: 4, kind: input, shape index: {}]
  %s5 = inlined_call_operand.vmem [shape: f32[1,32], index: 5, kind: input, shape index: {}]
  %s6 = inlined_call_operand.vmem [shape: f32[1,32], index: 6, kind: input, shape index: {}]
  %s7 = inlined_call_operand.vmem [shape: f32[40,32], index: 7, kind: output, shape index: {}]
  %s8 = sld [smem:[#allocation0]]
  $region109: #{_forward.6} parent=0
    _
  %s10 = ssub.s32 1, %s8
  %s11 = scalar_select 0, %s10, %s8
  $region1: #{_forward.6} parent=0
    #allocation2 [shape = 'u8[32768]{0}', space=vmem, size = 0x8000, scoped, tag = 'output window, operand 0']
    loop: start=0, step=1, limit=4
    $region2: #{_forward.6} parent=1 // loop_pre_header
      _
    $region3: #{_forward.6} parent=1 // loop_header
      %s13 = sphi 0, %s17
      %p14 = scmp.ge.s32.totalorder %s13, 4
      %s23 = sphi 0, %s25
      %s26 = sphi 0, %s23
      %s27 = sphi 0, %s26
      %s43 = sphi 0, %s27
      %s47 = sphi 0, %s47
      %s49 = sphi 0, %s47
      %s50 = sphi 0, %s49
      %s64 = sphi 0, %s50
      %s68 = sphi 0, %s68
      %s70 = sphi 0, %s68
      %s71 = sphi 0, %s70
      %s85 = sphi 0, %s71
      %s89 = sphi 0, %s89
      %s91 = sphi 0, %s89
      %s92 = sphi 0, %s91
      %s106 = sphi 0, %s92
      %s110 = sphi 0, %s110
      %s112 = sphi 0, %s110
      %s113 = sphi 0, %s112
      %s127 = sphi 0, %s113
      %s131 = sphi 0, %s131
      %s133 = sphi 0, %s131
      %s134 = sphi 0, %s133
      %s148 = sphi 0, %s134
      %s152 = sphi 0, %s152
      %s154 = sphi 0, %s152
      %s155 = sphi 0, %s154
      %s169 = sphi 0, %s155
      %s175 = sphi 0, %s177
      %s178 = sphi 0, %s175
      %s179 = sphi 0, %s178
      %s195 = sphi 0, %s179
    $region4: #{_forward.6} parent=1 // loop_header_branch
      %16 = sbr.rel (%p14) target = $region8
    $region5: #{_forward.6} parent=1 // loop_body
      %s18 = ssub.s32 %s13, 1
      %s19 = ssub.s32 %s13, 2
      %s20 = sadd.s32 %s13, 1
      %s21 = ssub.s32 %s13, %s20
      %p22 = scmp.eq.s32.totalorder %s21, 0
      %s24 = sadd.s32 %s23, 1
      %s25 = scalar_select %p22, %s23, %s24
      %p28 = pneg %p22
      %p29 = scmp.eq.s32.totalorder %s13, 1
      %p30 = por %p28, %p29
      %p31 = scmp.ne.s32.totalorder %s23, %s26
      %p32 = scmp.eq.s32.totalorder %s13, 0
      %p33 = por %p31, %p32
      %p34 = scmp.ne.s32.totalorder %s23, %s26
      %p35 = scmp.eq.s32.totalorder %s18, 1
      %p36 = por %p34, %p35
      %p37 = scmp.ne.s32.totalorder %s26, %s27
      %p38 = scmp.eq.s32.totalorder %s18, 0
      %p39 = por %p37, %p38
      %p40 = scmp.ne.s32.totalorder %s26, %s27
      %p41 = scmp.eq.s32.totalorder %s19, 1
      %p42 = por %p40, %p41
      %p44 = scmp.ne.s32.totalorder %s27, %s43
      %p45 = scmp.eq.s32.totalorder %s19, 0
      %p46 = por %p44, %p45
      %s48 = sadd.s32 %s47, 1
      %p51 = scmp.eq.s32.totalorder %s13, 1
      %p52 = scmp.ne.s32.totalorder %s47, %s49
      %p53 = scmp.eq.s32.totalorder %s13, 0
      %p54 = por %p52, %p53
      %p55 = scmp.ne.s32.totalorder %s47, %s49
      %p56 = scmp.eq.s32.totalorder %s18, 1
      %p57 = por %p55, %p56
      %p58 = scmp.ne.s32.totalorder %s49, %s50
      %p59 = scmp.eq.s32.totalorder %s18, 0
      %p60 = por %p58, %p59
      %p61 = scmp.ne.s32.totalorder %s49, %s50
      %p62 = scmp.eq.s32.totalorder %s19, 1
      %p63 = por %p61, %p62
      %p65 = scmp.ne.s32.totalorder %s50, %s64
      %p66 = scmp.eq.s32.totalorder %s19, 0
      %p67 = por %p65, %p66
      %s69 = sadd.s32 %s68, 1
      %p72 = scmp.eq.s32.totalorder %s13, 1
      %p73 = scmp.ne.s32.totalorder %s68, %s70
      %p74 = scmp.eq.s32.totalorder %s13, 0
      %p75 = por %p73, %p74
      %p76 = scmp.ne.s32.totalorder %s68, %s70
      %p77 = scmp.eq.s32.totalorder %s18, 1
      %p78 = por %p76, %p77
      %p79 = scmp.ne.s32.totalorder %s70, %s71
      %p80 = scmp.eq.s32.totalorder %s18, 0
      %p81 = por %p79, %p80
      %p82 = scmp.ne.s32.totalorder %s70, %s71
      %p83 = scmp.eq.s32.totalorder %s19, 1
      %p84 = por %p82, %p83
      %p86 = scmp.ne.s32.totalorder %s71, %s85
      %p87 = scmp.eq.s32.totalorder %s19, 0
      %p88 = por %p86, %p87
      %s90 = sadd.s32 %s89, 1
      %p93 = scmp.eq.s32.totalorder %s13, 1
      %p94 = scmp.ne.s32.totalorder %s89, %s91
      %p95 = scmp.eq.s32.totalorder %s13, 0
      %p96 = por %p94, %p95
      %p97 = scmp.ne.s32.totalorder %s89, %s91
      %p98 = scmp.eq.s32.totalorder %s18, 1
      %p99 = por %p97, %p98
      %p100 = scmp.ne.s32.totalorder %s91, %s92
      %p101 = scmp.eq.s32.totalorder %s18, 0
      %p102 = por %p100, %p101
      %p103 = scmp.ne.s32.totalorder %s91, %s92
      %p104 = scmp.eq.s32.totalorder %s19, 1
      %p105 = por %p103, %p104
      %p107 = scmp.ne.s32.totalorder %s92, %s106
      %p108 = scmp.eq.s32.totalorder %s19, 0
      %p109 = por %p107, %p108
      %s111 = sadd.s32 %s110, 1
      %p114 = scmp.eq.s32.totalorder %s13, 1
      %p115 = scmp.ne.s32.totalorder %s110, %s112
      %p116 = scmp.eq.s32.totalorder %s13, 0
      %p117 = por %p115, %p116
      %p118 = scmp.ne.s32.totalorder %s110, %s112
      %p119 = scmp.eq.s32.totalorder %s18, 1
      %p120 = por %p118, %p119
      %p121 = scmp.ne.s32.totalorder %s112, %s113
      %p122 = scmp.eq.s32.totalorder %s18, 0
      %p123 = por %p121, %p122
      %p124 = scmp.ne.s32.totalorder %s112, %s113
      %p125 = scmp.eq.s32.totalorder %s19, 1
      %p126 = por %p124, %p125
      %p128 = scmp.ne.s32.totalorder %s113, %s127
      %p129 = scmp.eq.s32.totalorder %s19, 0
      %p130 = por %p128, %p129
      %s132 = sadd.s32 %s131, 1
      %p135 = scmp.eq.s32.totalorder %s13, 1
      %p136 = scmp.ne.s32.totalorder %s131, %s133
      %p137 = scmp.eq.s32.totalorder %s13, 0
      %p138 = por %p136, %p137
      %p139 = scmp.ne.s32.totalorder %s131, %s133
      %p140 = scmp.eq.s32.totalorder %s18, 1
      %p141 = por %p139, %p140
      %p142 = scmp.ne.s32.totalorder %s133, %s134
      %p143 = scmp.eq.s32.totalorder %s18, 0
      %p144 = por %p142, %p143
      %p145 = scmp.ne.s32.totalorder %s133, %s134
      %p146 = scmp.eq.s32.totalorder %s19, 1
      %p147 = por %p145, %p146
      %p149 = scmp.ne.s32.totalorder %s134, %s148
      %p150 = scmp.eq.s32.totalorder %s19, 0
      %p151 = por %p149, %p150
      %s153 = sadd.s32 %s152, 1
      %p156 = scmp.eq.s32.totalorder %s13, 1
      %p157 = scmp.ne.s32.totalorder %s152, %s154
      %p158 = scmp.eq.s32.totalorder %s13, 0
      %p159 = por %p157, %p158
      %p160 = scmp.ne.s32.totalorder %s152, %s154
      %p161 = scmp.eq.s32.totalorder %s18, 1
      %p162 = por %p160, %p161
      %p163 = scmp.ne.s32.totalorder %s154, %s155
      %p164 = scmp.eq.s32.totalorder %s18, 0
      %p165 = por %p163, %p164
      %p166 = scmp.ne.s32.totalorder %s154, %s155
      %p167 = scmp.eq.s32.totalorder %s19, 1
      %p168 = por %p166, %p167
      %p170 = scmp.ne.s32.totalorder %s155, %s169
      %p171 = scmp.eq.s32.totalorder %s19, 0
      %p172 = por %p170, %p171
      %s173 = ssub.s32 %s13, %s20
      %p174 = scmp.eq.s32.totalorder %s173, 0
      %s176 = sadd.s32 %s175, 1
      %s177 = scalar_select %p174, %s175, %s176
      %p180 = pneg %p174
      %p181 = scmp.eq.s32.totalorder %s13, 1
      %p182 = por %p180, %p181
      %p183 = scmp.ne.s32.totalorder %s175, %s178
      %p184 = scmp.eq.s32.totalorder %s13, 0
      %p185 = por %p183, %p184
      %p186 = scmp.ne.s32.totalorder %s175, %s178
      %p187 = scmp.eq.s32.totalorder %s18, 1
      %p188 = por %p186, %p187
      %p189 = scmp.ne.s32.totalorder %s178, %s179
      %p190 = scmp.eq.s32.totalorder %s18, 0
      %p191 = por %p189, %p190
      %p192 = scmp.ne.s32.totalorder %s178, %s179
      %p193 = scmp.eq.s32.totalorder %s19, 1
      %p194 = por %p192, %p193
      %p196 = scmp.ne.s32.totalorder %s179, %s195
      %p197 = scmp.eq.s32.totalorder %s19, 0
      %p198 = por %p196, %p197
      %p199 = scmp.le.s32.totalorder 1, %s13
      %p200 = scmp.lt.s32.totalorder %s13, 3
      %p201 = pnand %p199, %p200
      %p202 = pneg %p201
      // Predicated region
      $region9: #{_forward.6} parent=5 // pred_check
        _
      $region10: #{_forward.6} parent=5 // pred_check_branch
        %204 = sbr.rel (%p201) target = $region12
      $region11: #{_forward.6} parent=5 // pred_region
        %s205 = ssub.s32 %s13, 1
        // Predicated region
        $region13: #{_forward.6} parent=11 // pred_check
          %p206 = pneg %p60
        $region14: #{_forward.6} parent=11 // pred_check_branch
          %208 = sbr.rel (%p206) target = $region16
        $region15: #{_forward.6} parent=11 // pred_region
          _
        $region16: #{_forward.6} parent=11 // pred_fallthru
          _
        // Predicated region
        $region17: #{_forward.6} parent=11 // pred_check
          %p209 = pneg %p81
        $region18: #{_forward.6} parent=11 // pred_check_branch
          %211 = sbr.rel (%p209) target = $region20
        $region19: #{_forward.6} parent=11 // pred_region
          _
        $region20: #{_forward.6} parent=11 // pred_fallthru
          _
        // Predicated region
        $region21: #{_forward.6} parent=11 // pred_check
          %p212 = pneg %p102
        $region22: #{_forward.6} parent=11 // pred_check_branch
          %214 = sbr.rel (%p212) target = $region24
        $region23: #{_forward.6} parent=11 // pred_region
          _
        $region24: #{_forward.6} parent=11 // pred_fallthru
          _
        // Predicated region
        $region25: #{_forward.6} parent=11 // pred_check
          %p215 = pneg %p123
        $region26: #{_forward.6} parent=11 // pred_check_branch
          %217 = sbr.rel (%p215) target = $region28
        $region27: #{_forward.6} parent=11 // pred_region
          _
        $region28: #{_forward.6} parent=11 // pred_fallthru
          _
        // Predicated region
        $region29: #{_forward.6} parent=11 // pred_check
          %p218 = pneg %p144
        $region30: #{_forward.6} parent=11 // pred_check_branch
          %220 = sbr.rel (%p218) target = $region32
        $region31: #{_forward.6} parent=11 // pred_region
          _
        $region32: #{_forward.6} parent=11 // pred_fallthru
          _
        // Predicated region
        $region33: #{_forward.6} parent=11 // pred_check
          %p221 = pneg %p165
        $region34: #{_forward.6} parent=11 // pred_check_branch
          %223 = sbr.rel (%p221) target = $region36
        $region35: #{_forward.6} parent=11 // pred_region
          _
        $region36: #{_forward.6} parent=11 // pred_fallthru
          _
      $region12: #{_forward.6} parent=5 // pred_fallthru
        _
      %p224 = scmp.lt.s32.totalorder %s13, 2
      // Predicated region
      $region37: #{_forward.6} parent=5 // pred_check
        %p225 = pneg %p224
      $region38: #{_forward.6} parent=5 // pred_check_branch
        %227 = sbr.rel (%p225) target = $region40
      $region39: #{_forward.6} parent=5 // pred_region
        // Predicated region
        $region41: #{_forward.6} parent=39 // pred_check
          %p228 = pneg %p33
        $region42: #{_forward.6} parent=39 // pred_check_branch
          %230 = sbr.rel (%p228) target = $region44
        $region43: #{_forward.6} parent=39 // pred_region
          %s231 = smul.u32 4, %s13
          %s232 = ssub.s32 5, %s231
          %p233 = scmp.lt.s32.totalorder %s232, 4
          %s234 = scalar_select %p233, %s232, 4
          %s235 = smul.u32 64, %s234
          %s236 = smul.u32 %s235, 6
          %p237 = scmp.lt.s32.totalorder %s231, 4
          %s238 = scalar_select %p237, %s231, 4
          %s239 = smul.addr %s238, 6
          %s240 = smul.addr %s239, 4
          %s241 = scalar_lea.vmem %s0, %s240
          %s242 = smul.u32 4, %s13
          %s243 = ssub.s32 5, %s242
          %p244 = scmp.lt.s32.totalorder %s243, 4
          %s245 = scalar_select %p244, %s243, 4
          %s246 = smul.u32 64, %s245
          %s247 = smul.u32 %s246, 6
        $region44: #{_forward.6} parent=39 // pred_fallthru
          _
      $region40: #{_forward.6} parent=5 // pred_fallthru
        _
      %p248 = scmp.le.s32.totalorder 1, %s13
      %p249 = scmp.lt.s32.totalorder %s13, 3
      %p250 = pnand %p248, %p249
      %p251 = pneg %p250
      // Predicated region
      $region45: #{_forward.6} parent=5 // pred_check
        _
      $region46: #{_forward.6} parent=5 // pred_check_branch
        %253 = sbr.rel (%p250) target = $region48
      $region47: #{_forward.6} parent=5 // pred_region
        %s254 = ssub.s32 %s13, 1
        %s255 = smul.u32 4, %s18
        %s256 = ssub.s32 5, %s255
        %p257 = scmp.lt.s32.totalorder %s256, 4
        %s258 = scalar_select %p257, %s256, 4
        %s259 = smul.u32 64, %s258
        %s260 = smul.u32 %s259, 6
        %p261 = scmp.lt.s32.totalorder %s255, 4
        %s262 = scalar_select %p261, %s255, 4
        %s263 = smul.addr %s262, 6
        %s264 = smul.addr %s263, 4
        %s265 = scalar_lea.vmem %s0, %s264
        %p266 = pneg %p39
        %p267 = pneg %p36
        %p268 = pneg %p60
        %p269 = pneg %p57
        %p270 = pneg %p81
        %p271 = pneg %p78
        %p272 = pneg %p102
        %p273 = pneg %p99
        %p274 = pneg %p123
        %p275 = pneg %p120
        %p276 = pneg %p144
        %p277 = pneg %p141
        %p278 = pneg %p165
        %p279 = pneg %p162
        %p280 = pneg %p191
        %p281 = pneg %p188
        %s282 = sand.u32 %s178, 1
        %s283 = sand.u32 %s178, 1
        %s284 = smul.addr %s283, 32
        %s285 = scalar_lea.vmem [#allocation2], %s284
        %s286 = smul.u32 4, %s18
        %s287 = ssub.s32 5, %s286
        %p288 = scmp.lt.s32.totalorder %s287, 4
        %s289 = scalar_select %p288, %s287, 4
        %s290 = smul.u32 64, %s289
        %s291 = smul.u32 %s290, 6
        %p292 = scmp.lt.s32.totalorder %s286, 4
        %s293 = scalar_select %p292, %s286, 4
        %s294 = smul.addr %s293, 6
        %s295 = smul.addr %s294, 4
        %s296 = scalar_lea.vmem %s0, %s295
        %s297 = smul.u32 4, %s18
        %s298 = ssub.s32 5, %s297
        %p299 = scmp.lt.s32.totalorder %s298, 4
        %s300 = scalar_select %p299, %s298, 4
        %s301 = smul.u32 64, %s300
        %s302 = smul.u32 %s301, 6
        %s303 = smul.u32 4, %s18
        %s304 = ssub.s32 5, %s303
        %p305 = scmp.lt.s32.totalorder %s304, 4
        %s306 = scalar_select %p305, %s304, 4
        %s307 = smul.u32 128, %s306
        %v309 = vld [vmem:[%s296] sm:$0xff]
        %v310 = vld [vmem:[%s296 + $0x8] sm:$0xff]
        %v311 = vld [vmem:[%s296 + $0x10] sm:$0xff]
        %v312 = vld [vmem:[%s296 + $0x18] sm:$0xff]
        %v313 = vld [vmem:[%s296 + $0x20] sm:$0xff]
        %v314 = vld [vmem:[%s296 + $0x28] sm:$0xff]
        %v315 = vld [vmem:[%s296 + $0x30] sm:$0xff]
        %v316 = vld [vmem:[%s296 + $0x38] sm:$0xff]
        %v317 = vld [vmem:[%s296 + $0x40] sm:$0xff]
        %v318 = vld [vmem:[%s296 + $0x48] sm:$0xff]
        %v319 = vld [vmem:[%s296 + $0x50] sm:$0xff]
        %v320 = vld [vmem:[%s296 + $0x58] sm:$0xff]
        %v321 = vld [vmem:[%s1] sm:$0xf]
        %v322 = vld [vmem:[%s1 + $0x4] sm:$0xf]
        %v323 = vld [vmem:[%s1 + $0x8] sm:$0xf]
        %v324 = vld [vmem:[%s1 + $0xc] sm:$0xf]
        %v325 = vld [vmem:[%s1 + $0x10] sm:$0xf]
        %v326 = vld [vmem:[%s1 + $0x14] sm:$0xf]
        %v327 = vld [vmem:[%s1 + $0x18] sm:$0xf]
        %v328 = vld [vmem:[%s1 + $0x1c] sm:$0xf]
        %v329 = vld [vmem:[%s1 + $0x20] sm:$0xf]
        %v330 = vld [vmem:[%s1 + $0x24] sm:$0xf]
        %v331 = vld [vmem:[%s1 + $0x28] sm:$0xf]
        %v332 = vld [vmem:[%s1 + $0x2c] sm:$0xf]
        %v333 = vld [vmem:[%s1 + $0x30] sm:$0xf]
        %v334 = vld [vmem:[%s1 + $0x34] sm:$0xf]
        %v335 = vld [vmem:[%s1 + $0x38] sm:$0xf]
        %v336 = vld [vmem:[%s1 + $0x3c] sm:$0xf]
        %v337 = vld [vmem:[%s1 + $0x40] sm:$0xf]
        %v338 = vld [vmem:[%s1 + $0x44] sm:$0xf]
        %v339 = vld [vmem:[%s1 + $0x48] sm:$0xf]
        %v340 = vld [vmem:[%s1 + $0x4c] sm:$0xf]
        %v341 = vld [vmem:[%s1 + $0x50] sm:$0xf]
        %v342 = vld [vmem:[%s1 + $0x54] sm:$0xf]
        %v343 = vld [vmem:[%s1 + $0x58] sm:$0xf]
        %v344 = vld [vmem:[%s1 + $0x5c] sm:$0xf]
        %v345 = vld [vmem:[%s1 + $0x60] sm:$0xf]
        %v346 = vld [vmem:[%s1 + $0x64] sm:$0xf]
        %v347 = vld [vmem:[%s1 + $0x68] sm:$0xf]
        %v348 = vld [vmem:[%s1 + $0x6c] sm:$0xf]
        %v349 = vld [vmem:[%s1 + $0x70] sm:$0xf]
        %v350 = vld [vmem:[%s1 + $0x74] sm:$0xf]
        %v351 = vld [vmem:[%s1 + $0x78] sm:$0xf]
        %v352 = vld [vmem:[%s1 + $0x7c] sm:$0xf]
        %v353 = vld [vmem:[%s1 + $0x80] sm:$0xf]
        %v354 = vld [vmem:[%s1 + $0x84] sm:$0xf]
        %v355 = vld [vmem:[%s1 + $0x88] sm:$0xf]
        %v356 = vld [vmem:[%s1 + $0x8c] sm:$0xf]
        %v357 = vld [vmem:[%s1 + $0x90] sm:$0xf]
        %v358 = vld [vmem:[%s1 + $0x94] sm:$0xf]
        %v359 = vld [vmem:[%s1 + $0x98] sm:$0xf]
        %v360 = vld [vmem:[%s1 + $0x9c] sm:$0xf]
        %v361 = vld [vmem:[%s1 + $0xa0] sm:$0xf]
        %v362 = vld [vmem:[%s1 + $0xa4] sm:$0xf]
        %v363 = vld [vmem:[%s1 + $0xa8] sm:$0xf]
        %v364 = vld [vmem:[%s1 + $0xac] sm:$0xf]
        %v365 = vld [vmem:[%s1 + $0xb0] sm:$0xf]
        %v366 = vld [vmem:[%s1 + $0xb4] sm:$0xf]
        %v367 = vld [vmem:[%s1 + $0xb8] sm:$0xf]
        %v368 = vld [vmem:[%s1 + $0xbc] sm:$0xf]
        %v369 = vld [vmem:[%s1 + $0xc0] sm:$0xf]
        %v370 = vld [vmem:[%s1 + $0xc4] sm:$0xf]
        %v371 = vld [vmem:[%s1 + $0xc8] sm:$0xf]
        %v372 = vld [vmem:[%s1 + $0xcc] sm:$0xf]
        %v373 = vld [vmem:[%s1 + $0xd0] sm:$0xf]
        %v374 = vld [vmem:[%s1 + $0xd4] sm:$0xf]
        %v375 = vld [vmem:[%s1 + $0xd8] sm:$0xf]
        %v376 = vld [vmem:[%s1 + $0xdc] sm:$0xf]
        %v377 = vld [vmem:[%s1 + $0xe0] sm:$0xf]
        %v378 = vld [vmem:[%s1 + $0xe4] sm:$0xf]
        %v379 = vld [vmem:[%s1 + $0xe8] sm:$0xf]
        %v380 = vld [vmem:[%s1 + $0xec] sm:$0xf]
        %v381 = vld [vmem:[%s1 + $0xf0] sm:$0xf]
        %v382 = vld [vmem:[%s1 + $0xf4] sm:$0xf]
        %v383 = vld [vmem:[%s1 + $0xf8] sm:$0xf]
        %v384 = vld [vmem:[%s1 + $0xfc] sm:$0xf]
        %v385 = vld [vmem:[%s1 + $0x100] sm:$0xf]
        %v386 = vld [vmem:[%s1 + $0x104] sm:$0xf]
        %v387 = vld [vmem:[%s1 + $0x108] sm:$0xf]
        %v388 = vld [vmem:[%s1 + $0x10c] sm:$0xf]
        %v389 = vld [vmem:[%s1 + $0x110] sm:$0xf]
        %v390 = vld [vmem:[%s1 + $0x114] sm:$0xf]
        %v391 = vld [vmem:[%s1 + $0x118] sm:$0xf]
        %v392 = vld [vmem:[%s1 + $0x11c] sm:$0xf]
        %v393 = vld [vmem:[%s1 + $0x120] sm:$0xf]
        %v394 = vld [vmem:[%s1 + $0x124] sm:$0xf]
        %v395 = vld [vmem:[%s1 + $0x128] sm:$0xf]
        %v396 = vld [vmem:[%s1 + $0x12c] sm:$0xf]
        %v397 = vld [vmem:[%s1 + $0x130] sm:$0xf]
        %v398 = vld [vmem:[%s1 + $0x134] sm:$0xf]
        %v399 = vld [vmem:[%s1 + $0x138] sm:$0xf]
        %v400 = vld [vmem:[%s1 + $0x13c] sm:$0xf]
        %v401 = vld [vmem:[%s1 + $0x140] sm:$0xf]
        %v402 = vld [vmem:[%s1 + $0x144] sm:$0xf]
        %v403 = vld [vmem:[%s1 + $0x148] sm:$0xf]
        %v404 = vld [vmem:[%s1 + $0x14c] sm:$0xf]
        %v405 = vld [vmem:[%s1 + $0x150] sm:$0xf]
        %v406 = vld [vmem:[%s1 + $0x154] sm:$0xf]
        %v407 = vld [vmem:[%s1 + $0x158] sm:$0xf]
        %v408 = vld [vmem:[%s1 + $0x15c] sm:$0xf]
        %v409 = vld [vmem:[%s1 + $0x160] sm:$0xf]
        %v410 = vld [vmem:[%s1 + $0x164] sm:$0xf]
        %v411 = vld [vmem:[%s1 + $0x168] sm:$0xf]
        %v412 = vld [vmem:[%s1 + $0x16c] sm:$0xf]
        %v413 = vld [vmem:[%s1 + $0x170] sm:$0xf]
        %v414 = vld [vmem:[%s1 + $0x174] sm:$0xf]
        %v415 = vld [vmem:[%s1 + $0x178] sm:$0xf]
        %v416 = vld [vmem:[%s1 + $0x17c] sm:$0xf]
        %v417 = vld [vmem:[%s2] sm:$0x1]
        %v419 = vlaneseq
        %v420 = vshrl.u32 %v419, 7
        %v421 = vsub.s32 0, %v420
        %v422 = vrot.slane %v417, %v421
        %v436 = vunpack.c.l.b16 %v309
        %v437 = vunpack.c.h.b16 %v309
        %v438 = vunpack.c.l.b16 %v310
        %v439 = vunpack.c.h.b16 %v310
        %v440 = vunpack.c.l.b16 %v311
        %v441 = vunpack.c.h.b16 %v311
        %v442 = vunpack.c.l.b16 %v312
        %v443 = vunpack.c.h.b16 %v312
        %v444 = vunpack.c.l.b16 %v313
        %v445 = vunpack.c.h.b16 %v313
        %v446 = vunpack.c.l.b16 %v314
        %v447 = vunpack.c.h.b16 %v314
        %v448 = vunpack.c.l.b16 %v315
        %v449 = vunpack.c.h.b16 %v315
        %v450 = vunpack.c.l.b16 %v316
        %v451 = vunpack.c.h.b16 %v316
        %v452 = vunpack.c.l.b16 %v317
        %v453 = vunpack.c.h.b16 %v317
        %v454 = vunpack.c.l.b16 %v318
        %v455 = vunpack.c.h.b16 %v318
        %v456 = vunpack.c.l.b16 %v319
        %v457 = vunpack.c.h.b16 %v319
        %v458 = vunpack.c.l.b16 %v320
        %v459 = vunpack.c.h.b16 %v320
        %v460 = vpack.c.b16 %v442, %v436
        %v461 = vpack.c.b16 %v443, %v437
        %v462 = vpack.c.b16 %v444, %v438
        %v463 = vpack.c.b16 %v445, %v439
        %v464 = vpack.c.b16 %v446, %v440
        %v465 = vpack.c.b16 %v447, %v441
        %v466 = vpack.c.b16 %v454, %v448
        %v467 = vpack.c.b16 %v455, %v449
        %v468 = vpack.c.b16 %v456, %v450
        %v469 = vpack.c.b16 %v457, %v451
        %v470 = vpack.c.b16 %v458, %v452
        %v471 = vpack.c.b16 %v459, %v453
        %v580 = vunpack.c.l.b16 %v321
        %v581 = vunpack.c.l.b16 %v322
        %v582 = vunpack.c.l.b16 %v323
        %v583 = vunpack.c.l.b16 %v324
        %v584 = vunpack.c.l.b16 %v325
        %v585 = vunpack.c.l.b16 %v326
        %v586 = vunpack.c.l.b16 %v327
        %v587 = vunpack.c.l.b16 %v328
        %v588 = vunpack.c.l.b16 %v329
        %v589 = vunpack.c.l.b16 %v330
        %v590 = vunpack.c.l.b16 %v331
        %v591 = vunpack.c.l.b16 %v332
        %v592 = vunpack.c.l.b16 %v333
        %v593 = vunpack.c.l.b16 %v334
        %v594 = vunpack.c.l.b16 %v335
        %v595 = vunpack.c.l.b16 %v336
        %v596 = vunpack.c.l.b16 %v337
        %v597 = vunpack.c.l.b16 %v338
        %v598 = vunpack.c.l.b16 %v339
        %v599 = vunpack.c.l.b16 %v340
        %v600 = vunpack.c.l.b16 %v341
        %v601 = vunpack.c.l.b16 %v342
        %v602 = vunpack.c.l.b16 %v343
        %v603 = vunpack.c.l.b16 %v344
        %v604 = vunpack.c.l.b16 %v345
        %v605 = vunpack.c.l.b16 %v346
        %v606 = vunpack.c.l.b16 %v347
        %v607 = vunpack.c.l.b16 %v348
        %v608 = vunpack.c.l.b16 %v349
        %v609 = vunpack.c.l.b16 %v350
        %v610 = vunpack.c.l.b16 %v351
        %v611 = vunpack.c.l.b16 %v352
        %v612 = vunpack.c.l.b16 %v353
        %v613 = vunpack.c.l.b16 %v354
        %v614 = vunpack.c.l.b16 %v355
        %v615 = vunpack.c.l.b16 %v356
        %v616 = vunpack.c.l.b16 %v357
        %v617 = vunpack.c.l.b16 %v358
        %v618 = vunpack.c.l.b16 %v359
        %v619 = vunpack.c.l.b16 %v360
        %v620 = vunpack.c.l.b16 %v361
        %v621 = vunpack.c.l.b16 %v362
        %v622 = vunpack.c.l.b16 %v363
        %v623 = vunpack.c.l.b16 %v364
        %v624 = vunpack.c.l.b16 %v365
        %v625 = vunpack.c.l.b16 %v366
        %v626 = vunpack.c.l.b16 %v367
        %v627 = vunpack.c.l.b16 %v368
        %v628 = vunpack.c.l.b16 %v369
        %v629 = vunpack.c.l.b16 %v370
        %v630 = vunpack.c.l.b16 %v371
        %v631 = vunpack.c.l.b16 %v372
        %v632 = vunpack.c.l.b16 %v373
        %v633 = vunpack.c.l.b16 %v374
        %v634 = vunpack.c.l.b16 %v375
        %v635 = vunpack.c.l.b16 %v376
        %v636 = vunpack.c.l.b16 %v377
        %v637 = vunpack.c.l.b16 %v378
        %v638 = vunpack.c.l.b16 %v379
        %v639 = vunpack.c.l.b16 %v380
        %v640 = vunpack.c.l.b16 %v381
        %v641 = vunpack.c.l.b16 %v382
        %v642 = vunpack.c.l.b16 %v383
        %v643 = vunpack.c.l.b16 %v384
        %v644 = vunpack.c.l.b16 %v385
        %v645 = vunpack.c.l.b16 %v386
        %v646 = vunpack.c.l.b16 %v387
        %v647 = vunpack.c.l.b16 %v388
        %v648 = vunpack.c.l.b16 %v389
        %v649 = vunpack.c.l.b16 %v390
        %v650 = vunpack.c.l.b16 %v391
        %v651 = vunpack.c.l.b16 %v392
        %v652 = vunpack.c.l.b16 %v393
        %v653 = vunpack.c.l.b16 %v394
        %v654 = vunpack.c.l.b16 %v395
        %v655 = vunpack.c.l.b16 %v396
        %v656 = vunpack.c.l.b16 %v397
        %v657 = vunpack.c.l.b16 %v398
        %v658 = vunpack.c.l.b16 %v399
        %v659 = vunpack.c.l.b16 %v400
        %v660 = vunpack.c.l.b16 %v401
        %v661 = vunpack.c.l.b16 %v402
        %v662 = vunpack.c.l.b16 %v403
        %v663 = vunpack.c.l.b16 %v404
        %v664 = vunpack.c.l.b16 %v405
        %v665 = vunpack.c.l.b16 %v406
        %v666 = vunpack.c.l.b16 %v407
        %v667 = vunpack.c.l.b16 %v408
        %v668 = vunpack.c.l.b16 %v409
        %v669 = vunpack.c.l.b16 %v410
        %v670 = vunpack.c.l.b16 %v411
        %v671 = vunpack.c.l.b16 %v412
        %v672 = vunpack.c.l.b16 %v413
        %v673 = vunpack.c.l.b16 %v414
        %v674 = vunpack.c.l.b16 %v415
        %v675 = vunpack.c.l.b16 %v416
        %v676 = vpack.c.b16 %v581, %v580
        %v677 = vpack.c.b16 %v583, %v582
        %v678 = vpack.c.b16 %v585, %v584
        %v679 = vpack.c.b16 %v587, %v586
        %v680 = vpack.c.b16 %v589, %v588
        %v681 = vpack.c.b16 %v591, %v590
        %v682 = vpack.c.b16 %v593, %v592
        %v683 = vpack.c.b16 %v595, %v594
        %v684 = vpack.c.b16 %v597, %v596
        %v685 = vpack.c.b16 %v599, %v598
        %v686 = vpack.c.b16 %v601, %v600
        %v687 = vpack.c.b16 %v603, %v602
        %v688 = vpack.c.b16 %v605, %v604
        %v689 = vpack.c.b16 %v607, %v606
        %v690 = vpack.c.b16 %v609, %v608
        %v691 = vpack.c.b16 %v611, %v610
        %v692 = vpack.c.b16 %v613, %v612
        %v693 = vpack.c.b16 %v615, %v614
        %v694 = vpack.c.b16 %v617, %v616
        %v695 = vpack.c.b16 %v619, %v618
        %v696 = vpack.c.b16 %v621, %v620
        %v697 = vpack.c.b16 %v623, %v622
        %v698 = vpack.c.b16 %v625, %v624
        %v699 = vpack.c.b16 %v627, %v626
        %v700 = vpack.c.b16 %v629, %v628
        %v701 = vpack.c.b16 %v631, %v630
        %v702 = vpack.c.b16 %v633, %v632
        %v703 = vpack.c.b16 %v635, %v634
        %v704 = vpack.c.b16 %v637, %v636
        %v705 = vpack.c.b16 %v639, %v638
        %v706 = vpack.c.b16 %v641, %v640
        %v707 = vpack.c.b16 %v643, %v642
        %v708 = vpack.c.b16 %v645, %v644
        %v709 = vpack.c.b16 %v647, %v646
        %v710 = vpack.c.b16 %v649, %v648
        %v711 = vpack.c.b16 %v651, %v650
        %v712 = vpack.c.b16 %v653, %v652
        %v713 = vpack.c.b16 %v655, %v654
        %v714 = vpack.c.b16 %v657, %v656
        %v715 = vpack.c.b16 %v659, %v658
        %v716 = vpack.c.b16 %v661, %v660
        %v717 = vpack.c.b16 %v663, %v662
        %v718 = vpack.c.b16 %v665, %v664
        %v719 = vpack.c.b16 %v667, %v666
        %v720 = vpack.c.b16 %v669, %v668
        %v721 = vpack.c.b16 %v671, %v670
        %v722 = vpack.c.b16 %v673, %v672
        %v723 = vpack.c.b16 %v675, %v674
        %772 = vmatprep.subr.bf16.mxu0 0
        %773 = vmatpush1.bf16.msra.mxu0 %v676
        %774 = vmatprep.subr.bf16.mxu0 0
        %775 = vmatpush1.bf16.msra.mxu0 %v677
        %776 = vmatprep.subr.bf16.mxu0 0
        %777 = vmatpush1.bf16.msra.mxu0 %v678
        %778 = vmatprep.subr.bf16.mxu0 0
        %779 = vmatpush1.bf16.msra.mxu0 %v679
        %780 = vmatprep.subr.bf16.mxu0 0
        %781 = vmatpush1.bf16.msra.mxu0 %v680
        %782 = vmatprep.subr.bf16.mxu0 0
        %783 = vmatpush1.bf16.msra.mxu0 %v681
        %784 = vmatprep.subr.bf16.mxu0 0
        %785 = vmatpush1.bf16.msra.mxu0 %v682
        %786 = vmatprep.subr.bf16.mxu0 0
        %787 = vmatpush1.bf16.msra.mxu0 %v683
        %788 = vmatprep.subr.bf16.mxu0 0
        %789 = vmatpush1.bf16.msra.mxu0 %v684
        %790 = vmatprep.subr.bf16.mxu0 0
        %791 = vmatpush1.bf16.msra.mxu0 %v685
        %792 = vmatprep.subr.bf16.mxu0 0
        %793 = vmatpush1.bf16.msra.mxu0 %v686
        %794 = vmatprep.subr.bf16.mxu0 0
        %795 = vmatpush1.bf16.msra.mxu0 %v687
        %796 = vmatprep.subr.bf16.mxu0 0
        %797 = vmatpush1.bf16.msra.mxu0 %v688
        %798 = vmatprep.subr.bf16.mxu0 0
        %799 = vmatpush1.bf16.msra.mxu0 %v689
        %800 = vmatprep.subr.bf16.mxu0 0
        %801 = vmatpush1.bf16.msra.mxu0 %v690
        %802 = vmatprep.subr.bf16.mxu0 0
        %803 = vmatpush1.bf16.msra.mxu0 %v691
        %804 = vmatprep.mubr.bf16.mxu0 %v461
        %805 = vmatmul.mubr.bf16.gmra.mrb[0].mxu0 %v460
        %v806 = vpop.f32.mrb[0].mxu0
        %v807 = vadd.f32 %v422, %v806
        %v808 = vpop.f32.mrb[0].mxu0
        %v809 = vpop.f32.mrb[0].mxu0
        %v810 = vadd.f32 %v422, %v809
        %v811 = vpop.f32.mrb[0].mxu0
        %812 = vmatprep.mubr.bf16.mxu0 %v467
        %813 = vmatmul.mubr.bf16.gmra.mrb[0].mxu0 %v466
        %v814 = vpop.f32.mrb[0].mxu0
        %v815 = vadd.f32 %v422, %v814
        %v816 = vpop.f32.mrb[0].mxu0
        %v817 = vpop.f32.mrb[0].mxu0
        %v818 = vadd.f32 %v422, %v817
        %v819 = vpop.f32.mrb[0].mxu0
        %820 = vdwg.mxu0
        %821 = vmatprep.subr.bf16.mxu0 0
        %822 = vmatpush1.bf16.msra.mxu0 %v692
        %823 = vmatprep.subr.bf16.mxu0 0
        %824 = vmatpush1.bf16.msra.mxu0 %v693
        %825 = vmatprep.subr.bf16.mxu0 0
        %826 = vmatpush1.bf16.msra.mxu0 %v694
        %827 = vmatprep.subr.bf16.mxu0 0
        %828 = vmatpush1.bf16.msra.mxu0 %v695
        %829 = vmatprep.subr.bf16.mxu0 0
        %830 = vmatpush1.bf16.msra.mxu0 %v696
        %831 = vmatprep.subr.bf16.mxu0 0
        %832 = vmatpush1.bf16.msra.mxu0 %v697
        %833 = vmatprep.subr.bf16.mxu0 0
        %834 = vmatpush1.bf16.msra.mxu0 %v698
        %835 = vmatprep.subr.bf16.mxu0 0
        %836 = vmatpush1.bf16.msra.mxu0 %v699
        %837 = vmatprep.subr.bf16.mxu0 0
        %838 = vmatpush1.bf16.msra.mxu0 %v700
        %839 = vmatprep.subr.bf16.mxu0 0
        %840 = vmatpush1.bf16.msra.mxu0 %v701
        %841 = vmatprep.subr.bf16.mxu0 0
        %842 = vmatpush1.bf16.msra.mxu0 %v702
        %843 = vmatprep.subr.bf16.mxu0 0
        %844 = vmatpush1.bf16.msra.mxu0 %v703
        %845 = vmatprep.subr.bf16.mxu0 0
        %846 = vmatpush1.bf16.msra.mxu0 %v704
        %847 = vmatprep.subr.bf16.mxu0 0
        %848 = vmatpush1.bf16.msra.mxu0 %v705
        %849 = vmatprep.subr.bf16.mxu0 0
        %850 = vmatpush1.bf16.msra.mxu0 %v706
        %851 = vmatprep.subr.bf16.mxu0 0
        %852 = vmatpush1.bf16.msra.mxu0 %v707
        %853 = vmatprep.mubr.bf16.mxu0 %v463
        %854 = vmatmul.mubr.bf16.gmra.mrb[0].mxu0 %v462
        %v855 = vpop.f32.mrb[0].mxu0
        %v856 = vadd.f32 %v807, %v855
        %v857 = vpop.f32.mrb[0].mxu0
        %v858 = vpop.f32.mrb[0].mxu0
        %v859 = vadd.f32 %v810, %v858
        %v860 = vpop.f32.mrb[0].mxu0
        %861 = vmatprep.mubr.bf16.mxu0 %v469
        %862 = vmatmul.mubr.bf16.gmra.mrb[0].mxu0 %v468
        %v863 = vpop.f32.mrb[0].mxu0
        %v864 = vadd.f32 %v815, %v863
        %v865 = vpop.f32.mrb[0].mxu0
        %v866 = vpop.f32.mrb[0].mxu0
        %v867 = vadd.f32 %v818, %v866
        %v868 = vpop.f32.mrb[0].mxu0
        %869 = vdwg.mxu0
        %870 = vmatprep.subr.bf16.mxu0 0
        %871 = vmatpush1.bf16.msra.mxu0 %v708
        %872 = vmatprep.subr.bf16.mxu0 0
        %873 = vmatpush1.bf16.msra.mxu0 %v709
        %874 = vmatprep.subr.bf16.mxu0 0
        %875 = vmatpush1.bf16.msra.mxu0 %v710
        %876 = vmatprep.subr.bf16.mxu0 0
        %877 = vmatpush1.bf16.msra.mxu0 %v711
        %878 = vmatprep.subr.bf16.mxu0 0
        %879 = vmatpush1.bf16.msra.mxu0 %v712
        %880 = vmatprep.subr.bf16.mxu0 0
        %881 = vmatpush1.bf16.msra.mxu0 %v713
        %882 = vmatprep.subr.bf16.mxu0 0
        %883 = vmatpush1.bf16.msra.mxu0 %v714
        %884 = vmatprep.subr.bf16.mxu0 0
        %885 = vmatpush1.bf16.msra.mxu0 %v715
        %886 = vmatprep.subr.bf16.mxu0 0
        %887 = vmatpush1.bf16.msra.mxu0 %v716
        %888 = vmatprep.subr.bf16.mxu0 0
        %889 = vmatpush1.bf16.msra.mxu0 %v717
        %890 = vmatprep.subr.bf16.mxu0 0
        %891 = vmatpush1.bf16.msra.mxu0 %v718
        %892 = vmatprep.subr.bf16.mxu0 0
        %893 = vmatpush1.bf16.msra.mxu0 %v719
        %894 = vmatprep.subr.bf16.mxu0 0
        %895 = vmatpush1.bf16.msra.mxu0 %v720
        %896 = vmatprep.subr.bf16.mxu0 0
        %897 = vmatpush1.bf16.msra.mxu0 %v721
        %898 = vmatprep.subr.bf16.mxu0 0
        %899 = vmatpush1.bf16.msra.mxu0 %v722
        %900 = vmatprep.subr.bf16.mxu0 0
        %901 = vmatpush1.bf16.msra.mxu0 %v723
        %902 = vmatprep.mubr.bf16.mxu0 %v465
        %903 = vmatmul.mubr.bf16.gmra.mrb[0].mxu0 %v464
        %v904 = vpop.f32.mrb[0].mxu0
        %v905 = vadd.f32 %v856, %v904
        %v906 = vpop.f32.mrb[0].mxu0
        %v907 = vpop.f32.mrb[0].mxu0
        %v908 = vadd.f32 %v859, %v907
        %v909 = vpop.f32.mrb[0].mxu0
        %910 = vmatprep.mubr.bf16.mxu0 %v471
        %911 = vmatmul.mubr.bf16.gmra.mrb[0].mxu0 %v470
        %v912 = vpop.f32.mrb[0].mxu0
        %v913 = vadd.f32 %v864, %v912
        %v914 = vpop.f32.mrb[0].mxu0
        %v915 = vpop.f32.mrb[0].mxu0
        %v916 = vadd.f32 %v867, %v915
        %v917 = vpop.f32.mrb[0].mxu0
        %918 = vdwg.mxu0
        %v919 = vmax.f32 %v905, 0.0
        %v920 = vmax.f32 %v908, 0.0
        %v921 = vmax.f32 %v913, 0.0
        %v922 = vmax.f32 %v916, 0.0
        %v923 = vpack.c.bf16 %v920, %v919
        %v924 = vpack.c.bf16 %v922, %v921
        %v925 = vld [vmem:[%s3] sm:$0xf]
        %v926 = vld [vmem:[%s3 + $0x4] sm:$0xf]
        %v927 = vld [vmem:[%s3 + $0x8] sm:$0xf]
        %v928 = vld [vmem:[%s3 + $0xc] sm:$0xf]
        %v929 = vld [vmem:[%s3 + $0x10] sm:$0xf]
        %v930 = vld [vmem:[%s3 + $0x14] sm:$0xf]
        %v931 = vld [vmem:[%s3 + $0x18] sm:$0xf]
        %v932 = vld [vmem:[%s3 + $0x1c] sm:$0xf]
        %v933 = vld [vmem:[%s4] sm:$0x1]
        %v935 = vlaneseq
        %v936 = vshrl.u32 %v935, 7
        %v937 = vsub.s32 0, %v936
        %v938 = vrot.slane %v933, %v937
        %v948 = vunpack.c.l.b16 %v925
        %v949 = vunpack.c.l.b16 %v926
        %v950 = vunpack.c.l.b16 %v927
        %v951 = vunpack.c.l.b16 %v928
        %v952 = vunpack.c.l.b16 %v929
        %v953 = vunpack.c.l.b16 %v930
        %v954 = vunpack.c.l.b16 %v931
        %v955 = vunpack.c.l.b16 %v932
        %v956 = vpack.c.b16 %v949, %v948
        %v957 = vpack.c.b16 %v951, %v950
        %v958 = vpack.c.b16 %v953, %v952
        %v959 = vpack.c.b16 %v955, %v954
        %vm964 = vcmask 523264
        %v966 = vsel %vm964, %v923, 0
        %v969 = vsel %vm964, %v924, 0
        %971 = vmatprep.subr.bf16.mxu0 0
        %972 = vmatpush1.bf16.msra.mxu0 %v956
        %973 = vmatprep.subr.bf16.mxu0 0
        %974 = vmatpush1.bf16.msra.mxu0 %v957
        %975 = vmatprep.subr.bf16.mxu0 0
        %976 = vmatpush1.bf16.msra.mxu0 %v958
        %977 = vmatprep.subr.bf16.mxu0 0
        %978 = vmatpush1.bf16.msra.mxu0 %v959
        %979 = vmatprep.subr.bf16.mxu0 0
        %980 = vmatpush1.bf16.msra.mxu0 0
        %981 = vmatprep.subr.bf16.mxu0 0
        %982 = vmatpush1.bf16.msra.mxu0 0
        %983 = vmatprep.subr.bf16.mxu0 0
        %984 = vmatpush1.bf16.msra.mxu0 0
        %985 = vmatprep.subr.bf16.mxu0 0
        %986 = vmatpush1.bf16.msra.mxu0 0
        %987 = vmatprep.subr.bf16.mxu0 0
        %988 = vmatpush1.bf16.msra.mxu0 0
        %989 = vmatprep.subr.bf16.mxu0 0
        %990 = vmatpush1.bf16.msra.mxu0 0
        %991 = vmatprep.subr.bf16.mxu0 0
        %992 = vmatpush1.bf16.msra.mxu0 0
        %993 = vmatprep.subr.bf16.mxu0 0
        %994 = vmatpush1.bf16.msra.mxu0 0
        %995 = vmatprep.subr.bf16.mxu0 0
        %996 = vmatpush1.bf16.msra.mxu0 0
        %997 = vmatprep.subr.bf16.mxu0 0
        %998 = vmatpush1.bf16.msra.mxu0 0
        %999 = vmatprep.subr.bf16.mxu0 0
        %1000 = vmatpush1.bf16.msra.mxu0 0
        %1001 = vmatprep.subr.bf16.mxu0 0
        %1002 = vmatpush1.bf16.msra.mxu0 0
        %1003 = vmatprep.mubr.bf16.mxu0 0
        %1004 = vmatmul.mubr.bf16.gmra.mrb[0].mxu0 %v966
        %v1005 = vpop.f32.mrb[0].mxu0
        %v1006 = vadd.f32 %v938, %v1005
        %v1007 = vpop.f32.mrb[0].mxu0
        %v1008 = vpop.f32.mrb[0].mxu0
        %v1009 = vadd.f32 %v938, %v1008
        %v1010 = vpop.f32.mrb[0].mxu0
        %1011 = vmatprep.mubr.bf16.mxu0 0
        %1012 = vmatmul.mubr.bf16.gmra.mrb[0].mxu0 %v969
        %v1013 = vpop.f32.mrb[0].mxu0
        %v1014 = vadd.f32 %v938, %v1013
        %v1015 = vpop.f32.mrb[0].mxu0
        %v1016 = vpop.f32.mrb[0].mxu0
        %v1017 = vadd.f32 %v938, %v1016
        %v1018 = vpop.f32.mrb[0].mxu0
        %1019 = vdwg.mxu0
        %vm1020 = vcmask 261120
        %v1021 = vsel %vm1020, %v1006, 0.0
        %1022 = vadd.xlane.f32.xlu0 %v1021
        %v1023 = vpop.xlane.xlu0 %1022
        %v1024 = vsel %vm1020, %v1009, 0.0
        %1025 = vadd.xlane.f32.xlu0 %v1024
        %v1026 = vpop.xlane.xlu0 %1025
        %v1027 = vsel %vm1020, %v1014, 0.0
        %1028 = vadd.xlane.f32.xlu0 %v1027
        %v1029 = vpop.xlane.xlu0 %1028
        %v1030 = vsel %vm1020, %v1017, 0.0
        %1031 = vadd.xlane.f32.xlu0 %v1030
        %v1032 = vpop.xlane.xlu0 %1031
        %v1033 = vrcp.pop 32.0
        %v1034 = vmul.f32 %v1023, %v1033
        %v1035 = vmul.f32 %v1026, %v1033
        %v1036 = vmul.f32 %v1029, %v1033
        %v1037 = vmul.f32 %v1032, %v1033
        %v1038 = vsub.f32 %v1006, %v1034
        %v1039 = vsub.f32 %v1009, %v1035
        %v1040 = vsub.f32 %v1014, %v1036
        %v1041 = vsub.f32 %v1017, %v1037
        %v1042 = vmul.f32 %v1038, %v1038
        %v1043 = vmul.f32 %v1039, %v1039
        %v1044 = vmul.f32 %v1040, %v1040
        %v1045 = vmul.f32 %v1041, %v1041
        %v1046 = vsel %vm1020, %v1042, 0.0
        %1047 = vadd.xlane.f32.xlu0 %v1046
        %v1048 = vpop.xlane.xlu0 %1047
        %v1049 = vsel %vm1020, %v1043, 0.0
        %1050 = vadd.xlane.f32.xlu0 %v1049
        %v1051 = vpop.xlane.xlu0 %1050
        %v1052 = vsel %vm1020, %v1044, 0.0
        %1053 = vadd.xlane.f32.xlu0 %v1052
        %v1054 = vpop.xlane.xlu0 %1053
        %v1055 = vsel %vm1020, %v1045, 0.0
        %1056 = vadd.xlane.f32.xlu0 %v1055
        %v1057 = vpop.xlane.xlu0 %1056
        %v1058 = vmul.f32 %v1048, %v1033
        %v1059 = vmul.f32 %v1051, %v1033
        %v1060 = vmul.f32 %v1054, %v1033
        %v1061 = vmul.f32 %v1057, %v1033
        %v1062 = vadd.f32 %v1058, 1e-05
        %v1063 = vadd.f32 %v1059, 1e-05
        %v1064 = vadd.f32 %v1060, 1e-05
        %v1065 = vadd.f32 %v1061, 1e-05
        %v1066 = vrsqrt.pop %v1062
        %v1067 = vrsqrt.pop %v1063
        %v1068 = vrsqrt.pop %v1064
        %v1069 = vrsqrt.pop %v1065
        %v1070 = vmul.f32 %v1038, %v1066
        %v1071 = vmul.f32 %v1039, %v1067
        %v1072 = vmul.f32 %v1040, %v1068
        %v1073 = vmul.f32 %v1041, %v1069
        %v1074 = vld [vmem:[%s5] sm:$0x1]
        %v1076 = vlaneseq
        %v1077 = vshrl.u32 %v1076, 7
        %v1078 = vsub.s32 0, %v1077
        %v1079 = vrot.slane %v1074, %v1078
        %v1081 = vmul.f32 %v1070, %v1079
        %v1082 = vmul.f32 %v1071, %v1079
        %v1083 = vmul.f32 %v1072, %v1079
        %v1084 = vmul.f32 %v1073, %v1079
        %v1085 = vld [vmem:[%s6] sm:$0x1]
        %v1087 = vlaneseq
        %v1088 = vshrl.u32 %v1087, 7
        %v1089 = vsub.s32 0, %v1088
        %v1090 = vrot.slane %v1085, %v1089
        %v1092 = vadd.f32 %v1081, %v1090
        %v1093 = vadd.f32 %v1082, %v1090
        %v1094 = vadd.f32 %v1083, %v1090
        %v1095 = vadd.f32 %v1084, %v1090
        %1096 = vst.msk [vmem:[%s285] sm:$0xff] %vm1020, %v1092
        %1097 = vst.msk [vmem:[%s285 + $0x8] sm:$0xff] %vm1020, %v1093
        %1098 = vst.msk [vmem:[%s285 + $0x10] sm:$0xff] %vm1020, %v1094
        %1099 = vst.msk [vmem:[%s285 + $0x18] sm:$0xff] %vm1020, %v1095
        %s1100 = sand.u32 %s178, 1
        %s1101 = sand.u32 %s178, 1
        %s1102 = smul.addr %s1101, 32
        %s1103 = scalar_lea.vmem [#allocation2], %s1102
        // Predicated region
        $region49: #{_forward.6} parent=47 // pred_check
          %p1104 = pneg %p188
        $region50: #{_forward.6} parent=47 // pred_check_branch
          %1106 = sbr.rel (%p1104) target = $region52
        $region51: #{_forward.6} parent=47 // pred_region
          %s1107 = smul.u32 4, %s18
          %s1108 = ssub.s32 5, %s1107
          %p1109 = scmp.lt.s32.totalorder %s1108, 4
          %s1110 = scalar_select %p1109, %s1108, 4
          %s1111 = smul.u32 128, %s1110
          %p1112 = scmp.ne.s32.totalorder 0, %s1111
          %s1113 = smul.addr %s1107, 8
          %s1114 = scalar_lea.vmem %s7, %s1113
          // Predicated region
          $region53: #{_forward.6} parent=51 // pred_check
            %p1115 = pneg %p1112
          $region54: #{_forward.6} parent=51 // pred_check_branch
            %1117 = sbr.rel (%p1115) target = $region56
          $region55: #{_forward.6} parent=51 // pred_region
            // Predicated region
            $region57: #{_forward.6} parent=55 // pred_check
              _
            $region58: #{_forward.6} parent=55 // pred_check_branch
              %1119 = sbr.rel (0) target = $region60
            $region59: #{_forward.6} parent=55 // pred_region
              // Predicated region
              $region79: #{_forward.6} parent=59 // pred_check
                _
              $region80: #{_forward.6} parent=59 // pred_check_branch
                %1174 = sbr.rel (0) target = $region82
              $region81: #{_forward.6} parent=59 // pred_region
                %s1175 = sshrl.u32 %s1110, 2
                // While loop
                $region83: #{_forward.6} parent=81 // loop_pre_header
                  _
                $region84: #{_forward.6} parent=81 // loop_header
                  %s1177 = sphi 0, %s1179
                  %p1178 = scmp.ge.s32.totalorder %s1177, %s1175
                  %s1182 = sphi 0, %s1195
                  %s1183 = sphi %s1103, %s1198
                  %s1184 = sphi %s1114, %s1199
                $region85: #{_forward.6} parent=81 // loop_header_branch
                  %1181 = sbr.rel (%p1178) target = $region89
                $region86: #{_forward.6} parent=81 // loop_body
                  %v1185 = vld [vmem:[%s1183] sm:$0xff]
                  %1186 = vst [vmem:[%s1184] sm:$0xff] %v1185
                  %v1187 = vld [vmem:[%s1183 + $0x8] sm:$0xff]
                  %1188 = vst [vmem:[%s1184 + $0x8] sm:$0xff] %v1187
                  %v1189 = vld [vmem:[%s1183 + $0x10] sm:$0xff]
                  %1190 = vst [vmem:[%s1184 + $0x10] sm:$0xff] %v1189
                  %v1191 = vld [vmem:[%s1183 + $0x18] sm:$0xff]
                  %1192 = vst [vmem:[%s1184 + $0x18] sm:$0xff] %v1191
                  %s1193 = sadd.s32 1, %s1182
                  %p1194 = scmp.ge.s32.totalorder %s1193, %s1175
                  %s1195 = scalar_select %p1194, 0, %s1193
                  %s1196 = smul.u32 %s1195, 32
                  %s1197 = smul.u32 %s1195, 32
                  %s1198 = scalar_lea.vmem %s1103, %s1196 [#allocation2]
                  %s1199 = scalar_lea.vmem %s1114, %s1197
                $region87: #{_forward.6} parent=81 // loop_footer
                  %s1179 = sadd.s32 %s1177, 1
                $region88: #{_forward.6} parent=81 // loop_footer_branch
                  %1176 = sbr.rel target = $region84
                $region89: #{_forward.6} parent=81 // loop_exit
                  _
                %s1200 = sshrl.u32 %s1110, 2
                %s1201 = sand.u32 %s1110, 3
                %s1202 = smul.u32 %s1200, 4
                %s1203 = smul.u32 8, %s1202
                %s1204 = scalar_lea.vmem %s1103, %s1203 [#allocation2]
                %s1205 = smul.u32 8, %s1202
                %s1206 = scalar_lea.vmem %s1114, %s1205
                // While loop
                $region90: #{_forward.6} parent=81 // loop_pre_header
                  _
                $region91: #{_forward.6} parent=81 // loop_header
                  %s1208 = sphi 0, %s1210
                  %p1209 = scmp.ge.s32.totalorder %s1208, %s1201
                  %s1213 = sphi 0, %s1220
                  %s1214 = sphi %s1204, %s1223
                  %s1215 = sphi %s1206, %s1224
                $region92: #{_forward.6} parent=81 // loop_header_branch
                  %1212 = sbr.rel (%p1209) target = $region96
                $region93: #{_forward.6} parent=81 // loop_body
                  %v1216 = vld [vmem:[%s1214] sm:$0xff]
                  %1217 = vst [vmem:[%s1215] sm:$0xff] %v1216
                  %s1218 = sadd.s32 1, %s1213
                  %p1219 = scmp.ge.s32.totalorder %s1218, %s1201
                  %s1220 = scalar_select %p1219, 0, %s1218
                  %s1221 = smul.u32 %s1220, 8
                  %s1222 = smul.u32 %s1220, 8
                  %s1223 = scalar_lea.vmem %s1204, %s1221 [#allocation2]
                  %s1224 = scalar_lea.vmem %s1206, %s1222
                $region94: #{_forward.6} parent=81 // loop_footer
                  %s1210 = sadd.s32 %s1208, 1
                $region95: #{_forward.6} parent=81 // loop_footer_branch
                  %1207 = sbr.rel target = $region91
                $region96: #{_forward.6} parent=81 // loop_exit
                  _
              $region82: #{_forward.6} parent=59 // pred_fallthru
                _
              // Predicated region
              $region97: #{_forward.6} parent=59 // pred_check
                _
              $region98: #{_forward.6} parent=59 // pred_check_branch
                %1226 = sbr.rel target = $region100
              $region99: #{_forward.6} parent=59 // pred_region
                _
              $region100: #{_forward.6} parent=59 // pred_fallthru
                _
            $region60: #{_forward.6} parent=55 // pred_fallthru
              _
            // Predicated region
            $region61: #{_forward.6} parent=55 // pred_check
              _
            $region62: #{_forward.6} parent=55 // pred_check_branch
              %1121 = sbr.rel target = $region64
            $region63: #{_forward.6} parent=55 // pred_region
              %s1123 = sshrl.u32 %s1110, 2
              // While loop
              $region65: #{_forward.6} parent=63 // loop_pre_header
                _
              $region66: #{_forward.6} parent=63 // loop_header
                %s1125 = sphi 0, %s1127
                %p1126 = scmp.ge.s32.totalorder %s1125, %s1123
                %s1130 = sphi 0, %s1143
                %s1131 = sphi %s1103, %s1146
                %s1132 = sphi %s1114, %s1147
              $region67: #{_forward.6} parent=63 // loop_header_branch
                %1129 = sbr.rel (%p1126) target = $region71
              $region68: #{_forward.6} parent=63 // loop_body
                %v1133 = vld [vmem:[%s1131] sm:$0xff]
                %1134 = vst [vmem:[%s1132] sm:$0xff] %v1133
                %v1135 = vld [vmem:[%s1131 + $0x8] sm:$0xff]
                %1136 = vst [vmem:[%s1132 + $0x8] sm:$0xff] %v1135
                %v1137 = vld [vmem:[%s1131 + $0x10] sm:$0xff]
                %1138 = vst [vmem:[%s1132 + $0x10] sm:$0xff] %v1137
                %v1139 = vld [vmem:[%s1131 + $0x18] sm:$0xff]
                %1140 = vst [vmem:[%s1132 + $0x18] sm:$0xff] %v1139
                %s1141 = sadd.s32 1, %s1130
                %p1142 = scmp.ge.s32.totalorder %s1141, %s1123
                %s1143 = scalar_select %p1142, 0, %s1141
                %s1144 = smul.u32 %s1143, 32
                %s1145 = smul.u32 %s1143, 32
                %s1146 = scalar_lea.vmem %s1103, %s1144 [#allocation2]
                %s1147 = scalar_lea.vmem %s1114, %s1145
              $region69: #{_forward.6} parent=63 // loop_footer
                %s1127 = sadd.s32 %s1125, 1
              $region70: #{_forward.6} parent=63 // loop_footer_branch
                %1124 = sbr.rel target = $region66
              $region71: #{_forward.6} parent=63 // loop_exit
                _
              %s1148 = sshrl.u32 %s1110, 2
              %s1149 = sand.u32 %s1110, 3
              %s1150 = smul.u32 %s1148, 4
              %s1151 = smul.u32 8, %s1150
              %s1152 = scalar_lea.vmem %s1103, %s1151 [#allocation2]
              %s1153 = smul.u32 8, %s1150
              %s1154 = scalar_lea.vmem %s1114, %s1153
              // While loop
              $region72: #{_forward.6} parent=63 // loop_pre_header
                _
              $region73: #{_forward.6} parent=63 // loop_header
                %s1156 = sphi 0, %s1158
                %p1157 = scmp.ge.s32.totalorder %s1156, %s1149
                %s1161 = sphi 0, %s1168
                %s1162 = sphi %s1152, %s1171
                %s1163 = sphi %s1154, %s1172
              $region74: #{_forward.6} parent=63 // loop_header_branch
                %1160 = sbr.rel (%p1157) target = $region78
              $region75: #{_forward.6} parent=63 // loop_body
                %v1164 = vld [vmem:[%s1162] sm:$0xff]
                %1165 = vst [vmem:[%s1163] sm:$0xff] %v1164
                %s1166 = sadd.s32 1, %s1161
                %p1167 = scmp.ge.s32.totalorder %s1166, %s1149
                %s1168 = scalar_select %p1167, 0, %s1166
                %s1169 = smul.u32 %s1168, 8
                %s1170 = smul.u32 %s1168, 8
                %s1171 = scalar_lea.vmem %s1152, %s1169 [#allocation2]
                %s1172 = scalar_lea.vmem %s1154, %s1170
              $region76: #{_forward.6} parent=63 // loop_footer
                %s1158 = sadd.s32 %s1156, 1
              $region77: #{_forward.6} parent=63 // loop_footer_branch
                %1155 = sbr.rel target = $region73
              $region78: #{_forward.6} parent=63 // loop_exit
                _
            $region64: #{_forward.6} parent=55 // pred_fallthru
              _
          $region56: #{_forward.6} parent=51 // pred_fallthru
            _
          %1227 = vnop
        $region52: #{_forward.6} parent=47 // pred_fallthru
          _
      $region48: #{_forward.6} parent=5 // pred_fallthru
        _
      %p1228 = scmp.le.s32.totalorder 2, %s13
      // Predicated region
      $region101: #{_forward.6} parent=5 // pred_check
        %p1229 = pneg %p1228
      $region102: #{_forward.6} parent=5 // pred_check_branch
        %1231 = sbr.rel (%p1229) target = $region104
      $region103: #{_forward.6} parent=5 // pred_region
        %s1232 = ssub.s32 %s13, 2
        // Predicated region
        $region105: #{_forward.6} parent=103 // pred_check
          %p1233 = pneg %p194
        $region106: #{_forward.6} parent=103 // pred_check_branch
          %1235 = sbr.rel (%p1233) target = $region108
        $region107: #{_forward.6} parent=103 // pred_region
          %s1236 = sand.u32 %s179, 1
          %s1237 = sand.u32 %s179, 1
          %s1238 = smul.addr %s1237, 32
          %s1239 = scalar_lea.vmem [#allocation2], %s1238
        $region108: #{_forward.6} parent=103 // pred_fallthru
          _
      $region104: #{_forward.6} parent=5 // pred_fallthru
        _
    $region6: #{_forward.6} parent=1 // loop_footer
      %s17 = sadd.s32 1, %s13
    $region7: #{_forward.6} parent=1 // loop_footer_branch
      %12 = sbr.rel target = $region3
    $region8: #{_forward.6} parent=1 // loop_exit
      _

// kernel: custom-call.22
$region0: #{custom-call.22}
  %s0 = inlined_call_operand.vmem [shape: s32[3,2,4], index: 0, kind: output, shape index: {}]

// kernel: _forward.10
$region0: #{_forward.10}
  #allocation0 [shape = 'u32[]', space=smem, size = 0x4, offset = 0x4, fixed_abs, tag = 'smem constant byte address 0x4 - core index']
  #allocation1 [shape = 'u32[144,128]{1,0:T(1,128)}', space=vmem, size = 0x12000, scoped, tag = 'internal scratch']
  %s0 = inlined_call_operand.vmem [shape: f32[8,32], index: 0, kind: input, shape index: {}]
  %s1 = inlined_call_operand.vmem [shape: f32[8,6,32], index: 1, kind: input, shape index: {}]
  %s2 = inlined_call_operand.vmem [shape: s32[8,6], index: 2, kind: input, shape index: {}]
  %s3 = inlined_call_operand.vmem [shape: f32[32,32], index: 3, kind: input, shape index: {}]
  %s4 = inlined_call_operand.vmem [shape: f32[32,32], index: 4, kind: input, shape index: {}]
  %s5 = inlined_call_operand.vmem [shape: f32[1,32], index: 5, kind: input, shape index: {}]
  %s6 = inlined_call_operand.vmem [shape: f32[1,32], index: 6, kind: input, shape index: {}]
  %s7 = inlined_call_operand.vmem [shape: f32[8,6], index: 7, kind: output, shape index: {}]
  %s8 = sld [smem:[#allocation0]]
  $region38: #{_forward.10} parent=0
    _
  %s10 = ssub.s32 1, %s8
  %s11 = scalar_select 0, %s10, %s8
  // Predicated region
  $region2: #{_forward.10} parent=0 // pred_check
    _
  $region3: #{_forward.10} parent=0 // pred_check_branch
    %13 = sbr.rel (0) target = $region5
  $region4: #{_forward.10} parent=0 // pred_region
    _
  $region5: #{_forward.10} parent=0 // pred_fallthru
    _
  // Predicated region
  $region6: #{_forward.10} parent=0 // pred_check
    _
  $region7: #{_forward.10} parent=0 // pred_check_branch
    %15 = sbr.rel (0) target = $region9
  $region8: #{_forward.10} parent=0 // pred_region
    _
  $region9: #{_forward.10} parent=0 // pred_fallthru
    _
  // Predicated region
  $region10: #{_forward.10} parent=0 // pred_check
    _
  $region11: #{_forward.10} parent=0 // pred_check_branch
    %17 = sbr.rel (0) target = $region13
  $region12: #{_forward.10} parent=0 // pred_region
    _
  $region13: #{_forward.10} parent=0 // pred_fallthru
    _
  // Predicated region
  $region14: #{_forward.10} parent=0 // pred_check
    _
  $region15: #{_forward.10} parent=0 // pred_check_branch
    %19 = sbr.rel (0) target = $region17
  $region16: #{_forward.10} parent=0 // pred_region
    _
  $region17: #{_forward.10} parent=0 // pred_fallthru
    _
  // Predicated region
  $region18: #{_forward.10} parent=0 // pred_check
    _
  $region19: #{_forward.10} parent=0 // pred_check_branch
    %21 = sbr.rel (0) target = $region21
  $region20: #{_forward.10} parent=0 // pred_region
    _
  $region21: #{_forward.10} parent=0 // pred_fallthru
    _
  // Predicated region
  $region22: #{_forward.10} parent=0 // pred_check
    _
  $region23: #{_forward.10} parent=0 // pred_check_branch
    %23 = sbr.rel (0) target = $region25
  $region24: #{_forward.10} parent=0 // pred_region
    _
  $region25: #{_forward.10} parent=0 // pred_fallthru
    _
  // Predicated region
  $region26: #{_forward.10} parent=0 // pred_check
    _
  $region27: #{_forward.10} parent=0 // pred_check_branch
    %25 = sbr.rel (0) target = $region29
  $region28: #{_forward.10} parent=0 // pred_region
    _
  $region29: #{_forward.10} parent=0 // pred_fallthru
    _
  %v26 = vld [vmem:[%s0] sm:$0xff]
  %v27 = vld [vmem:[%s1] sm:$0x3f]
  %v28 = vld [vmem:[%s1 + $0x8] sm:$0x3f]
  %v29 = vld [vmem:[%s1 + $0x10] sm:$0x3f]
  %v30 = vld [vmem:[%s1 + $0x18] sm:$0x3f]
  %v31 = vld [vmem:[%s1 + $0x20] sm:$0x3f]
  %v32 = vld [vmem:[%s1 + $0x28] sm:$0x3f]
  %v33 = vld [vmem:[%s1 + $0x30] sm:$0x3f]
  %v34 = vld [vmem:[%s1 + $0x38] sm:$0x3f]
  %v35 = vld [vmem:[%s3] sm:$0xff]
  %v36 = vld [vmem:[%s3 + $0x8] sm:$0xff]
  %v37 = vld [vmem:[%s3 + $0x10] sm:$0xff]
  %v38 = vld [vmem:[%s3 + $0x18] sm:$0xff]
  %vm39 = vcmask 261120
  %v41 = vsel %vm39, %v26, 0
  %43 = vmatprep.subr.mxu0 0.0
  %44 = vmatpush1.msra.mxu0 %v35
  %45 = vmatprep.subr.mxu0 0.0
  %46 = vmatpush1.msra.mxu0 %v36
  %47 = vmatprep.subr.mxu0 0.0
  %48 = vmatpush1.msra.mxu0 %v37
  %49 = vmatprep.subr.mxu0 0.0
  %50 = vmatpush1.msra.mxu0 %v38
  %51 = vmatprep.subr.mxu0 0.0
  %52 = vmatpush1.msra.mxu0 0.0
  %53 = vmatprep.subr.mxu0 0.0
  %54 = vmatpush1.msra.mxu0 0.0
  %55 = vmatprep.subr.mxu0 0.0
  %56 = vmatpush1.msra.mxu0 0.0
  %57 = vmatprep.subr.mxu0 0.0
  %58 = vmatpush1.msra.mxu0 0.0
  %59 = vmatprep.subr.mxu0 0.0
  %60 = vmatpush1.msra.mxu0 0.0
  %61 = vmatprep.subr.mxu0 0.0
  %62 = vmatpush1.msra.mxu0 0.0
  %63 = vmatprep.subr.mxu0 0.0
  %64 = vmatpush1.msra.mxu0 0.0
  %65 = vmatprep.subr.mxu0 0.0
  %66 = vmatpush1.msra.mxu0 0.0
  %67 = vmatprep.subr.mxu0 0.0
  %68 = vmatpush1.msra.mxu0 0.0
  %69 = vmatprep.subr.mxu0 0.0
  %70 = vmatpush1.msra.mxu0 0.0
  %71 = vmatprep.subr.mxu0 0.0
  %72 = vmatpush1.msra.mxu0 0.0
  %73 = vmatprep.subr.mxu0 0.0
  %74 = vmatpush1.msra.mxu0 0.0
  %75 = vmatprep.subr.mxu0 0.0
  %76 = vmatpush1.msra.mxu0 0.0
  %77 = vmatprep.subr.mxu0 0.0
  %78 = vmatpush1.msra.mxu0 0.0
  %79 = vmatprep.subr.mxu0 0.0
  %80 = vmatpush1.msra.mxu0 0.0
  %81 = vmatprep.subr.mxu0 0.0
  %82 = vmatpush1.msra.mxu0 0.0
  %83 = vmatprep.subr.mxu0 0.0
  %84 = vmatpush1.msra.mxu0 0.0
  %85 = vmatprep.subr.mxu0 0.0
  %86 = vmatpush1.msra.mxu0 0.0
  %87 = vmatprep.subr.mxu0 0.0
  %88 = vmatpush1.msra.mxu0 0.0
  %89 = vmatprep.subr.mxu0 0.0
  %90 = vmatpush1.msra.mxu0 0.0
  %91 = vmatprep.subr.mxu0 0.0
  %92 = vmatpush1.msra.mxu0 0.0
  %93 = vmatprep.subr.mxu0 0.0
  %94 = vmatpush1.msra.mxu0 0.0
  %95 = vmatprep.subr.mxu0 0.0
  %96 = vmatpush1.msra.mxu0 0.0
  %97 = vmatprep.subr.mxu0 0.0
  %98 = vmatpush1.msra.mxu0 0.0
  %99 = vmatprep.subr.mxu0 0.0
  %100 = vmatpush1.msra.mxu0 0.0
  %101 = vmatprep.subr.mxu0 0.0
  %102 = vmatpush1.msra.mxu0 0.0
  %103 = vmatprep.subr.mxu0 0.0
  %104 = vmatpush1.msra.mxu0 0.0
  %105 = vmatprep.subr.mxu0 0.0
  %106 = vmatpush1.msra.mxu0 0.0
  %107 = vmatprep.mubr.f32.mxu0 0.0
  %108 = vmatmul.mubr.f32.gmra.mrb[0].mxu0 %v41
  %v109 = vpop.f32.mrb[0].mxu0
  %v110 = vadd.f32 0.0, %v109
  %v111 = vpop.f32.mrb[0].mxu0
  %112 = vdwg.mxu0
  %v121 = vcombine.high %v27, %v27
  %v123 = vunpack.c.l.s4 1983009808
  %v124 = vunpack.c.0.s8 %v123
  %v125 = vlaneseq
  %v126 = vshrl.u32 %v125, 7
  %v127 = vsub.s32 %v124, %v126
  %v128 = vrot.slane %v27, %v127
  %v130 = vunpack.c.l.s4 1983009808
  %v131 = vunpack.c.0.s8 %v130
  %v132 = vlaneseq
  %v133 = vshrl.u32 %v132, 7
  %v134 = vsub.s32 %v131, %v133
  %v135 = vrot.slane %v121, %v134
  %v136 = vcombine.high %v128, %v128
  %v137 = vcombine.high %v28, %v28
  %v139 = vunpack.c.l.s4 1983009808
  %v140 = vunpack.c.0.s8 %v139
  %v141 = vlaneseq
  %v142 = vshrl.u32 %v141, 7
  %v143 = vsub.s32 %v140, %v142
  %v144 = vrot.slane %v28, %v143
  %v146 = vunpack.c.l.s4 1983009808
  %v147 = vunpack.c.0.s8 %v146
  %v148 = vlaneseq
  %v149 = vshrl.u32 %v148, 7
  %v150 = vsub.s32 %v147, %v149
  %v151 = vrot.slane %v137, %v150
  %v152 = vcombine.high %v144, %v144
  %v153 = vcombine.high %v29, %v29
  %v155 = vunpack.c.l.s4 1983009808
  %v156 = vunpack.c.0.s8 %v155
  %v157 = vlaneseq
  %v158 = vshrl.u32 %v157, 7
  %v159 = vsub.s32 %v156, %v158
  %v160 = vrot.slane %v29, %v159
  %v162 = vunpack.c.l.s4 1983009808
  %v163 = vunpack.c.0.s8 %v162
  %v164 = vlaneseq
  %v165 = vshrl.u32 %v164, 7
  %v166 = vsub.s32 %v163, %v165
  %v167 = vrot.slane %v153, %v166
  %v168 = vcombine.high %v160, %v160
  %v169 = vcombine.high %v30, %v30
  %v171 = vunpack.c.l.s4 1983009808
  %v172 = vunpack.c.0.s8 %v171
  %v173 = vlaneseq
  %v174 = vshrl.u32 %v173, 7
  %v175 = vsub.s32 %v172, %v174
  %v176 = vrot.slane %v30, %v175
  %v178 = vunpack.c.l.s4 1983009808
  %v179 = vunpack.c.0.s8 %v178
  %v180 = vlaneseq
  %v181 = vshrl.u32 %v180, 7
  %v182 = vsub.s32 %v179, %v181
  %v183 = vrot.slane %v169, %v182
  %v184 = vcombine.high %v176, %v176
  %v185 = vcombine.high %v31, %v31
  %v187 = vunpack.c.l.s4 1983009808
  %v188 = vunpack.c.0.s8 %v187
  %v189 = vlaneseq
  %v190 = vshrl.u32 %v189, 7
  %v191 = vsub.s32 %v188, %v190
  %v192 = vrot.slane %v31, %v191
  %v194 = vunpack.c.l.s4 1983009808
  %v195 = vunpack.c.0.s8 %v194
  %v196 = vlaneseq
  %v197 = vshrl.u32 %v196, 7
  %v198 = vsub.s32 %v195, %v197
  %v199 = vrot.slane %v185, %v198
  %v200 = vcombine.high %v192, %v192
  %v201 = vcombine.high %v32, %v32
  %v203 = vunpack.c.l.s4 1983009808
  %v204 = vunpack.c.0.s8 %v203
  %v205 = vlaneseq
  %v206 = vshrl.u32 %v205, 7
  %v207 = vsub.s32 %v204, %v206
  %v208 = vrot.slane %v32, %v207
  %v210 = vunpack.c.l.s4 1983009808
  %v211 = vunpack.c.0.s8 %v210
  %v212 = vlaneseq
  %v213 = vshrl.u32 %v212, 7
  %v214 = vsub.s32 %v211, %v213
  %v215 = vrot.slane %v201, %v214
  %v216 = vcombine.high %v208, %v208
  %v217 = vcombine.high %v33, %v33
  %v219 = vunpack.c.l.s4 1983009808
  %v220 = vunpack.c.0.s8 %v219
  %v221 = vlaneseq
  %v222 = vshrl.u32 %v221, 7
  %v223 = vsub.s32 %v220, %v222
  %v224 = vrot.slane %v33, %v223
  %v226 = vunpack.c.l.s4 1983009808
  %v227 = vunpack.c.0.s8 %v226
  %v228 = vlaneseq
  %v229 = vshrl.u32 %v228, 7
  %v230 = vsub.s32 %v227, %v229
  %v231 = vrot.slane %v217, %v230
  %v232 = vcombine.high %v224, %v224
  %v233 = vcombine.high %v34, %v34
  %v235 = vunpack.c.l.s4 1983009808
  %v236 = vunpack.c.0.s8 %v235
  %v237 = vlaneseq
  %v238 = vshrl.u32 %v237, 7
  %v239 = vsub.s32 %v236, %v238
  %v240 = vrot.slane %v34, %v239
  %v242 = vunpack.c.l.s4 1983009808
  %v243 = vunpack.c.0.s8 %v242
  %v244 = vlaneseq
  %v245 = vshrl.u32 %v244, 7
  %v246 = vsub.s32 %v243, %v245
  %v247 = vrot.slane %v233, %v246
  %v248 = vcombine.high %v240, %v240
  %v249 = vld [vmem:[%s4] sm:$0xff]
  %v250 = vld [vmem:[%s4 + $0x8] sm:$0xff]
  %v251 = vld [vmem:[%s4 + $0x10] sm:$0xff]
  %v252 = vld [vmem:[%s4 + $0x18] sm:$0xff]
  %v253 = vcombine.low %v128, %v136
  %v254 = vcombine.low %v135, %v144
  %v256 = vunpack.c.l.s4 1983009808
  %v257 = vunpack.c.0.s8 %v256
  %v258 = vlaneseq
  %v259 = vshrl.u32 %v258, 7
  %v260 = vsub.s32 %v257, %v259
  %v261 = vrot.slane %v253, %v260
  %v263 = vunpack.c.l.s4 1983009808
  %v264 = vunpack.c.0.s8 %v263
  %v265 = vlaneseq
  %v266 = vshrl.u32 %v265, 7
  %v267 = vsub.s32 %v264, %v266
  %v268 = vrot.slane %v254, %v267
  %v269 = vcombine.low %v261, %v268
  %v270 = vcombine.low %v152, %v151
  %v271 = vcombine.low %v160, %v168
  %v273 = vunpack.c.l.s4 1983009808
  %v274 = vunpack.c.0.s8 %v273
  %v275 = vlaneseq
  %v276 = vshrl.u32 %v275, 7
  %v277 = vsub.s32 %v274, %v276
  %v278 = vrot.slane %v270, %v277
  %v280 = vunpack.c.l.s4 1983009808
  %v281 = vunpack.c.0.s8 %v280
  %v282 = vlaneseq
  %v283 = vshrl.u32 %v282, 7
  %v284 = vsub.s32 %v281, %v283
  %v285 = vrot.slane %v271, %v284
  %v286 = vcombine.low %v278, %v285
  %v287 = vcombine.low %v167, %v176
  %v288 = vcombine.low %v184, %v183
  %v290 = vunpack.c.l.s4 1983009808
  %v291 = vunpack.c.0.s8 %v290
  %v292 = vlaneseq
  %v293 = vshrl.u32 %v292, 7
  %v294 = vsub.s32 %v291, %v293
  %v295 = vrot.slane %v287, %v294
  %v297 = vunpack.c.l.s4 1983009808
  %v298 = vunpack.c.0.s8 %v297
  %v299 = vlaneseq
  %v300 = vshrl.u32 %v299, 7
  %v301 = vsub.s32 %v298, %v300
  %v302 = vrot.slane %v288, %v301
  %v303 = vcombine.low %v295, %v302
  %v304 = vcombine.low %v192, %v200
  %v305 = vcombine.low %v199, %v208
  %v307 = vunpack.c.l.s4 1983009808
  %v308 = vunpack.c.0.s8 %v307
  %v309 = vlaneseq
  %v310 = vshrl.u32 %v309, 7
  %v311 = vsub.s32 %v308, %v310
  %v312 = vrot.slane %v304, %v311
  %v314 = vunpack.c.l.s4 1983009808
  %v315 = vunpack.c.0.s8 %v314
  %v316 = vlaneseq
  %v317 = vshrl.u32 %v316, 7
  %v318 = vsub.s32 %v315, %v317
  %v319 = vrot.slane %v305, %v318
  %v320 = vcombine.low %v312, %v319
  %v321 = vcombine.low %v216, %v215
  %v322 = vcombine.low %v224, %v232
  %v324 = vunpack.c.l.s4 1983009808
  %v325 = vunpack.c.0.s8 %v324
  %v326 = vlaneseq
  %v327 = vshrl.u32 %v326, 7
  %v328 = vsub.s32 %v325, %v327
  %v329 = vrot.slane %v321, %v328
  %v331 = vunpack.c.l.s4 1983009808
  %v332 = vunpack.c.0.s8 %v331
  %v333 = vlaneseq
  %v334 = vshrl.u32 %v333, 7
  %v335 = vsub.s32 %v332, %v334
  %v336 = vrot.slane %v322, %v335
  %v337 = vcombine.low %v329, %v336
  %v338 = vcombine.low %v231, %v240
  %v339 = vcombine.low %v248, %v247
  %v341 = vunpack.c.l.s4 1983009808
  %v342 = vunpack.c.0.s8 %v341
  %v343 = vlaneseq
  %v344 = vshrl.u32 %v343, 7
  %v345 = vsub.s32 %v342, %v344
  %v346 = vrot.slane %v338, %v345
  %v348 = vunpack.c.l.s4 1983009808
  %v349 = vunpack.c.0.s8 %v348
  %v350 = vlaneseq
  %v351 = vshrl.u32 %v350, 7
  %v352 = vsub.s32 %v349, %v351
  %v353 = vrot.slane %v339, %v352
  %v354 = vcombine.low %v346, %v353
  %v355 = vsel %vm39, %v269, 0
  %v357 = vsel %vm39, %v286, 0
  %v359 = vsel %vm39, %v303, 0
  %v361 = vsel %vm39, %v320, 0
  %v363 = vsel %vm39, %v337, 0
  %v365 = vsel %vm39, %v354, 0
  %367 = vmatprep.subr.mxu0 0.0
  %368 = vmatpush1.msra.mxu0 %v249
  %369 = vmatprep.subr.mxu0 0.0
  %370 = vmatpush1.msra.mxu0 %v250
  %371 = vmatprep.subr.mxu0 0.0
  %372 = vmatpush1.msra.mxu0 %v251
  %373 = vmatprep.subr.mxu0 0.0
  %374 = vmatpush1.msra.mxu0 %v252
  %375 = vmatprep.subr.mxu0 0.0
  %376 = vmatpush1.msra.mxu0 0.0
  %377 = vmatprep.subr.mxu0 0.0
  %378 = vmatpush1.msra.mxu0 0.0
  %379 = vmatprep.subr.mxu0 0.0
  %380 = vmatpush1.msra.mxu0 0.0
  %381 = vmatprep.subr.mxu0 0.0
  %382 = vmatpush1.msra.mxu0 0.0
  %383 = vmatprep.subr.mxu0 0.0
  %384 = vmatpush1.msra.mxu0 0.0
  %385 = vmatprep.subr.mxu0 0.0
  %386 = vmatpush1.msra.mxu0 0.0
  %387 = vmatprep.subr.mxu0 0.0
  %388 = vmatpush1.msra.mxu0 0.0
  %389 = vmatprep.subr.mxu0 0.0
  %390 = vmatpush1.msra.mxu0 0.0
  %391 = vmatprep.subr.mxu0 0.0
  %392 = vmatpush1.msra.mxu0 0.0
  %393 = vmatprep.subr.mxu0 0.0
  %394 = vmatpush1.msra.mxu0 0.0
  %395 = vmatprep.subr.mxu0 0.0
  %396 = vmatpush1.msra.mxu0 0.0
  %397 = vmatprep.subr.mxu0 0.0
  %398 = vmatpush1.msra.mxu0 0.0
  %399 = vmatprep.subr.mxu0 0.0
  %400 = vmatpush1.msra.mxu0 0.0
  %401 = vmatprep.subr.mxu0 0.0
  %402 = vmatpush1.msra.mxu0 0.0
  %403 = vmatprep.subr.mxu0 0.0
  %404 = vmatpush1.msra.mxu0 0.0
  %405 = vmatprep.subr.mxu0 0.0
  %406 = vmatpush1.msra.mxu0 0.0
  %407 = vmatprep.subr.mxu0 0.0
  %408 = vmatpush1.msra.mxu0 0.0
  %409 = vmatprep.subr.mxu0 0.0
  %410 = vmatpush1.msra.mxu0 0.0
  %411 = vmatprep.subr.mxu0 0.0
  %412 = vmatpush1.msra.mxu0 0.0
  %413 = vmatprep.subr.mxu0 0.0
  %414 = vmatpush1.msra.mxu0 0.0
  %415 = vmatprep.subr.mxu0 0.0
  %416 = vmatpush1.msra.mxu0 0.0
  %417 = vmatprep.subr.mxu0 0.0
  %418 = vmatpush1.msra.mxu0 0.0
  %419 = vmatprep.subr.mxu0 0.0
  %420 = vmatpush1.msra.mxu0 0.0
  %421 = vmatprep.subr.mxu0 0.0
  %422 = vmatpush1.msra.mxu0 0.0
  %423 = vmatprep.subr.mxu0 0.0
  %424 = vmatpush1.msra.mxu0 0.0
  %425 = vmatprep.subr.mxu0 0.0
  %426 = vmatpush1.msra.mxu0 0.0
  %427 = vmatprep.subr.mxu0 0.0
  %428 = vmatpush1.msra.mxu0 0.0
  %429 = vmatprep.subr.mxu0 0.0
  %430 = vmatpush1.msra.mxu0 0.0
  %431 = vmatprep.mubr.f32.mxu0 0.0
  %432 = vmatmul.mubr.f32.gmra.mrb[0].mxu0 %v355
  %v433 = vpop.f32.mrb[0].mxu0
  %v434 = vadd.f32 0.0, %v433
  %v435 = vpop.f32.mrb[0].mxu0
  %436 = vmatprep.mubr.f32.mxu0 0.0
  %437 = vmatmul.mubr.f32.gmra.mrb[0].mxu0 %v357
  %v438 = vpop.f32.mrb[0].mxu0
  %v439 = vadd.f32 0.0, %v438
  %v440 = vpop.f32.mrb[0].mxu0
  %441 = vmatprep.mubr.f32.mxu0 0.0
  %442 = vmatmul.mubr.f32.gmra.mrb[0].mxu0 %v359
  %v443 = vpop.f32.mrb[0].mxu0
  %v444 = vadd.f32 0.0, %v443
  %v445 = vpop.f32.mrb[0].mxu0
  %446 = vmatprep.mubr.f32.mxu0 0.0
  %447 = vmatmul.mubr.f32.gmra.mrb[0].mxu0 %v361
  %v448 = vpop.f32.mrb[0].mxu0
  %v449 = vadd.f32 0.0, %v448
  %v450 = vpop.f32.mrb[0].mxu0
  %451 = vmatprep.mubr.f32.mxu0 0.0
  %452 = vmatmul.mubr.f32.gmra.mrb[0].mxu0 %v363
  %v453 = vpop.f32.mrb[0].mxu0
  %v454 = vadd.f32 0.0, %v453
  %v455 = vpop.f32.mrb[0].mxu0
  %456 = vmatprep.mubr.f32.mxu0 0.0
  %457 = vmatmul.mubr.f32.gmra.mrb[0].mxu0 %v365
  %v458 = vpop.f32.mrb[0].mxu0
  %v459 = vadd.f32 0.0, %v458
  %v460 = vpop.f32.mrb[0].mxu0
  %461 = vdwg.mxu0
  %v468 = vcombine.high %v434, %v434
  %v470 = vunpack.c.l.s4 1983009808
  %v471 = vunpack.c.0.s8 %v470
  %v472 = vlaneseq
  %v473 = vshrl.u32 %v472, 7
  %v474 = vsub.s32 %v471, %v473
  %v475 = vrot.slane %v434, %v474
  %v477 = vunpack.c.l.s4 1983009808
  %v478 = vunpack.c.0.s8 %v477
  %v479 = vlaneseq
  %v480 = vshrl.u32 %v479, 7
  %v481 = vsub.s32 %v478, %v480
  %v482 = vrot.slane %v468, %v481
  %v483 = vcombine.high %v475, %v475
  %v484 = vcombine.high %v482, %v482
  %v485 = vcombine.high %v439, %v439
  %v487 = vunpack.c.l.s4 1983009808
  %v488 = vunpack.c.0.s8 %v487
  %v489 = vlaneseq
  %v490 = vshrl.u32 %v489, 7
  %v491 = vsub.s32 %v488, %v490
  %v492 = vrot.slane %v439, %v491
  %v494 = vunpack.c.l.s4 1983009808
  %v495 = vunpack.c.0.s8 %v494
  %v496 = vlaneseq
  %v497 = vshrl.u32 %v496, 7
  %v498 = vsub.s32 %v495, %v497
  %v499 = vrot.slane %v485, %v498
  %v500 = vcombine.high %v492, %v492
  %v501 = vcombine.high %v499, %v499
  %v502 = vcombine.high %v444, %v444
  %v504 = vunpack.c.l.s4 1983009808
  %v505 = vunpack.c.0.s8 %v504
  %v506 = vlaneseq
  %v507 = vshrl.u32 %v506, 7
  %v508 = vsub.s32 %v505, %v507
  %v509 = vrot.slane %v444, %v508
  %v511 = vunpack.c.l.s4 1983009808
  %v512 = vunpack.c.0.s8 %v511
  %v513 = vlaneseq
  %v514 = vshrl.u32 %v513, 7
  %v515 = vsub.s32 %v512, %v514
  %v516 = vrot.slane %v502, %v515
  %v517 = vcombine.high %v509, %v509
  %v518 = vcombine.high %v516, %v516
  %v519 = vcombine.high %v449, %v449
  %v521 = vunpack.c.l.s4 1983009808
  %v522 = vunpack.c.0.s8 %v521
  %v523 = vlaneseq
  %v524 = vshrl.u32 %v523, 7
  %v525 = vsub.s32 %v522, %v524
  %v526 = vrot.slane %v449, %v525
  %v528 = vunpack.c.l.s4 1983009808
  %v529 = vunpack.c.0.s8 %v528
  %v530 = vlaneseq
  %v531 = vshrl.u32 %v530, 7
  %v532 = vsub.s32 %v529, %v531
  %v533 = vrot.slane %v519, %v532
  %v534 = vcombine.high %v526, %v526
  %v535 = vcombine.high %v533, %v533
  %v536 = vcombine.high %v454, %v454
  %v538 = vunpack.c.l.s4 1983009808
  %v539 = vunpack.c.0.s8 %v538
  %v540 = vlaneseq
  %v541 = vshrl.u32 %v540, 7
  %v542 = vsub.s32 %v539, %v541
  %v543 = vrot.slane %v454, %v542
  %v545 = vunpack.c.l.s4 1983009808
  %v546 = vunpack.c.0.s8 %v545
  %v547 = vlaneseq
  %v548 = vshrl.u32 %v547, 7
  %v549 = vsub.s32 %v546, %v548
  %v550 = vrot.slane %v536, %v549
  %v551 = vcombine.high %v543, %v543
  %v552 = vcombine.high %v550, %v550
  %v553 = vcombine.high %v459, %v459
  %v555 = vunpack.c.l.s4 1983009808
  %v556 = vunpack.c.0.s8 %v555
  %v557 = vlaneseq
  %v558 = vshrl.u32 %v557, 7
  %v559 = vsub.s32 %v556, %v558
  %v560 = vrot.slane %v459, %v559
  %v562 = vunpack.c.l.s4 1983009808
  %v563 = vunpack.c.0.s8 %v562
  %v564 = vlaneseq
  %v565 = vshrl.u32 %v564, 7
  %v566 = vsub.s32 %v563, %v565
  %v567 = vrot.slane %v553, %v566
  %v568 = vcombine.high %v560, %v560
  %v569 = vcombine.high %v567, %v567
  %v571 = vcombine.high %v110, %v110
  %v573 = vunpack.c.l.s4 1966171168
  %v574 = vunpack.c.0.s8 %v573
  %v575 = vlaneseq
  %v576 = vshrl.u32 %v575, 7
  %v577 = vsub.s32 %v574, %v576
  %v578 = vrot.slane %v110, %v577
  %v580 = vunpack.c.l.s4 1966171168
  %v581 = vunpack.c.0.s8 %v580
  %v582 = vlaneseq
  %v583 = vshrl.u32 %v582, 7
  %v584 = vsub.s32 %v581, %v583
  %v585 = vrot.slane %v571, %v584
  %v586 = vcombine.high %v578, %v578
  %v587 = vcombine.high %v585, %v585
  %v589 = vunpack.c.l.s4 1966171168
  %v590 = vunpack.c.0.s8 %v589
  %v591 = vlaneseq
  %v592 = vshrl.u32 %v591, 7
  %v593 = vsub.s32 %v590, %v592
  %v594 = vrot.slane %v578, %v593
  %v596 = vunpack.c.l.s4 1966171168
  %v597 = vunpack.c.0.s8 %v596
  %v598 = vlaneseq
  %v599 = vshrl.u32 %v598, 7
  %v600 = vsub.s32 %v597, %v599
  %v601 = vrot.slane %v585, %v600
  %v603 = vunpack.c.l.s4 1966171168
  %v604 = vunpack.c.0.s8 %v603
  %v605 = vlaneseq
  %v606 = vshrl.u32 %v605, 7
  %v607 = vsub.s32 %v604, %v606
  %v608 = vrot.slane %v586, %v607
  %v610 = vunpack.c.l.s4 1966171168
  %v611 = vunpack.c.0.s8 %v610
  %v612 = vlaneseq
  %v613 = vshrl.u32 %v612, 7
  %v614 = vsub.s32 %v611, %v613
  %v615 = vrot.slane %v587, %v614
  %v616 = vcombine.high %v594, %v594
  %v617 = vcombine.high %v601, %v601
  %v618 = vcombine.high %v608, %v608
  %v619 = vcombine.high %v615, %v615
  %v620 = vlaneseq
  %v621 = vshrl.u32 %v620, 7
  %v622 = vsub.s32 0, %v621
  %v623 = vrot.slane %v594, %v622
  %v624 = vlaneseq
  %v625 = vshrl.u32 %v624, 7
  %v626 = vsub.s32 0, %v625
  %v627 = vrot.slane %v608, %v626
  %v628 = vlaneseq
  %v629 = vshrl.u32 %v628, 7
  %v630 = vsub.s32 0, %v629
  %v631 = vrot.slane %v616, %v630
  %v632 = vlaneseq
  %v633 = vshrl.u32 %v632, 7
  %v634 = vsub.s32 0, %v633
  %v635 = vrot.slane %v618, %v634
  %v636 = vlaneseq
  %v637 = vshrl.u32 %v636, 7
  %v638 = vsub.s32 0, %v637
  %v639 = vrot.slane %v601, %v638
  %v640 = vlaneseq
  %v641 = vshrl.u32 %v640, 7
  %v642 = vsub.s32 0, %v641
  %v643 = vrot.slane %v615, %v642
  %v644 = vlaneseq
  %v645 = vshrl.u32 %v644, 7
  %v646 = vsub.s32 0, %v645
  %v647 = vrot.slane %v617, %v646
  %v648 = vlaneseq
  %v649 = vshrl.u32 %v648, 7
  %v650 = vsub.s32 0, %v649
  %v651 = vrot.slane %v619, %v650
  %v660 = vcombine.low %v475, %v483
  %v662 = vunpack.c.l.s4 1983009808
  %v663 = vunpack.c.0.s8 %v662
  %v664 = vlaneseq
  %v665 = vshrl.u32 %v664, 7
  %v666 = vsub.s32 %v663, %v665
  %v667 = vrot.slane %v660, %v666
  %v669 = vunpack.c.l.s4 1983009808
  %v670 = vunpack.c.0.s8 %v669
  %v671 = vlaneseq
  %v672 = vshrl.u32 %v671, 7
  %v673 = vsub.s32 %v670, %v672
  %v674 = vrot.slane %v482, %v673
  %v675 = vcombine.low %v667, %v674
  %v676 = vcombine.low %v484, %v492
  %v678 = vunpack.c.l.s4 1983009808
  %v679 = vunpack.c.0.s8 %v678
  %v680 = vlaneseq
  %v681 = vshrl.u32 %v680, 7
  %v682 = vsub.s32 %v679, %v681
  %v683 = vrot.slane %v676, %v682
  %v685 = vunpack.c.l.s4 1983009808
  %v686 = vunpack.c.0.s8 %v685
  %v687 = vlaneseq
  %v688 = vshrl.u32 %v687, 7
  %v689 = vsub.s32 %v686, %v688
  %v690 = vrot.slane %v500, %v689
  %v691 = vcombine.low %v683, %v690
  %v692 = vcombine.low %v499, %v501
  %v694 = vunpack.c.l.s4 1983009808
  %v695 = vunpack.c.0.s8 %v694
  %v696 = vlaneseq
  %v697 = vshrl.u32 %v696, 7
  %v698 = vsub.s32 %v695, %v697
  %v699 = vrot.slane %v692, %v698
  %v701 = vunpack.c.l.s4 1983009808
  %v702 = vunpack.c.0.s8 %v701
  %v703 = vlaneseq
  %v704 = vshrl.u32 %v703, 7
  %v705 = vsub.s32 %v702, %v704
  %v706 = vrot.slane %v509, %v705
  %v707 = vcombine.low %v699, %v706
  %v708 = vcombine.low %v517, %v516
  %v710 = vunpack.c.l.s4 1983009808
  %v711 = vunpack.c.0.s8 %v710
  %v712 = vlaneseq
  %v713 = vshrl.u32 %v712, 7
  %v714 = vsub.s32 %v711, %v713
  %v715 = vrot.slane %v708, %v714
  %v717 = vunpack.c.l.s4 1983009808
  %v718 = vunpack.c.0.s8 %v717
  %v719 = vlaneseq
  %v720 = vshrl.u32 %v719, 7
  %v721 = vsub.s32 %v718, %v720
  %v722 = vrot.slane %v518, %v721
  %v723 = vcombine.low %v715, %v722
  %v724 = vcombine.low %v526, %v534
  %v726 = vunpack.c.l.s4 1983009808
  %v727 = vunpack.c.0.s8 %v726
  %v728 = vlaneseq
  %v729 = vshrl.u32 %v728, 7
  %v730 = vsub.s32 %v727, %v729
  %v731 = vrot.slane %v724, %v730
  %v733 = vunpack.c.l.s4 1983009808
  %v734 = vunpack.c.0.s8 %v733
  %v735 = vlaneseq
  %v736 = vshrl.u32 %v735, 7
  %v737 = vsub.s32 %v734, %v736
  %v738 = vrot.slane %v533, %v737
  %v739 = vcombine.low %v731, %v738
  %v740 = vcombine.low %v535, %v543
  %v742 = vunpack.c.l.s4 1983009808
  %v743 = vunpack.c.0.s8 %v742
  %v744 = vlaneseq
  %v745 = vshrl.u32 %v744, 7
  %v746 = vsub.s32 %v743, %v745
  %v747 = vrot.slane %v740, %v746
  %v749 = vunpack.c.l.s4 1983009808
  %v750 = vunpack.c.0.s8 %v749
  %v751 = vlaneseq
  %v752 = vshrl.u32 %v751, 7
  %v753 = vsub.s32 %v750, %v752
  %v754 = vrot.slane %v551, %v753
  %v755 = vcombine.low %v747, %v754
  %v756 = vcombine.low %v550, %v552
  %v758 = vunpack.c.l.s4 1983009808
  %v759 = vunpack.c.0.s8 %v758
  %v760 = vlaneseq
  %v761 = vshrl.u32 %v760, 7
  %v762 = vsub.s32 %v759, %v761
  %v763 = vrot.slane %v756, %v762
  %v765 = vunpack.c.l.s4 1983009808
  %v766 = vunpack.c.0.s8 %v765
  %v767 = vlaneseq
  %v768 = vshrl.u32 %v767, 7
  %v769 = vsub.s32 %v766, %v768
  %v770 = vrot.slane %v560, %v769
  %v771 = vcombine.low %v763, %v770
  %v772 = vcombine.low %v568, %v567
  %v774 = vunpack.c.l.s4 1983009808
  %v775 = vunpack.c.0.s8 %v774
  %v776 = vlaneseq
  %v777 = vshrl.u32 %v776, 7
  %v778 = vsub.s32 %v775, %v777
  %v779 = vrot.slane %v772, %v778
  %v781 = vunpack.c.l.s4 1983009808
  %v782 = vunpack.c.0.s8 %v781
  %v783 = vlaneseq
  %v784 = vshrl.u32 %v783, 7
  %v785 = vsub.s32 %v782, %v784
  %v786 = vrot.slane %v569, %v785
  %v787 = vcombine.low %v779, %v786
  %v796 = vadd.f32 %v623, %v675
  %v797 = vadd.f32 %v627, %v691
  %v798 = vadd.f32 %v631, %v707
  %v799 = vadd.f32 %v635, %v723
  %v800 = vadd.f32 %v639, %v739
  %v801 = vadd.f32 %v643, %v755
  %v802 = vadd.f32 %v647, %v771
  %v803 = vadd.f32 %v651, %v787
  %v804 = vld [vmem:[%s5] sm:$0x1]
  %v806 = vlaneseq
  %v807 = vshrl.u32 %v806, 7
  %v808 = vsub.s32 0, %v807
  %v809 = vrot.slane %v804, %v808
  %v811 = vadd.f32 %v796, %v809
  %v812 = vadd.f32 %v797, %v809
  %v813 = vadd.f32 %v798, %v809
  %v814 = vadd.f32 %v799, %v809
  %v815 = vadd.f32 %v800, %v809
  %v816 = vadd.f32 %v801, %v809
  %v817 = vadd.f32 %v802, %v809
  %v818 = vadd.f32 %v803, %v809
  %v819 = vtanh.pop %v811
  %v820 = vtanh.pop %v812
  %v821 = vtanh.pop %v813
  %v822 = vtanh.pop %v814
  %v823 = vtanh.pop %v815
  %v824 = vtanh.pop %v816
  %v825 = vtanh.pop %v817
  %v826 = vtanh.pop %v818
  %v827 = vld [vmem:[%s6] sm:$0x1]
  %v829 = vlaneseq
  %v830 = vshrl.u32 %v829, 7
  %v831 = vsub.s32 0, %v830
  %v832 = vrot.slane %v827, %v831
  %v834 = vmul.f32 %v819, %v832
  %v835 = vmul.f32 %v820, %v832
  %v836 = vmul.f32 %v821, %v832
  %v837 = vmul.f32 %v822, %v832
  %v838 = vmul.f32 %v823, %v832
  %v839 = vmul.f32 %v824, %v832
  %v840 = vmul.f32 %v825, %v832
  %v841 = vmul.f32 %v826, %v832
  %vm842 = vcmask 259072
  %v843 = vsel %vm842, %v834, 0.0
  %844 = vadd.xlane.f32.xlu0 %v843
  %v845 = vpop.xlane.xlu0 %844
  %v846 = vsel %vm842, %v835, 0.0
  %847 = vadd.xlane.f32.xlu0 %v846
  %v848 = vpop.xlane.xlu0 %847
  %v849 = vsel %vm842, %v836, 0.0
  %850 = vadd.xlane.f32.xlu0 %v849
  %v851 = vpop.xlane.xlu0 %850
  %v852 = vsel %vm842, %v837, 0.0
  %853 = vadd.xlane.f32.xlu0 %v852
  %v854 = vpop.xlane.xlu0 %853
  %v855 = vsel %vm842, %v838, 0.0
  %856 = vadd.xlane.f32.xlu0 %v855
  %v857 = vpop.xlane.xlu0 %856
  %v858 = vsel %vm842, %v839, 0.0
  %859 = vadd.xlane.f32.xlu0 %v858
  %v860 = vpop.xlane.xlu0 %859
  %v861 = vsel %vm842, %v840, 0.0
  %862 = vadd.xlane.f32.xlu0 %v861
  %v863 = vpop.xlane.xlu0 %862
  %v864 = vsel %vm842, %v841, 0.0
  %865 = vadd.xlane.f32.xlu0 %v864
  %v866 = vpop.xlane.xlu0 %865
  %v875 = vlaneseq
  %v876 = vand.u32 %v875, 127
  %v877 = vlaneseq
  %v878 = vshrl.u32 %v877, 7
  %v879 = vsub.s32 %v876, %v878
  %v880 = vrot.slane %v845, %v879
  %v881 = vlaneseq
  %v882 = vshrl.u32 %v881, 7
  %v883 = vsub.s32 %v876, %v882
  %v884 = vrot.slane %v848, %v883
  %v885 = vlaneseq
  %v886 = vshrl.u32 %v885, 7
  %v887 = vsub.s32 %v876, %v886
  %v888 = vrot.slane %v851, %v887
  %v889 = vlaneseq
  %v890 = vshrl.u32 %v889, 7
  %v891 = vsub.s32 %v876, %v890
  %v892 = vrot.slane %v854, %v891
  %v893 = vlaneseq
  %v894 = vshrl.u32 %v893, 7
  %v895 = vsub.s32 %v876, %v894
  %v896 = vrot.slane %v857, %v895
  %v897 = vlaneseq
  %v898 = vshrl.u32 %v897, 7
  %v899 = vsub.s32 %v876, %v898
  %v900 = vrot.slane %v860, %v899
  %v901 = vlaneseq
  %v902 = vshrl.u32 %v901, 7
  %v903 = vsub.s32 %v876, %v902
  %v904 = vrot.slane %v863, %v903
  %v905 = vlaneseq
  %v906 = vshrl.u32 %v905, 7
  %v907 = vsub.s32 %v876, %v906
  %v908 = vrot.slane %v866, %v907
  %vm909 = vcmask 1041409
  %v910 = vsel %vm909, %v884, %v880
  %vm911 = vcmask 1042434
  %v912 = vsel %vm911, %v888, %v910
  %vm913 = vcmask 1043459
  %v914 = vsel %vm913, %v892, %v912
  %vm915 = vcmask 1044484
  %v916 = vsel %vm915, %v896, %v914
  %vm917 = vcmask 1045509
  %v918 = vsel %vm917, %v900, %v916
  %vm919 = vcmask 1046534
  %v920 = vsel %vm919, %v904, %v918
  %vm921 = vcmask 1047559
  %v922 = vsel %vm921, %v908, %v920
  %vm924 = vcmask 48128
  %v925 = vsel %vm924, %v922, -inf
  %926 = vmax.xlane.f32.xlu0 %v925
  %v927 = vpop.xlane.xlu0 %926
  %v929 = vlaneseq
  %v930 = vshrl.u32 %v929, 7
  %v931 = vsub.s32 0, %v930
  %v932 = vrot.slane %v927, %v931
  %v933 = vlaneseq
  %v934 = vshrl.u32 %v933, 7
  %v935 = vsub.s32 1, %v934
  %v936 = vrot.slane %v927, %v935
  %v937 = vlaneseq
  %v938 = vshrl.u32 %v937, 7
  %v939 = vsub.s32 2, %v938
  %v940 = vrot.slane %v927, %v939
  %v941 = vlaneseq
  %v942 = vshrl.u32 %v941, 7
  %v943 = vsub.s32 3, %v942
  %v944 = vrot.slane %v927, %v943
  %v945 = vlaneseq
  %v946 = vshrl.u32 %v945, 7
  %v947 = vsub.s32 4, %v946
  %v948 = vrot.slane %v927, %v947
  %v949 = vlaneseq
  %v950 = vshrl.u32 %v949, 7
  %v951 = vsub.s32 5, %v950
  %v952 = vrot.slane %v927, %v951
  %v953 = vlaneseq
  %v954 = vshrl.u32 %v953, 7
  %v955 = vsub.s32 6, %v954
  %v956 = vrot.slane %v927, %v955
  %v957 = vlaneseq
  %v958 = vshrl.u32 %v957, 7
  %v959 = vsub.s32 7, %v958
  %v960 = vrot.slane %v927, %v959
  %v969 = vsub.f32 %v845, %v932
  %v970 = vsub.f32 %v848, %v936
  %v971 = vsub.f32 %v851, %v940
  %v972 = vsub.f32 %v854, %v944
  %v973 = vsub.f32 %v857, %v948
  %v974 = vsub.f32 %v860, %v952
  %v975 = vsub.f32 %v863, %v956
  %v976 = vsub.f32 %v866, %v960
  %v977 = vmul.f32 %v969, 1.442695
  %v978 = vpow.pop %v977
  %v979 = vmul.f32 %v970, 1.442695
  %v980 = vpow.pop %v979
  %v981 = vmul.f32 %v971, 1.442695
  %v982 = vpow.pop %v981
  %v983 = vmul.f32 %v972, 1.442695
  %v984 = vpow.pop %v983
  %v985 = vmul.f32 %v973, 1.442695
  %v986 = vpow.pop %v985
  %v987 = vmul.f32 %v974, 1.442695
  %v988 = vpow.pop %v987
  %v989 = vmul.f32 %v975, 1.442695
  %v990 = vpow.pop %v989
  %v991 = vmul.f32 %v976, 1.442695
  %v992 = vpow.pop %v991
  %1001 = vset.pattern.permute.xlu0 0
  %1002 = vperm.xlu0 %1001, %v978
  %v1003 = vpop.permute.xlu0 %1002
  %1004 = vset.pattern.permute.xlu0 0
  %1005 = vperm.xlu0 %1004, %v980
  %v1006 = vpop.permute.xlu0 %1005
  %1007 = vset.pattern.permute.xlu0 0
  %1008 = vperm.xlu0 %1007, %v982
  %v1009 = vpop.permute.xlu0 %1008
  %1010 = vset.pattern.permute.xlu0 0
  %1011 = vperm.xlu0 %1010, %v984
  %v1012 = vpop.permute.xlu0 %1011
  %1013 = vset.pattern.permute.xlu0 0
  %1014 = vperm.xlu0 %1013, %v986
  %v1015 = vpop.permute.xlu0 %1014
  %1016 = vset.pattern.permute.xlu0 0
  %1017 = vperm.xlu0 %1016, %v988
  %v1018 = vpop.permute.xlu0 %1017
  %1019 = vset.pattern.permute.xlu0 0
  %1020 = vperm.xlu0 %1019, %v990
  %v1021 = vpop.permute.xlu0 %1020
  %1022 = vset.pattern.permute.xlu0 0
  %1023 = vperm.xlu0 %1022, %v992
  %v1024 = vpop.permute.xlu0 %1023
  %v1025 = vlaneseq
  %v1026 = vshrl.u32 %v1025, 7
  %v1027 = vsub.s32 %v876, %v1026
  %v1028 = vrot.slane %v1003, %v1027
  %v1029 = vlaneseq
  %v1030 = vshrl.u32 %v1029, 7
  %v1031 = vsub.s32 %v876, %v1030
  %v1032 = vrot.slane %v1006, %v1031
  %v1033 = vlaneseq
  %v1034 = vshrl.u32 %v1033, 7
  %v1035 = vsub.s32 %v876, %v1034
  %v1036 = vrot.slane %v1009, %v1035
  %v1037 = vlaneseq
  %v1038 = vshrl.u32 %v1037, 7
  %v1039 = vsub.s32 %v876, %v1038
  %v1040 = vrot.slane %v1012, %v1039
  %v1041 = vlaneseq
  %v1042 = vshrl.u32 %v1041, 7
  %v1043 = vsub.s32 %v876, %v1042
  %v1044 = vrot.slane %v1015, %v1043
  %v1045 = vlaneseq
  %v1046 = vshrl.u32 %v1045, 7
  %v1047 = vsub.s32 %v876, %v1046
  %v1048 = vrot.slane %v1018, %v1047
  %v1049 = vlaneseq
  %v1050 = vshrl.u32 %v1049, 7
  %v1051 = vsub.s32 %v876, %v1050
  %v1052 = vrot.slane %v1021, %v1051
  %v1053 = vlaneseq
  %v1054 = vshrl.u32 %v1053, 7
  %v1055 = vsub.s32 %v876, %v1054
  %v1056 = vrot.slane %v1024, %v1055
  %v1057 = vsel %vm909, %v1032, %v1028
  %v1058 = vsel %vm911, %v1036, %v1057
  %v1059 = vsel %vm913, %v1040, %v1058
  %v1060 = vsel %vm915, %v1044, %v1059
  %v1061 = vsel %vm917, %v1048, %v1060
  %v1062 = vsel %vm919, %v1052, %v1061
  %v1063 = vsel %vm921, %v1056, %v1062
  %v1065 = vsel %vm924, %v1063, 0.0
  %1066 = vadd.xlane.f32.xlu0 %v1065
  %v1067 = vpop.xlane.xlu0 %1066
  %v1069 = vlaneseq
  %v1070 = vshrl.u32 %v1069, 7
  %v1071 = vsub.s32 0, %v1070
  %v1072 = vrot.slane %v1067, %v1071
  %v1073 = vlaneseq
  %v1074 = vshrl.u32 %v1073, 7
  %v1075 = vsub.s32 1, %v1074
  %v1076 = vrot.slane %v1067, %v1075
  %v1077 = vlaneseq
  %v1078 = vshrl.u32 %v1077, 7
  %v1079 = vsub.s32 2, %v1078
  %v1080 = vrot.slane %v1067, %v1079
  %v1081 = vlaneseq
  %v1082 = vshrl.u32 %v1081, 7
  %v1083 = vsub.s32 3, %v1082
  %v1084 = vrot.slane %v1067, %v1083
  %v1085 = vlaneseq
  %v1086 = vshrl.u32 %v1085, 7
  %v1087 = vsub.s32 4, %v1086
  %v1088 = vrot.slane %v1067, %v1087
  %v1089 = vlaneseq
  %v1090 = vshrl.u32 %v1089, 7
  %v1091 = vsub.s32 5, %v1090
  %v1092 = vrot.slane %v1067, %v1091
  %v1093 = vlaneseq
  %v1094 = vshrl.u32 %v1093, 7
  %v1095 = vsub.s32 6, %v1094
  %v1096 = vrot.slane %v1067, %v1095
  %v1097 = vlaneseq
  %v1098 = vshrl.u32 %v1097, 7
  %v1099 = vsub.s32 7, %v1098
  %v1100 = vrot.slane %v1067, %v1099
  %v1109 = vrcp.pop %v1072
  %v1110 = vmul.f32 %v978, %v1109
  %v1111 = vrcp.pop %v1076
  %v1112 = vmul.f32 %v980, %v1111
  %v1113 = vrcp.pop %v1080
  %v1114 = vmul.f32 %v982, %v1113
  %v1115 = vrcp.pop %v1084
  %v1116 = vmul.f32 %v984, %v1115
  %v1117 = vrcp.pop %v1088
  %v1118 = vmul.f32 %v986, %v1117
  %v1119 = vrcp.pop %v1092
  %v1120 = vmul.f32 %v988, %v1119
  %v1121 = vrcp.pop %v1096
  %v1122 = vmul.f32 %v990, %v1121
  %v1123 = vrcp.pop %v1100
  %v1124 = vmul.f32 %v992, %v1123
  %v1125 = vld [vmem:[%s2] sm:$0xff]
  %vm1126 = vcmp.eq.s32.totalorder %v1125, 0
  %1135 = vset.pattern.permute.xlu0 0
  %1136 = vperm.xlu0 %1135, %v1110
  %v1137 = vpop.permute.xlu0 %1136
  %1138 = vset.pattern.permute.xlu0 0
  %1139 = vperm.xlu0 %1138, %v1112
  %v1140 = vpop.permute.xlu0 %1139
  %1141 = vset.pattern.permute.xlu0 0
  %1142 = vperm.xlu0 %1141, %v1114
  %v1143 = vpop.permute.xlu0 %1142
  %1144 = vset.pattern.permute.xlu0 0
  %1145 = vperm.xlu0 %1144, %v1116
  %v1146 = vpop.permute.xlu0 %1145
  %1147 = vset.pattern.permute.xlu0 0
  %1148 = vperm.xlu0 %1147, %v1118
  %v1149 = vpop.permute.xlu0 %1148
  %1150 = vset.pattern.permute.xlu0 0
  %1151 = vperm.xlu0 %1150, %v1120
  %v1152 = vpop.permute.xlu0 %1151
  %1153 = vset.pattern.permute.xlu0 0
  %1154 = vperm.xlu0 %1153, %v1122
  %v1155 = vpop.permute.xlu0 %1154
  %1156 = vset.pattern.permute.xlu0 0
  %1157 = vperm.xlu0 %1156, %v1124
  %v1158 = vpop.permute.xlu0 %1157
  %v1159 = vlaneseq
  %v1160 = vshrl.u32 %v1159, 7
  %v1161 = vsub.s32 %v876, %v1160
  %v1162 = vrot.slane %v1137, %v1161
  %v1163 = vlaneseq
  %v1164 = vshrl.u32 %v1163, 7
  %v1165 = vsub.s32 %v876, %v1164
  %v1166 = vrot.slane %v1140, %v1165
  %v1167 = vlaneseq
  %v1168 = vshrl.u32 %v1167, 7
  %v1169 = vsub.s32 %v876, %v1168
  %v1170 = vrot.slane %v1143, %v1169
  %v1171 = vlaneseq
  %v1172 = vshrl.u32 %v1171, 7
  %v1173 = vsub.s32 %v876, %v1172
  %v1174 = vrot.slane %v1146, %v1173
  %v1175 = vlaneseq
  %v1176 = vshrl.u32 %v1175, 7
  %v1177 = vsub.s32 %v876, %v1176
  %v1178 = vrot.slane %v1149, %v1177
  %v1179 = vlaneseq
  %v1180 = vshrl.u32 %v1179, 7
  %v1181 = vsub.s32 %v876, %v1180
  %v1182 = vrot.slane %v1152, %v1181
  %v1183 = vlaneseq
  %v1184 = vshrl.u32 %v1183, 7
  %v1185 = vsub.s32 %v876, %v1184
  %v1186 = vrot.slane %v1155, %v1185
  %v1187 = vlaneseq
  %v1188 = vshrl.u32 %v1187, 7
  %v1189 = vsub.s32 %v876, %v1188
  %v1190 = vrot.slane %v1158, %v1189
  %v1191 = vsel %vm909, %v1166, %v1162
  %v1192 = vsel %vm911, %v1170, %v1191
  %v1193 = vsel %vm913, %v1174, %v1192
  %v1194 = vsel %vm915, %v1178, %v1193
  %v1195 = vsel %vm917, %v1182, %v1194
  %v1196 = vsel %vm919, %v1186, %v1195
  %v1197 = vsel %vm921, %v1190, %v1196
  %v1199 = vsel %vm1126, 0.0, %v1197
  %1200 = vst.msk [vmem:[%s7] sm:$0xff] %vm924, %v1199
  // Predicated region
  $region30: #{_forward.10} parent=0 // pred_check
    _
  $region31: #{_forward.10} parent=0 // pred_check_branch
    %1202 = sbr.rel (0) target = $region33
  $region32: #{_forward.10} parent=0 // pred_region
    _
  $region33: #{_forward.10} parent=0 // pred_fallthru
    _
  // Predicated region
  $region34: #{_forward.10} parent=0 // pred_check
    _
  $region35: #{_forward.10} parent=0 // pred_check_branch
    %1204 = sbr.rel (0) target = $region37
  $region36: #{_forward.10} parent=0 // pred_region
    _
  $region37: #{_forward.10} parent=0 // pred_fallthru
    _

// kernel: closed_call.3
$region0: #{closed_call.3}
  #allocation0 [shape = 'u32[]', space=smem, size = 0x4, offset = 0x4, fixed_abs, tag = 'smem constant byte address 0x4 - core index']
  #allocation1 [shape = 'u32[144,128]{1,0:T(1,128)}', space=vmem, size = 0x12000, scoped, tag = 'internal scratch']
  %s0 = inlined_call_operand.vmem [shape: f32[2,32], index: 0, kind: input, shape index: {}]
  %s1 = inlined_call_operand.vmem [shape: f32[2,7,32], index: 1, kind: input, shape index: {}]
  %s2 = inlined_call_operand.vmem [shape: s32[2,7], index: 2, kind: input, shape index: {}]
  %s3 = inlined_call_operand.vmem [shape: f32[32,32], index: 3, kind: input, shape index: {}]
  %s4 = inlined_call_operand.vmem [shape: f32[32,32], index: 4, kind: input, shape index: {}]
  %s5 = inlined_call_operand.vmem [shape: f32[2,7], index: 5, kind: output, shape index: {}]
  %s6 = sld [smem:[#allocation0]]
  $region30: #{closed_call.3} parent=0
    _
  %s8 = ssub.s32 1, %s6
  %s9 = scalar_select 0, %s8, %s6
  // Predicated region
  $region2: #{closed_call.3} parent=0 // pred_check
    _
  $region3: #{closed_call.3} parent=0 // pred_check_branch
    %11 = sbr.rel (0) target = $region5
  $region4: #{closed_call.3} parent=0 // pred_region
    _
  $region5: #{closed_call.3} parent=0 // pred_fallthru
    _
  // Predicated region
  $region6: #{closed_call.3} parent=0 // pred_check
    _
  $region7: #{closed_call.3} parent=0 // pred_check_branch
    %13 = sbr.rel (0) target = $region9
  $region8: #{closed_call.3} parent=0 // pred_region
    _
  $region9: #{closed_call.3} parent=0 // pred_fallthru
    _
  // Predicated region
  $region10: #{closed_call.3} parent=0 // pred_check
    _
  $region11: #{closed_call.3} parent=0 // pred_check_branch
    %15 = sbr.rel (0) target = $region13
  $region12: #{closed_call.3} parent=0 // pred_region
    _
  $region13: #{closed_call.3} parent=0 // pred_fallthru
    _
  // Predicated region
  $region14: #{closed_call.3} parent=0 // pred_check
    _
  $region15: #{closed_call.3} parent=0 // pred_check_branch
    %17 = sbr.rel (0) target = $region17
  $region16: #{closed_call.3} parent=0 // pred_region
    _
  $region17: #{closed_call.3} parent=0 // pred_fallthru
    _
  // Predicated region
  $region18: #{closed_call.3} parent=0 // pred_check
    _
  $region19: #{closed_call.3} parent=0 // pred_check_branch
    %19 = sbr.rel (0) target = $region21
  $region20: #{closed_call.3} parent=0 // pred_region
    _
  $region21: #{closed_call.3} parent=0 // pred_fallthru
    _
  %v20 = vld [vmem:[%s0] sm:$0x3]
  %v21 = vld [vmem:[%s1] sm:$0x7f]
  %v22 = vld [vmem:[%s1 + $0x8] sm:$0x7f]
  %v23 = vld [vmem:[%s2] sm:$0x3]
  %v24 = vld [vmem:[%s3] sm:$0xff]
  %v25 = vld [vmem:[%s3 + $0x8] sm:$0xff]
  %v26 = vld [vmem:[%s3 + $0x10] sm:$0xff]
  %v27 = vld [vmem:[%s3 + $0x18] sm:$0xff]
  %vm28 = vcmask 261120
  %v30 = vsel %vm28, %v20, 0
  %32 = vmatprep.subr.mxu0 0.0
  %33 = vmatpush1.msra.mxu0 %v24
  %34 = vmatprep.subr.mxu0 0.0
  %35 = vmatpush1.msra.mxu0 %v25
  %36 = vmatprep.subr.mxu0 0.0
  %37 = vmatpush1.msra.mxu0 %v26
  %38 = vmatprep.subr.mxu0 0.0
  %39 = vmatpush1.msra.mxu0 %v27
  %40 = vmatprep.subr.mxu0 0.0
  %41 = vmatpush1.msra.mxu0 0.0
  %42 = vmatprep.subr.mxu0 0.0
  %43 = vmatpush1.msra.mxu0 0.0
  %44 = vmatprep.subr.mxu0 0.0
  %45 = vmatpush1.msra.mxu0 0.0
  %46 = vmatprep.subr.mxu0 0.0
  %47 = vmatpush1.msra.mxu0 0.0
  %48 = vmatprep.subr.mxu0 0.0
  %49 = vmatpush1.msra.mxu0 0.0
  %50 = vmatprep.subr.mxu0 0.0
  %51 = vmatpush1.msra.mxu0 0.0
  %52 = vmatprep.subr.mxu0 0.0
  %53 = vmatpush1.msra.mxu0 0.0
  %54 = vmatprep.subr.mxu0 0.0
  %55 = vmatpush1.msra.mxu0 0.0
  %56 = vmatprep.subr.mxu0 0.0
  %57 = vmatpush1.msra.mxu0 0.0
  %58 = vmatprep.subr.mxu0 0.0
  %59 = vmatpush1.msra.mxu0 0.0
  %60 = vmatprep.subr.mxu0 0.0
  %61 = vmatpush1.msra.mxu0 0.0
  %62 = vmatprep.subr.mxu0 0.0
  %63 = vmatpush1.msra.mxu0 0.0
  %64 = vmatprep.subr.mxu0 0.0
  %65 = vmatpush1.msra.mxu0 0.0
  %66 = vmatprep.subr.mxu0 0.0
  %67 = vmatpush1.msra.mxu0 0.0
  %68 = vmatprep.subr.mxu0 0.0
  %69 = vmatpush1.msra.mxu0 0.0
  %70 = vmatprep.subr.mxu0 0.0
  %71 = vmatpush1.msra.mxu0 0.0
  %72 = vmatprep.subr.mxu0 0.0
  %73 = vmatpush1.msra.mxu0 0.0
  %74 = vmatprep.subr.mxu0 0.0
  %75 = vmatpush1.msra.mxu0 0.0
  %76 = vmatprep.subr.mxu0 0.0
  %77 = vmatpush1.msra.mxu0 0.0
  %78 = vmatprep.subr.mxu0 0.0
  %79 = vmatpush1.msra.mxu0 0.0
  %80 = vmatprep.subr.mxu0 0.0
  %81 = vmatpush1.msra.mxu0 0.0
  %82 = vmatprep.subr.mxu0 0.0
  %83 = vmatpush1.msra.mxu0 0.0
  %84 = vmatprep.subr.mxu0 0.0
  %85 = vmatpush1.msra.mxu0 0.0
  %86 = vmatprep.subr.mxu0 0.0
  %87 = vmatpush1.msra.mxu0 0.0
  %88 = vmatprep.subr.mxu0 0.0
  %89 = vmatpush1.msra.mxu0 0.0
  %90 = vmatprep.subr.mxu0 0.0
  %91 = vmatpush1.msra.mxu0 0.0
  %92 = vmatprep.subr.mxu0 0.0
  %93 = vmatpush1.msra.mxu0 0.0
  %94 = vmatprep.subr.mxu0 0.0
  %95 = vmatpush1.msra.mxu0 0.0
  %96 = vmatprep.mubr.f32.mxu0 0.0
  %97 = vmatmul.mubr.f32.gmra.mrb[0].mxu0 %v30
  %v98 = vpop.f32.mrb[0].mxu0
  %v99 = vadd.f32 0.0, %v98
  %v100 = vpop.f32.mrb[0].mxu0
  %101 = vdwg.mxu0
  %v104 = vcombine.high %v21, %v21
  %v106 = vunpack.c.l.s4 1966171168
  %v107 = vunpack.c.0.s8 %v106
  %v108 = vlaneseq
  %v109 = vshrl.u32 %v108, 7
  %v110 = vsub.s32 %v107, %v109
  %v111 = vrot.slane %v21, %v110
  %v113 = vunpack.c.l.s4 1966171168
  %v114 = vunpack.c.0.s8 %v113
  %v115 = vlaneseq
  %v116 = vshrl.u32 %v115, 7
  %v117 = vsub.s32 %v114, %v116
  %v118 = vrot.slane %v104, %v117
  %v119 = vcombine.high %v111, %v111
  %v120 = vcombine.high %v118, %v118
  %v122 = vunpack.c.l.s4 1966171168
  %v123 = vunpack.c.0.s8 %v122
  %v124 = vlaneseq
  %v125 = vshrl.u32 %v124, 7
  %v126 = vsub.s32 %v123, %v125
  %v127 = vrot.slane %v111, %v126
  %v129 = vunpack.c.l.s4 1966171168
  %v130 = vunpack.c.0.s8 %v129
  %v131 = vlaneseq
  %v132 = vshrl.u32 %v131, 7
  %v133 = vsub.s32 %v130, %v132
  %v134 = vrot.slane %v118, %v133
  %v136 = vunpack.c.l.s4 1966171168
  %v137 = vunpack.c.0.s8 %v136
  %v138 = vlaneseq
  %v139 = vshrl.u32 %v138, 7
  %v140 = vsub.s32 %v137, %v139
  %v141 = vrot.slane %v119, %v140
  %v143 = vunpack.c.l.s4 1966171168
  %v144 = vunpack.c.0.s8 %v143
  %v145 = vlaneseq
  %v146 = vshrl.u32 %v145, 7
  %v147 = vsub.s32 %v144, %v146
  %v148 = vrot.slane %v120, %v147
  %v149 = vcombine.high %v127, %v127
  %v150 = vcombine.high %v134, %v134
  %v151 = vcombine.high %v141, %v141
  %v152 = vcombine.high %v22, %v22
  %v154 = vunpack.c.l.s4 1966171168
  %v155 = vunpack.c.0.s8 %v154
  %v156 = vlaneseq
  %v157 = vshrl.u32 %v156, 7
  %v158 = vsub.s32 %v155, %v157
  %v159 = vrot.slane %v22, %v158
  %v161 = vunpack.c.l.s4 1966171168
  %v162 = vunpack.c.0.s8 %v161
  %v163 = vlaneseq
  %v164 = vshrl.u32 %v163, 7
  %v165 = vsub.s32 %v162, %v164
  %v166 = vrot.slane %v152, %v165
  %v167 = vcombine.high %v159, %v159
  %v168 = vcombine.high %v166, %v166
  %v170 = vunpack.c.l.s4 1966171168
  %v171 = vunpack.c.0.s8 %v170
  %v172 = vlaneseq
  %v173 = vshrl.u32 %v172, 7
  %v174 = vsub.s32 %v171, %v173
  %v175 = vrot.slane %v159, %v174
  %v177 = vunpack.c.l.s4 1966171168
  %v178 = vunpack.c.0.s8 %v177
  %v179 = vlaneseq
  %v180 = vshrl.u32 %v179, 7
  %v181 = vsub.s32 %v178, %v180
  %v182 = vrot.slane %v166, %v181
  %v184 = vunpack.c.l.s4 1966171168
  %v185 = vunpack.c.0.s8 %v184
  %v186 = vlaneseq
  %v187 = vshrl.u32 %v186, 7
  %v188 = vsub.s32 %v185, %v187
  %v189 = vrot.slane %v167, %v188
  %v191 = vunpack.c.l.s4 1966171168
  %v192 = vunpack.c.0.s8 %v191
  %v193 = vlaneseq
  %v194 = vshrl.u32 %v193, 7
  %v195 = vsub.s32 %v192, %v194
  %v196 = vrot.slane %v168, %v195
  %v197 = vcombine.high %v175, %v175
  %v198 = vcombine.high %v182, %v182
  %v199 = vcombine.high %v189, %v189
  %v200 = vld [vmem:[%s4] sm:$0xff]
  %v201 = vld [vmem:[%s4 + $0x8] sm:$0xff]
  %v202 = vld [vmem:[%s4 + $0x10] sm:$0xff]
  %v203 = vld [vmem:[%s4 + $0x18] sm:$0xff]
  %v204 = vcombine.low %v127, %v141
  %v205 = vcombine.low %v149, %v151
  %v206 = vcombine.low %v134, %v148
  %v207 = vcombine.low %v150, %v175
  %v209 = vunpack.c.l.s4 1966171168
  %v210 = vunpack.c.0.s8 %v209
  %v211 = vlaneseq
  %v212 = vshrl.u32 %v211, 7
  %v213 = vsub.s32 %v210, %v212
  %v214 = vrot.slane %v204, %v213
  %v216 = vunpack.c.l.s4 1966171168
  %v217 = vunpack.c.0.s8 %v216
  %v218 = vlaneseq
  %v219 = vshrl.u32 %v218, 7
  %v220 = vsub.s32 %v217, %v219
  %v221 = vrot.slane %v205, %v220
  %v223 = vunpack.c.l.s4 1966171168
  %v224 = vunpack.c.0.s8 %v223
  %v225 = vlaneseq
  %v226 = vshrl.u32 %v225, 7
  %v227 = vsub.s32 %v224, %v226
  %v228 = vrot.slane %v206, %v227
  %v230 = vunpack.c.l.s4 1966171168
  %v231 = vunpack.c.0.s8 %v230
  %v232 = vlaneseq
  %v233 = vshrl.u32 %v232, 7
  %v234 = vsub.s32 %v231, %v233
  %v235 = vrot.slane %v207, %v234
  %v236 = vcombine.low %v214, %v221
  %v237 = vcombine.low %v228, %v235
  %v239 = vunpack.c.l.s4 1966171168
  %v240 = vunpack.c.0.s8 %v239
  %v241 = vlaneseq
  %v242 = vshrl.u32 %v241, 7
  %v243 = vsub.s32 %v240, %v242
  %v244 = vrot.slane %v236, %v243
  %v246 = vunpack.c.l.s4 1966171168
  %v247 = vunpack.c.0.s8 %v246
  %v248 = vlaneseq
  %v249 = vshrl.u32 %v248, 7
  %v250 = vsub.s32 %v247, %v249
  %v251 = vrot.slane %v237, %v250
  %v252 = vcombine.low %v244, %v251
  %v253 = vcombine.low %v189, %v197
  %v254 = vcombine.low %v199, %v182
  %v255 = vcombine.low %v196, %v198
  %v257 = vunpack.c.l.s4 1966171168
  %v258 = vunpack.c.0.s8 %v257
  %v259 = vlaneseq
  %v260 = vshrl.u32 %v259, 7
  %v261 = vsub.s32 %v258, %v260
  %v262 = vrot.slane %v253, %v261
  %v264 = vunpack.c.l.s4 1966171168
  %v265 = vunpack.c.0.s8 %v264
  %v266 = vlaneseq
  %v267 = vshrl.u32 %v266, 7
  %v268 = vsub.s32 %v265, %v267
  %v269 = vrot.slane %v254, %v268
  %v271 = vunpack.c.l.s4 1966171168
  %v272 = vunpack.c.0.s8 %v271
  %v273 = vlaneseq
  %v274 = vshrl.u32 %v273, 7
  %v275 = vsub.s32 %v272, %v274
  %v276 = vrot.slane %v255, %v275
  %v277 = vcombine.low %v262, %v269
  %v279 = vunpack.c.l.s4 1966171168
  %v280 = vunpack.c.0.s8 %v279
  %v281 = vlaneseq
  %v282 = vshrl.u32 %v281, 7
  %v283 = vsub.s32 %v280, %v282
  %v284 = vrot.slane %v277, %v283
  %v286 = vunpack.c.l.s4 1966171168
  %v287 = vunpack.c.0.s8 %v286
  %v288 = vlaneseq
  %v289 = vshrl.u32 %v288, 7
  %v290 = vsub.s32 %v287, %v289
  %v291 = vrot.slane %v276, %v290
  %v292 = vcombine.low %v284, %v291
  %v293 = vsel %vm28, %v252, 0
  %v295 = vsel %vm28, %v292, 0
  %297 = vmatprep.subr.mxu0 0.0
  %298 = vmatpush1.msra.mxu0 %v200
  %299 = vmatprep.subr.mxu0 0.0
  %300 = vmatpush1.msra.mxu0 %v201
  %301 = vmatprep.subr.mxu0 0.0
  %302 = vmatpush1.msra.mxu0 %v202
  %303 = vmatprep.subr.mxu0 0.0
  %304 = vmatpush1.msra.mxu0 %v203
  %305 = vmatprep.subr.mxu0 0.0
  %306 = vmatpush1.msra.mxu0 0.0
  %307 = vmatprep.subr.mxu0 0.0
  %308 = vmatpush1.msra.mxu0 0.0
  %309 = vmatprep.subr.mxu0 0.0
  %310 = vmatpush1.msra.mxu0 0.0
  %311 = vmatprep.subr.mxu0 0.0
  %312 = vmatpush1.msra.mxu0 0.0
  %313 = vmatprep.subr.mxu0 0.0
  %314 = vmatpush1.msra.mxu0 0.0
  %315 = vmatprep.subr.mxu0 0.0
  %316 = vmatpush1.msra.mxu0 0.0
  %317 = vmatprep.subr.mxu0 0.0
  %318 = vmatpush1.msra.mxu0 0.0
  %319 = vmatprep.subr.mxu0 0.0
  %320 = vmatpush1.msra.mxu0 0.0
  %321 = vmatprep.subr.mxu0 0.0
  %322 = vmatpush1.msra.mxu0 0.0
  %323 = vmatprep.subr.mxu0 0.0
  %324 = vmatpush1.msra.mxu0 0.0
  %325 = vmatprep.subr.mxu0 0.0
  %326 = vmatpush1.msra.mxu0 0.0
  %327 = vmatprep.subr.mxu0 0.0
  %328 = vmatpush1.msra.mxu0 0.0
  %329 = vmatprep.subr.mxu0 0.0
  %330 = vmatpush1.msra.mxu0 0.0
  %331 = vmatprep.subr.mxu0 0.0
  %332 = vmatpush1.msra.mxu0 0.0
  %333 = vmatprep.subr.mxu0 0.0
  %334 = vmatpush1.msra.mxu0 0.0
  %335 = vmatprep.subr.mxu0 0.0
  %336 = vmatpush1.msra.mxu0 0.0
  %337 = vmatprep.subr.mxu0 0.0
  %338 = vmatpush1.msra.mxu0 0.0
  %339 = vmatprep.subr.mxu0 0.0
  %340 = vmatpush1.msra.mxu0 0.0
  %341 = vmatprep.subr.mxu0 0.0
  %342 = vmatpush1.msra.mxu0 0.0
  %343 = vmatprep.subr.mxu0 0.0
  %344 = vmatpush1.msra.mxu0 0.0
  %345 = vmatprep.subr.mxu0 0.0
  %346 = vmatpush1.msra.mxu0 0.0
  %347 = vmatprep.subr.mxu0 0.0
  %348 = vmatpush1.msra.mxu0 0.0
  %349 = vmatprep.subr.mxu0 0.0
  %350 = vmatpush1.msra.mxu0 0.0
  %351 = vmatprep.subr.mxu0 0.0
  %352 = vmatpush1.msra.mxu0 0.0
  %353 = vmatprep.subr.mxu0 0.0
  %354 = vmatpush1.msra.mxu0 0.0
  %355 = vmatprep.subr.mxu0 0.0
  %356 = vmatpush1.msra.mxu0 0.0
  %357 = vmatprep.subr.mxu0 0.0
  %358 = vmatpush1.msra.mxu0 0.0
  %359 = vmatprep.subr.mxu0 0.0
  %360 = vmatpush1.msra.mxu0 0.0
  %361 = vmatprep.mubr.f32.mxu0 0.0
  %362 = vmatmul.mubr.f32.gmra.mrb[0].mxu0 %v293
  %v363 = vpop.f32.mrb[0].mxu0
  %v364 = vadd.f32 0.0, %v363
  %v365 = vpop.f32.mrb[0].mxu0
  %366 = vmatprep.mubr.f32.mxu0 0.0
  %367 = vmatmul.mubr.f32.gmra.mrb[0].mxu0 %v295
  %v368 = vpop.f32.mrb[0].mxu0
  %v369 = vadd.f32 0.0, %v368
  %v370 = vpop.f32.mrb[0].mxu0
  %371 = vdwg.mxu0
  %v374 = vcombine.high %v364, %v364
  %v376 = vunpack.c.l.s4 1966171168
  %v377 = vunpack.c.0.s8 %v376
  %v378 = vlaneseq
  %v379 = vshrl.u32 %v378, 7
  %v380 = vsub.s32 %v377, %v379
  %v381 = vrot.slane %v364, %v380
  %v383 = vunpack.c.l.s4 1966171168
  %v384 = vunpack.c.0.s8 %v383
  %v385 = vlaneseq
  %v386 = vshrl.u32 %v385, 7
  %v387 = vsub.s32 %v384, %v386
  %v388 = vrot.slane %v374, %v387
  %v389 = vcombine.high %v381, %v381
  %v390 = vcombine.high %v388, %v388
  %v392 = vunpack.c.l.s4 1966171168
  %v393 = vunpack.c.0.s8 %v392
  %v394 = vlaneseq
  %v395 = vshrl.u32 %v394, 7
  %v396 = vsub.s32 %v393, %v395
  %v397 = vrot.slane %v381, %v396
  %v399 = vunpack.c.l.s4 1966171168
  %v400 = vunpack.c.0.s8 %v399
  %v401 = vlaneseq
  %v402 = vshrl.u32 %v401, 7
  %v403 = vsub.s32 %v400, %v402
  %v404 = vrot.slane %v388, %v403
  %v406 = vunpack.c.l.s4 1966171168
  %v407 = vunpack.c.0.s8 %v406
  %v408 = vlaneseq
  %v409 = vshrl.u32 %v408, 7
  %v410 = vsub.s32 %v407, %v409
  %v411 = vrot.slane %v389, %v410
  %v413 = vunpack.c.l.s4 1966171168
  %v414 = vunpack.c.0.s8 %v413
  %v415 = vlaneseq
  %v416 = vshrl.u32 %v415, 7
  %v417 = vsub.s32 %v414, %v416
  %v418 = vrot.slane %v390, %v417
  %v419 = vcombine.high %v397, %v397
  %v420 = vcombine.high %v404, %v404
  %v421 = vcombine.high %v411, %v411
  %v422 = vcombine.high %v418, %v418
  %v423 = vcombine.high %v369, %v369
  %v425 = vunpack.c.l.s4 1966171168
  %v426 = vunpack.c.0.s8 %v425
  %v427 = vlaneseq
  %v428 = vshrl.u32 %v427, 7
  %v429 = vsub.s32 %v426, %v428
  %v430 = vrot.slane %v369, %v429
  %v432 = vunpack.c.l.s4 1966171168
  %v433 = vunpack.c.0.s8 %v432
  %v434 = vlaneseq
  %v435 = vshrl.u32 %v434, 7
  %v436 = vsub.s32 %v433, %v435
  %v437 = vrot.slane %v423, %v436
  %v438 = vcombine.high %v430, %v430
  %v439 = vcombine.high %v437, %v437
  %v441 = vunpack.c.l.s4 1966171168
  %v442 = vunpack.c.0.s8 %v441
  %v443 = vlaneseq
  %v444 = vshrl.u32 %v443, 7
  %v445 = vsub.s32 %v442, %v444
  %v446 = vrot.slane %v430, %v445
  %v448 = vunpack.c.l.s4 1966171168
  %v449 = vunpack.c.0.s8 %v448
  %v450 = vlaneseq
  %v451 = vshrl.u32 %v450, 7
  %v452 = vsub.s32 %v449, %v451
  %v453 = vrot.slane %v437, %v452
  %v455 = vunpack.c.l.s4 1966171168
  %v456 = vunpack.c.0.s8 %v455
  %v457 = vlaneseq
  %v458 = vshrl.u32 %v457, 7
  %v459 = vsub.s32 %v456, %v458
  %v460 = vrot.slane %v438, %v459
  %v462 = vunpack.c.l.s4 1966171168
  %v463 = vunpack.c.0.s8 %v462
  %v464 = vlaneseq
  %v465 = vshrl.u32 %v464, 7
  %v466 = vsub.s32 %v463, %v465
  %v467 = vrot.slane %v439, %v466
  %v468 = vcombine.high %v446, %v446
  %v469 = vcombine.high %v460, %v460
  %v472 = vunpack.c.l.s4 1966171168
  %v473 = vunpack.c.0.s8 %v472
  %v474 = vlaneseq
  %v475 = vshrl.u32 %v474, 7
  %v476 = vsub.s32 %v473, %v475
  %v477 = vrot.slane %v99, %v476
  %v478 = vcombine.high %v477, %v477
  %v480 = vunpack.c.l.s4 1966171168
  %v481 = vunpack.c.0.s8 %v480
  %v482 = vlaneseq
  %v483 = vshrl.u32 %v482, 7
  %v484 = vsub.s32 %v481, %v483
  %v485 = vrot.slane %v477, %v484
  %v487 = vunpack.c.l.s4 1966171168
  %v488 = vunpack.c.0.s8 %v487
  %v489 = vlaneseq
  %v490 = vshrl.u32 %v489, 7
  %v491 = vsub.s32 %v488, %v490
  %v492 = vrot.slane %v478, %v491
  %v493 = vlaneseq
  %v494 = vshrl.u32 %v493, 7
  %v495 = vsub.s32 0, %v494
  %v496 = vrot.slane %v485, %v495
  %v497 = vlaneseq
  %v498 = vshrl.u32 %v497, 7
  %v499 = vsub.s32 0, %v498
  %v500 = vrot.slane %v492, %v499
  %v503 = vcombine.low %v397, %v411
  %v504 = vcombine.low %v419, %v421
  %v505 = vcombine.low %v404, %v418
  %v507 = vunpack.c.l.s4 1966171168
  %v508 = vunpack.c.0.s8 %v507
  %v509 = vlaneseq
  %v510 = vshrl.u32 %v509, 7
  %v511 = vsub.s32 %v508, %v510
  %v512 = vrot.slane %v503, %v511
  %v514 = vunpack.c.l.s4 1966171168
  %v515 = vunpack.c.0.s8 %v514
  %v516 = vlaneseq
  %v517 = vshrl.u32 %v516, 7
  %v518 = vsub.s32 %v515, %v517
  %v519 = vrot.slane %v504, %v518
  %v521 = vunpack.c.l.s4 1966171168
  %v522 = vunpack.c.0.s8 %v521
  %v523 = vlaneseq
  %v524 = vshrl.u32 %v523, 7
  %v525 = vsub.s32 %v522, %v524
  %v526 = vrot.slane %v505, %v525
  %v528 = vunpack.c.l.s4 1966171168
  %v529 = vunpack.c.0.s8 %v528
  %v530 = vlaneseq
  %v531 = vshrl.u32 %v530, 7
  %v532 = vsub.s32 %v529, %v531
  %v533 = vrot.slane %v420, %v532
  %v534 = vcombine.low %v512, %v519
  %v535 = vcombine.low %v526, %v533
  %v537 = vunpack.c.l.s4 1966171168
  %v538 = vunpack.c.0.s8 %v537
  %v539 = vlaneseq
  %v540 = vshrl.u32 %v539, 7
  %v541 = vsub.s32 %v538, %v540
  %v542 = vrot.slane %v534, %v541
  %v544 = vunpack.c.l.s4 1966171168
  %v545 = vunpack.c.0.s8 %v544
  %v546 = vlaneseq
  %v547 = vshrl.u32 %v546, 7
  %v548 = vsub.s32 %v545, %v547
  %v549 = vrot.slane %v535, %v548
  %v550 = vcombine.low %v542, %v549
  %v551 = vcombine.low %v422, %v446
  %v552 = vcombine.low %v460, %v468
  %v553 = vcombine.low %v469, %v453
  %v555 = vunpack.c.l.s4 1966171168
  %v556 = vunpack.c.0.s8 %v555
  %v557 = vlaneseq
  %v558 = vshrl.u32 %v557, 7
  %v559 = vsub.s32 %v556, %v558
  %v560 = vrot.slane %v551, %v559
  %v562 = vunpack.c.l.s4 1966171168
  %v563 = vunpack.c.0.s8 %v562
  %v564 = vlaneseq
  %v565 = vshrl.u32 %v564, 7
  %v566 = vsub.s32 %v563, %v565
  %v567 = vrot.slane %v552, %v566
  %v569 = vunpack.c.l.s4 1966171168
  %v570 = vunpack.c.0.s8 %v569
  %v571 = vlaneseq
  %v572 = vshrl.u32 %v571, 7
  %v573 = vsub.s32 %v570, %v572
  %v574 = vrot.slane %v553, %v573
  %v576 = vunpack.c.l.s4 1966171168
  %v577 = vunpack.c.0.s8 %v576
  %v578 = vlaneseq
  %v579 = vshrl.u32 %v578, 7
  %v580 = vsub.s32 %v577, %v579
  %v581 = vrot.slane %v467, %v580
  %v582 = vcombine.low %v560, %v567
  %v583 = vcombine.low %v574, %v581
  %v585 = vunpack.c.l.s4 1966171168
  %v586 = vunpack.c.0.s8 %v585
  %v587 = vlaneseq
  %v588 = vshrl.u32 %v587, 7
  %v589 = vsub.s32 %v586, %v588
  %v590 = vrot.slane %v582, %v589
  %v592 = vunpack.c.l.s4 1966171168
  %v593 = vunpack.c.0.s8 %v592
  %v594 = vlaneseq
  %v595 = vshrl.u32 %v594, 7
  %v596 = vsub.s32 %v593, %v595
  %v597 = vrot.slane %v583, %v596
  %v598 = vcombine.low %v590, %v597
  %v601 = vmul.f32 %v496, %v550
  %v602 = vmul.f32 %v500, %v598
  %vm603 = vcmask 260096
  %v604 = vsel %vm603, %v601, 0.0
  %605 = vadd.xlane.f32.xlu0 %v604
  %v606 = vpop.xlane.xlu0 %605
  %v607 = vsel %vm603, %v602, 0.0
  %608 = vadd.xlane.f32.xlu0 %v607
  %v609 = vpop.xlane.xlu0 %608
  %v610 = vmul.f32 %v606, 0.17677669
  %v611 = vmul.f32 %v609, 0.17677669
  %v614 = vlaneseq
  %v615 = vand.u32 %v614, 127
  %v616 = vlaneseq
  %v617 = vshrl.u32 %v616, 7
  %v618 = vsub.s32 %v615, %v617
  %v619 = vrot.slane %v610, %v618
  %v620 = vlaneseq
  %v621 = vshrl.u32 %v620, 7
  %v622 = vsub.s32 %v615, %v621
  %v623 = vrot.slane %v611, %v622
  %vm624 = vcmask 1041409
  %v625 = vsel %vm624, %v623, %v619
  %vm627 = vcmask 50176
  %v628 = vsel %vm627, %v625, -inf
  %629 = vmax.xlane.f32.xlu0 %v628
  %v630 = vpop.xlane.xlu0 %629
  %v632 = vlaneseq
  %v633 = vshrl.u32 %v632, 7
  %v634 = vsub.s32 0, %v633
  %v635 = vrot.slane %v630, %v634
  %v636 = vlaneseq
  %v637 = vshrl.u32 %v636, 7
  %v638 = vsub.s32 1, %v637
  %v639 = vrot.slane %v630, %v638
  %v642 = vsub.f32 %v610, %v635
  %v643 = vsub.f32 %v611, %v639
  %v644 = vmul.f32 %v642, 1.442695
  %v645 = vpow.pop %v644
  %v646 = vmul.f32 %v643, 1.442695
  %v647 = vpow.pop %v646
  %650 = vset.pattern.permute.xlu0 0
  %651 = vperm.xlu0 %650, %v645
  %v652 = vpop.permute.xlu0 %651
  %653 = vset.pattern.permute.xlu0 0
  %654 = vperm.xlu0 %653, %v647
  %v655 = vpop.permute.xlu0 %654
  %v656 = vlaneseq
  %v657 = vshrl.u32 %v656, 7
  %v658 = vsub.s32 %v615, %v657
  %v659 = vrot.slane %v652, %v658
  %v660 = vlaneseq
  %v661 = vshrl.u32 %v660, 7
  %v662 = vsub.s32 %v615, %v661
  %v663 = vrot.slane %v655, %v662
  %v664 = vsel %vm624, %v663, %v659
  %v666 = vsel %vm627, %v664, 0.0
  %667 = vadd.xlane.f32.xlu0 %v666
  %v668 = vpop.xlane.xlu0 %667
  %v670 = vlaneseq
  %v671 = vshrl.u32 %v670, 7
  %v672 = vsub.s32 0, %v671
  %v673 = vrot.slane %v668, %v672
  %v674 = vlaneseq
  %v675 = vshrl.u32 %v674, 7
  %v676 = vsub.s32 1, %v675
  %v677 = vrot.slane %v668, %v676
  %v680 = vrcp.pop %v673
  %v681 = vmul.f32 %v645, %v680
  %v682 = vrcp.pop %v677
  %v683 = vmul.f32 %v647, %v682
  %vm684 = vcmp.gt.s32.totalorder %v23, 0
  %vm685 = vcmp.lt.s32.totalorder %v23, 0
  %v686 = vsel %vm685, -1.0, 0.0
  %689 = vset.pattern.permute.xlu0 0
  %690 = vperm.xlu0 %689, %v681
  %v691 = vpop.permute.xlu0 %690
  %692 = vset.pattern.permute.xlu0 0
  %693 = vperm.xlu0 %692, %v683
  %v694 = vpop.permute.xlu0 %693
  %v695 = vlaneseq
  %v696 = vshrl.u32 %v695, 7
  %v697 = vsub.s32 %v615, %v696
  %v698 = vrot.slane %v691, %v697
  %v699 = vlaneseq
  %v700 = vshrl.u32 %v699, 7
  %v701 = vsub.s32 %v615, %v700
  %v702 = vrot.slane %v694, %v701
  %v703 = vsel %vm624, %v702, %v698
  %v705 = vsel %vm684, %v703, %v686
  %706 = vst.msk [vmem:[%s5] sm:$0x3] %vm627, %v705
  // Predicated region
  $region22: #{closed_call.3} parent=0 // pred_check
    _
  $region23: #{closed_call.3} parent=0 // pred_check_branch
    %708 = sbr.rel (0) target = $region25
  $region24: #{closed_call.3} parent=0 // pred_region
    _
  $region25: #{closed_call.3} parent=0 // pred_fallthru
    _
  // Predicated region
  $region26: #{closed_call.3} parent=0 // pred_check
    _
  $region27: #{closed_call.3} parent=0 // pred_check_branch
    %710 = sbr.rel (0) target = $region29
  $region28: #{closed_call.3} parent=0 // pred_region
    _
  $region29: #{closed_call.3} parent=0 // pred_fallthru
    _

// kernel: _forward.11
$region0: #{_forward.11}
  #allocation0 [shape = 'u32[]', space=smem, size = 0x4, offset = 0x4, fixed_abs, tag = 'smem constant byte address 0x4 - core index']
  #allocation1 [shape = 'u32[144,128]{1,0:T(1,128)}', space=vmem, size = 0x12000, scoped, tag = 'internal scratch']
  %s0 = inlined_call_operand.vmem [shape: f32[2,4,32], index: 0, kind: input, shape index: {}]
  %s1 = inlined_call_operand.vmem [shape: f32[2,4], index: 1, kind: input, shape index: {}]
  %s2 = inlined_call_operand.vmem [shape: f32[2,32], index: 2, kind: input, shape index: {}]
  %s3 = inlined_call_operand.vmem [shape: f32[2,4,32], index: 3, kind: input, shape index: {}]
  %s4 = inlined_call_operand.vmem [shape: f32[32,2], index: 4, kind: input, shape index: {}]
  %s5 = inlined_call_operand.vmem [shape: f32[32,2], index: 5, kind: input, shape index: {}]
  %s6 = inlined_call_operand.vmem [shape: f32[1,2], index: 6, kind: input, shape index: {}]
  %s7 = inlined_call_operand.hbm [shape: f32[2,2], index: 7, kind: output, shape index: {}]
  %s8 = sld [smem:[#allocation0]]
  $region38: #{_forward.11} parent=0
    _
  %s10 = ssub.s32 1, %s8
  %s11 = scalar_select 0, %s10, %s8
  $region1: #{_forward.11} parent=0
    #allocation2 [shape = 'u8[1024]{0}', space=vmem, size = 0x400, scoped, tag = 'output window, operand 0, single buffered']
    #allocation3 [shape = 's32[1]{0}', space=sflag, size = 0x4, scoped, tag = 'scoped memory for _forward.11']
    %12 = vsyncpa [#allocation3], 0
    // Predicated region
    $region2: #{_forward.11} parent=1 // pred_check
      _
    $region3: #{_forward.11} parent=1 // pred_check_branch
      %14 = sbr.rel (0) target = $region5
    $region4: #{_forward.11} parent=1 // pred_region
      _
    $region5: #{_forward.11} parent=1 // pred_fallthru
      _
    // Predicated region
    $region6: #{_forward.11} parent=1 // pred_check
      _
    $region7: #{_forward.11} parent=1 // pred_check_branch
      %16 = sbr.rel (0) target = $region9
    $region8: #{_forward.11} parent=1 // pred_region
      _
    $region9: #{_forward.11} parent=1 // pred_fallthru
      _
    // Predicated region
    $region10: #{_forward.11} parent=1 // pred_check
      _
    $region11: #{_forward.11} parent=1 // pred_check_branch
      %18 = sbr.rel (0) target = $region13
    $region12: #{_forward.11} parent=1 // pred_region
      _
    $region13: #{_forward.11} parent=1 // pred_fallthru
      _
    // Predicated region
    $region14: #{_forward.11} parent=1 // pred_check
      _
    $region15: #{_forward.11} parent=1 // pred_check_branch
      %20 = sbr.rel (0) target = $region17
    $region16: #{_forward.11} parent=1 // pred_region
      _
    $region17: #{_forward.11} parent=1 // pred_fallthru
      _
    // Predicated region
    $region18: #{_forward.11} parent=1 // pred_check
      _
    $region19: #{_forward.11} parent=1 // pred_check_branch
      %22 = sbr.rel (0) target = $region21
    $region20: #{_forward.11} parent=1 // pred_region
      _
    $region21: #{_forward.11} parent=1 // pred_fallthru
      _
    // Predicated region
    $region22: #{_forward.11} parent=1 // pred_check
      _
    $region23: #{_forward.11} parent=1 // pred_check_branch
      %24 = sbr.rel (0) target = $region25
    $region24: #{_forward.11} parent=1 // pred_region
      _
    $region25: #{_forward.11} parent=1 // pred_fallthru
      _
    // Predicated region
    $region26: #{_forward.11} parent=1 // pred_check
      _
    $region27: #{_forward.11} parent=1 // pred_check_branch
      %26 = sbr.rel (0) target = $region29
    $region28: #{_forward.11} parent=1 // pred_region
      _
    $region29: #{_forward.11} parent=1 // pred_fallthru
      _
    %v27 = vld [vmem:[%s0] sm:$0xf]
    %v28 = vld [vmem:[%s0 + $0x4] sm:$0xf]
    %v29 = vld [vmem:[%s1] sm:$0x3]
    %v30 = vlaneseq
    %v31 = vshrl.u32 %v30, 7
    %v32 = vsub.s32 0, %v31
    %v33 = vrot.slane %v29, %v32
    %35 = vbcast.lane.b32.xlu0 %v33, 256
    %v36 = vpop.permute.xlu0 %35
    %v37 = vlaneseq
    %v38 = vshrl.u32 %v37, 7
    %v39 = vsub.s32 1, %v38
    %v40 = vrot.slane %v29, %v39
    %42 = vbcast.lane.b32.xlu0 %v40, 256
    %v43 = vpop.permute.xlu0 %42
    %vm44 = vcmp.gt.f32.partialorder %v36, 0.0
    %vm45 = vcmp.gt.f32.partialorder %v43, 0.0
    %v46 = vsel %vm44, 1, 0
    %v47 = vsel %vm45, 1, 0
    %vm48 = vcmp.eq.s32.totalorder %v46, 1
    %vm49 = vcmp.eq.s32.totalorder %v47, 1
    %v50 = vsel %vm48, %v27, -3.4028235e+38
    %v51 = vsel %vm49, %v28, -3.4028235e+38
    %vm52 = vcmask 257024
    %v53 = vsel %vm52, %v50, -inf
    %v54 = vrot.slane %v53, 4
    %v55 = vmax.f32 %v53, %v54
    %v56 = vrot.slane %v55, 2
    %v57 = vmax.f32 %v55, %v56
    %v58 = vrot.slane %v57, 1
    %v59 = vmax.f32 %v57, %v58
    %v60 = vsel %vm52, %v51, -inf
    %v61 = vrot.slane %v60, 4
    %v62 = vmax.f32 %v60, %v61
    %v63 = vrot.slane %v62, 2
    %v64 = vmax.f32 %v62, %v63
    %v65 = vrot.slane %v64, 1
    %v66 = vmax.f32 %v64, %v65
    %v67 = vld [vmem:[%s2] sm:$0x3]
    %v69 = vrot.slane %v67, 1
    %v72 = vadd.f32 %v59, %v67
    %v73 = vadd.f32 %v66, %v69
    %v74 = vld [vmem:[%s3] sm:$0xf]
    %v75 = vld [vmem:[%s3 + $0x4] sm:$0xf]
    %v76 = vsel %vm52, %v74, -inf
    %v77 = vrot.slane %v76, 4
    %v78 = vmax.f32 %v76, %v77
    %v79 = vrot.slane %v78, 2
    %v80 = vmax.f32 %v78, %v79
    %v81 = vrot.slane %v80, 1
    %v82 = vmax.f32 %v80, %v81
    %v83 = vsel %vm52, %v75, -inf
    %v84 = vrot.slane %v83, 4
    %v85 = vmax.f32 %v83, %v84
    %v86 = vrot.slane %v85, 2
    %v87 = vmax.f32 %v85, %v86
    %v88 = vrot.slane %v87, 1
    %v89 = vmax.f32 %v87, %v88
    %v90 = vld [vmem:[%s4] sm:$0xff]
    %v91 = vld [vmem:[%s4 + $0x8] sm:$0xff]
    %v92 = vld [vmem:[%s4 + $0x10] sm:$0xff]
    %v93 = vld [vmem:[%s4 + $0x18] sm:$0xff]
    %v94 = vld [vmem:[%s5] sm:$0xff]
    %v95 = vld [vmem:[%s5 + $0x8] sm:$0xff]
    %v96 = vld [vmem:[%s5 + $0x10] sm:$0xff]
    %v97 = vld [vmem:[%s5 + $0x18] sm:$0xff]
    %vm100 = vcmask 1041409
    %v101 = vsel %vm100, %v89, %v82
    %vm102 = vcmask 261120
    %v103 = vsel %vm102, %v101, 0
    %105 = vmatprep.subr.mxu0 0.0
    %106 = vmatpush1.msra.mxu0 %v94
    %107 = vmatprep.subr.mxu0 0.0
    %108 = vmatpush1.msra.mxu0 %v95
    %109 = vmatprep.subr.mxu0 0.0
    %110 = vmatpush1.msra.mxu0 %v96
    %111 = vmatprep.subr.mxu0 0.0
    %112 = vmatpush1.msra.mxu0 %v97
    %113 = vmatprep.subr.mxu0 0.0
    %114 = vmatpush1.msra.mxu0 0.0
    %115 = vmatprep.subr.mxu0 0.0
    %116 = vmatpush1.msra.mxu0 0.0
    %117 = vmatprep.subr.mxu0 0.0
    %118 = vmatpush1.msra.mxu0 0.0
    %119 = vmatprep.subr.mxu0 0.0
    %120 = vmatpush1.msra.mxu0 0.0
    %121 = vmatprep.subr.mxu0 0.0
    %122 = vmatpush1.msra.mxu0 0.0
    %123 = vmatprep.subr.mxu0 0.0
    %124 = vmatpush1.msra.mxu0 0.0
    %125 = vmatprep.subr.mxu0 0.0
    %126 = vmatpush1.msra.mxu0 0.0
    %127 = vmatprep.subr.mxu0 0.0
    %128 = vmatpush1.msra.mxu0 0.0
    %129 = vmatprep.subr.mxu0 0.0
    %130 = vmatpush1.msra.mxu0 0.0
    %131 = vmatprep.subr.mxu0 0.0
    %132 = vmatpush1.msra.mxu0 0.0
    %133 = vmatprep.subr.mxu0 0.0
    %134 = vmatpush1.msra.mxu0 0.0
    %135 = vmatprep.subr.mxu0 0.0
    %136 = vmatpush1.msra.mxu0 0.0
    %137 = vmatprep.subr.mxu0 0.0
    %138 = vmatpush1.msra.mxu0 0.0
    %139 = vmatprep.subr.mxu0 0.0
    %140 = vmatpush1.msra.mxu0 0.0
    %141 = vmatprep.subr.mxu0 0.0
    %142 = vmatpush1.msra.mxu0 0.0
    %143 = vmatprep.subr.mxu0 0.0
    %144 = vmatpush1.msra.mxu0 0.0
    %145 = vmatprep.subr.mxu0 0.0
    %146 = vmatpush1.msra.mxu0 0.0
    %147 = vmatprep.subr.mxu0 0.0
    %148 = vmatpush1.msra.mxu0 0.0
    %149 = vmatprep.subr.mxu0 0.0
    %150 = vmatpush1.msra.mxu0 0.0
    %151 = vmatprep.subr.mxu0 0.0
    %152 = vmatpush1.msra.mxu0 0.0
    %153 = vmatprep.subr.mxu0 0.0
    %154 = vmatpush1.msra.mxu0 0.0
    %155 = vmatprep.subr.mxu0 0.0
    %156 = vmatpush1.msra.mxu0 0.0
    %157 = vmatprep.subr.mxu0 0.0
    %158 = vmatpush1.msra.mxu0 0.0
    %159 = vmatprep.subr.mxu0 0.0
    %160 = vmatpush1.msra.mxu0 0.0
    %161 = vmatprep.subr.mxu0 0.0
    %162 = vmatpush1.msra.mxu0 0.0
    %163 = vmatprep.subr.mxu0 0.0
    %164 = vmatpush1.msra.mxu0 0.0
    %165 = vmatprep.subr.mxu0 0.0
    %166 = vmatpush1.msra.mxu0 0.0
    %167 = vmatprep.subr.mxu0 0.0
    %168 = vmatpush1.msra.mxu0 0.0
    %169 = vmatprep.mubr.f32.mxu0 0.0
    %170 = vmatmul.mubr.f32.gmra.mrb[0].mxu0 %v103
    %v171 = vpop.f32.mrb[0].mxu0
    %v172 = vadd.f32 0.0, %v171
    %v173 = vpop.f32.mrb[0].mxu0
    %174 = vdwg.mxu0
    %v177 = vrot.slane %v73, 7
    %v178 = vsel %vm100, %v177, %v72
    %v179 = vsel %vm102, %v178, 0
    %181 = vmatprep.subr.mxu0 0.0
    %182 = vmatpush1.msra.mxu0 %v90
    %183 = vmatprep.subr.mxu0 0.0
    %184 = vmatpush1.msra.mxu0 %v91
    %185 = vmatprep.subr.mxu0 0.0
    %186 = vmatpush1.msra.mxu0 %v92
    %187 = vmatprep.subr.mxu0 0.0
    %188 = vmatpush1.msra.mxu0 %v93
    %189 = vmatprep.subr.mxu0 0.0
    %190 = vmatpush1.msra.mxu0 0.0
    %191 = vmatprep.subr.mxu0 0.0
    %192 = vmatpush1.msra.mxu0 0.0
    %193 = vmatprep.subr.mxu0 0.0
    %194 = vmatpush1.msra.mxu0 0.0
    %195 = vmatprep.subr.mxu0 0.0
    %196 = vmatpush1.msra.mxu0 0.0
    %197 = vmatprep.subr.mxu0 0.0
    %198 = vmatpush1.msra.mxu0 0.0
    %199 = vmatprep.subr.mxu0 0.0
    %200 = vmatpush1.msra.mxu0 0.0
    %201 = vmatprep.subr.mxu0 0.0
    %202 = vmatpush1.msra.mxu0 0.0
    %203 = vmatprep.subr.mxu0 0.0
    %204 = vmatpush1.msra.mxu0 0.0
    %205 = vmatprep.subr.mxu0 0.0
    %206 = vmatpush1.msra.mxu0 0.0
    %207 = vmatprep.subr.mxu0 0.0
    %208 = vmatpush1.msra.mxu0 0.0
    %209 = vmatprep.subr.mxu0 0.0
    %210 = vmatpush1.msra.mxu0 0.0
    %211 = vmatprep.subr.mxu0 0.0
    %212 = vmatpush1.msra.mxu0 0.0
    %213 = vmatprep.subr.mxu0 0.0
    %214 = vmatpush1.msra.mxu0 0.0
    %215 = vmatprep.subr.mxu0 0.0
    %216 = vmatpush1.msra.mxu0 0.0
    %217 = vmatprep.subr.mxu0 0.0
    %218 = vmatpush1.msra.mxu0 0.0
    %219 = vmatprep.subr.mxu0 0.0
    %220 = vmatpush1.msra.mxu0 0.0
    %221 = vmatprep.subr.mxu0 0.0
    %222 = vmatpush1.msra.mxu0 0.0
    %223 = vmatprep.subr.mxu0 0.0
    %224 = vmatpush1.msra.mxu0 0.0
    %225 = vmatprep.subr.mxu0 0.0
    %226 = vmatpush1.msra.mxu0 0.0
    %227 = vmatprep.subr.mxu0 0.0
    %228 = vmatpush1.msra.mxu0 0.0
    %229 = vmatprep.subr.mxu0 0.0
    %230 = vmatpush1.msra.mxu0 0.0
    %231 = vmatprep.subr.mxu0 0.0
    %232 = vmatpush1.msra.mxu0 0.0
    %233 = vmatprep.subr.mxu0 0.0
    %234 = vmatpush1.msra.mxu0 0.0
    %235 = vmatprep.subr.mxu0 0.0
    %236 = vmatpush1.msra.mxu0 0.0
    %237 = vmatprep.subr.mxu0 0.0
    %238 = vmatpush1.msra.mxu0 0.0
    %239 = vmatprep.subr.mxu0 0.0
    %240 = vmatpush1.msra.mxu0 0.0
    %241 = vmatprep.subr.mxu0 0.0
    %242 = vmatpush1.msra.mxu0 0.0
    %243 = vmatprep.subr.mxu0 0.0
    %244 = vmatpush1.msra.mxu0 0.0
    %245 = vmatprep.mubr.f32.mxu0 0.0
    %246 = vmatmul.mubr.f32.gmra.mrb[0].mxu0 %v179
    %v247 = vpop.f32.mrb[0].mxu0
    %v248 = vadd.f32 %v172, %v247
    %v249 = vpop.f32.mrb[0].mxu0
    %250 = vdwg.mxu0
    %v251 = vld [vmem:[%s6] sm:$0x1]
    %v253 = vlaneseq
    %v254 = vshrl.u32 %v253, 7
    %v255 = vsub.s32 0, %v254
    %v256 = vrot.slane %v251, %v255
    %v258 = vadd.f32 %v248, %v256
    %vm259 = vcmask 9216
    %260 = vst.msk [vmem:[#allocation2] sm:$0x3] %vm259, %v258
    // Predicated region
    $region30: #{_forward.11} parent=1 // pred_check
      _
    $region31: #{_forward.11} parent=1 // pred_check_branch
      %262 = sbr.rel (0) target = $region33
    $region32: #{_forward.11} parent=1 // pred_region
      %s264 = ssub.s32 32, 32
      %265 = vsyncadd [#allocation3], %s264
      %s267 = sshll.u32 [#allocation2], 4
      %s268 = int_to_ptr.vmem [resolvable:$true] %s267
      %270 = dma.vmem_to_hbm [thread:$0]  %s268, 32, %s7, [#allocation3]
    $region33: #{_forward.11} parent=1 // pred_fallthru
      _
    // Predicated region
    $region34: #{_forward.11} parent=1 // pred_check
      _
    $region35: #{_forward.11} parent=1 // pred_check_branch
      %272 = sbr.rel (0) target = $region37
    $region36: #{_forward.11} parent=1 // pred_region
      %273 = dma.done [#allocation3], 32
    $region37: #{_forward.11} parent=1 // pred_fallthru
      _
    %274 = vsyncpa [#allocation3], 1

</llo_original>
